<compile_context>
chip_gen: v5e
topology: v5e:2x2
jax: 0.10.0
libtpu: 0.0.40
codegen_flags: <defaults>
</compile_context>

<pallas_src>
import numpy as np
import jax
import jax.numpy as jnp
from jax.experimental import pallas as pl
from jax.experimental.pallas import tpu as pltpu

RRELU_SLOPE = (1.0 / 8.0 + 1.0 / 3.0) / 2.0  # nn.RReLU() expectation in eval mode


def round_up(x, m):
    return (x + m - 1) // m * m


def _vmem_capacity_bytes():
    try:
        cap = getattr(pltpu.get_tpu_info(), "vmem_capacity_bytes", None)
        if cap:
            return int(cap)
    except Exception:
        pass
    return 64 << 20  # conservative fallback (v7x-sized VMEM)


# ----------------------------- Pallas kernel --------------------------------
def rgat_kernel(h_dst_ref, srcrow_ref, tdst_ref, norm_ref, rel_ref,
                hw_ref, hwsub_ref, wdst_ref, bproj_ref, bself_ref, out_ref):
    f32 = jnp.float32
    TM, H = h_dst_ref.shape
    N = norm_ref.shape[1]
    R = hw_ref.shape[0] // N

    def leaky(x):
        return jnp.where(x >= 0.0, x, x * f32(RRELU_SLOPE))

    def masked_softmax(scores, mask):
        s = jnp.where(mask, scores, f32(-1e30))
        m = jnp.max(s, axis=-1, keepdims=True)
        e = jnp.where(mask, jnp.exp(s - m), f32(0.0))
        d = jnp.sum(e, axis=-1, keepdims=True)
        # divide on the EUP; fully-masked rows -> all zeros (approx ~1e-3 rel err)
        return e * pl.reciprocal(jnp.maximum(d, f32(1e-30)), approx=True)

    h_dst_f32 = h_dst_ref[...]                    # [TM, H] f32 (passthrough copy)
    h_dst = h_dst_f32.astype(jnp.bfloat16)        # MXU operand
    norm = norm_ref[...].astype(f32)              # [TM, N] per-edge norm (bf16 slab)
    rel = rel_ref[...].astype(jnp.int32)          # [TM, N] relation ids (int8 slab)
    adj = norm > 0.0                              # edge mask derived from norm
    type_dst = tdst_ref[...]                      # [TM, 1] f32 (padding rows = -1)
    ea_src = srcrow_ref[0:1, :]                   # [1, N] h_src @ w_attn_src
    ss_src = srcrow_ref[1:2, :]                   # [1, N] h_src @ w_sub_src
    type_src = srcrow_ref[2:3, :]                 # [1, N] subgraph_type (pad = -1)

    # fused dst-side projections: [ self_loop | attn_dst | sub_dst | gate_h | 0 ]
    dstp = jnp.dot(h_dst, wdst_ref[...], preferred_element_type=f32)   # [TM, Hp]
    self_h = dstp[:, :H] + bself_ref[...]
    ed = dstp[:, H:H + 1]
    sd = dstp[:, H + 1:H + 2]
    gh = dstp[:, H + 2:H + 3]

    # --- subgraph attention: node i attends over the opposite subgraph type ---
    target = jnp.where(type_dst == 1.0, 0.0, 1.0)              # [TM, 1]
    sub_mask = type_src == target                              # [TM, N] bool
    sub_alpha = masked_softmax(leaky(sd + ss_src), sub_mask)
    # pre-projected path:  sub_alpha @ (h @ [w_proj | w_gate_m])  -> [TM, Hp_sub]
    subp = jnp.dot(sub_alpha.astype(jnp.bfloat16), hwsub_ref[...],
                   preferred_element_type=f32)
    sub_proj = subp[:, :H] + bproj_ref[...]
    gate = jax.nn.sigmoid(gh + subp[:, H:H + 1])

    # --- edge attention over (dst <- src) pairs ---
    alpha = masked_softmax(leaky(ed + ea_src), adj)            # [TM, N]
    an = alpha * norm

    # --- relational messages: unrolled per-relation MXU dots, f32 accumulator ---
    agg = jnp.zeros((TM, H), f32)
    for r in range(R):
        mask_r = jnp.where(rel == r, an, f32(0.0)).astype(jnp.bfloat16)
        agg = agg + jnp.dot(mask_r, hw_ref[r * N:(r + 1) * N, :],
                            preferred_element_type=f32)

    h_new = agg + self_h + sub_proj * gate

    # DGL update_all semantics: zero in-degree nodes keep their previous features
    deg = jnp.sum(norm, axis=-1, keepdims=True)   # > 0 iff the node has in-edges
    out_ref[...] = jnp.where(deg > 0.0, h_new, h_dst_f32)


# ------------------------------ JAX glue -------------------------------------
def init_params(key, hidden, num_rels):
    ks = jax.random.split(key, 10)
    s = 0.1
    return {
        "w_rel":      s * jax.random.normal(ks[0], (num_rels, hidden, hidden), jnp.float32),
        "w_attn":     s * jax.random.normal(ks[1], (2 * hidden, 1), jnp.float32),   # attn_layer
        "w_sub_attn": s * jax.random.normal(ks[2], (2 * hidden, 1), jnp.float32),   # subgraph_attn
        "w_proj":     s * jax.random.normal(ks[3], (hidden, hidden), jnp.float32),  # subgraph_proj
        "b_proj":     s * jax.random.normal(ks[4], (1, hidden), jnp.float32),
        "w_gate":     s * jax.random.normal(ks[5], (2 * hidden, 1), jnp.float32),   # subgraph_gate
        "w_self":     s * jax.random.normal(ks[6], (hidden, hidden), jnp.float32),  # self_loop
        "b_self":     s * jax.random.normal(ks[7], (1, hidden), jnp.float32),
        "w_ext":      s * jax.random.normal(ks[8], (2 * hidden, 1), jnp.float32),   # extension_pred_layer
        "b_ext":      s * jax.random.normal(ks[9], (1,), jnp.float32),
    }


def build_edge_norm(adj, rel, num_rels):
    """Per-edge norm = 1 / (#in-edges of dst with the same relation).
    Built from an [N, R] in-degree table + per-edge gather (no [R, N, N] one-hot)."""
    n = adj.shape[0]
    rel = rel.astype(jnp.int32)
    cnt = jnp.zeros((n, num_rels), jnp.float32)
    cnt = cnt.at[jnp.arange(n)[:, None], rel].add(adj)            # scatter-add
    inv = jnp.where(cnt > 0, 1.0 / jnp.maximum(cnt, 1.0), 0.0)    # [N, R]
    return adj * jnp.take_along_axis(inv, rel, axis=1)            # [N, N]


def extension_rel_scores(h, answer, exten_edges_ids, w_ext, b_ext, pad_value=-1):
    # extension_pred_layer glue (per-candidate sigmoid score, averaged per graph)
    scores = []
    for row in np.asarray(exten_edges_ids):
        idx = row[row != pad_value][:2]
        if len(idx) == 0:
            continue
        hm = jnp.mean(h[jnp.asarray(idx)], axis=0)
        am = jnp.mean(answer[jnp.asarray(idx)], axis=0)
        feat = jnp.concatenate([hm, am], axis=-1)
        scores.append(jax.nn.sigmoid(feat @ w_ext[:, 0] + b_ext[0]))
    if scores:
        return jnp.mean(jnp.stack(scores)).reshape(1)
    return jnp.ones((1,), jnp.float32)


@jax.jit
def rgat_pallas(h, adj, rel, subgraph_type, params):
    f32, bf16 = jnp.float32, jnp.bfloat16
    N, H = h.shape
    R = params["w_rel"].shape[0]

    cap = _vmem_capacity_bytes()
    vmem_ceiling = cap * 3 // 4            # ~48 MiB on v7x, ~96 MiB on v5e/v6e
    TM = 256 if (cap >= (100 << 20) and N >= 512) else 128
    Np = round_up(max(N, TM), TM)          # lane-dense & grid-aligned

    # ---- pad the dense graph up to Np (padded nodes: no edges, type = -1) ----
    h_p = jnp.zeros((Np, H), f32).at[:N].set(h)
    adj_p = jnp.zeros((Np, Np), f32).at[:N, :N].set(adj)
    rel_p32 = jnp.zeros((Np, Np), jnp.int32).at[:N, :N].set(rel.astype(jnp.int32))
    type_p = jnp.full((Np,), -1.0, f32).at[:N].set(subgraph_type.astype(f32))
    norm_p = build_edge_norm(adj_p, rel_p32, R).astype(bf16)      # bf16 edge slab
    rel_p = rel_p32.astype(jnp.int8)                              # int8 edge slab

    # ---- one-time weight packing (layout plumbing) ----
    w_attn_src, w_attn_dst = params["w_attn"][:H], params["w_attn"][H:]
    w_sub_src, w_sub_dst = params["w_sub_attn"][:H], params["w_sub_attn"][H:]
    w_gate_h, w_gate_m = params["w_gate"][:H], params["w_gate"][H:]

    Hp_dst = round_up(H + 3, 128)
    w_dst = jnp.zeros((H, Hp_dst), f32)
    w_dst = w_dst.at[:, :H].set(params["w_self"])
    w_dst = w_dst.at[:, H].set(w_attn_dst[:, 0])
    w_dst = w_dst.at[:, H + 1].set(w_sub_dst[:, 0])
    w_dst = w_dst.at[:, H + 2].set(w_gate_h[:, 0])

    Hp_sub = round_up(H + 1, 128)
    w_sub = jnp.zeros((H, Hp_sub), f32)
    w_sub = w_sub.at[:, :H].set(params["w_proj"])
    w_sub = w_sub.at[:, H].set(w_gate_m[:, 0])

    # src-side per-node scalars as row vectors (avoids per-tile transposes)
    src_rows = jnp.zeros((8, Np), f32)
    src_rows = src_rows.at[0].set((h_p @ w_attn_src)[:, 0])
    src_rows = src_rows.at[1].set((h_p @ w_sub_src)[:, 0])
    src_rows = src_rows.at[2].set(type_p)

    # resident MXU operands (bf16): stacked h @ W_r and pre-projected subgraph path
    hW = jnp.einsum("nh,rhk->rnk", h_p, params["w_rel"]).reshape(R * Np, H).astype(bf16)
    hw_sub = (h_p @ w_sub).astype(bf16)                           # [Np, Hp_sub]

    grid = (Np // TM,)

    # ---- generation-aware VMEM budget: residents + streamed slabs + temporaries ----
    bytes_resident = 2 * (R * Np * H * 2 + Np * Hp_sub * 2 + 8 * Np * 4
                          + H * Hp_dst * 2 + 2 * H * 4)
    bytes_stream = 2 * (2 * TM * H * 4          # h_dst in + out tile (double buffered)
                        + TM * 128 * 4          # subgraph_type column (lane-padded)
                        + TM * Np * 2           # norm slab (bf16)
                        + TM * Np)              # rel slab (int8)
    bytes_temps = 6 * TM * Np * 4 + 2 * TM * Np * 2 + 4 * TM * Hp_dst * 4
    vmem_limit = int(min(max(bytes_resident + bytes_stream + bytes_temps + (4 << 20),
                             32 << 20), vmem_ceiling))

    flops = 2 * Np * H * Hp_dst + 2 * Np * Np * Hp_sub + 2 * R * Np * Np * H
    transc = 2 * Np * Np + 4 * Np
    hbm_bytes = (3 * Np * Np + R * Np * H * 2 + Np * Hp_sub * 2 + 8 * Np * 4
                 + H * Hp_dst * 2 + 2 * H * 4 + 2 * Np * H * 4 + Np * 4)

    out_p = pl.pallas_call(
        rgat_kernel,
        out_shape=jax.ShapeDtypeStruct((Np, H), f32),
        grid=grid,
        in_specs=[
            pl.BlockSpec((TM, H), lambda i: (i, 0)),           # h_dst (f32, tiled)
            pl.BlockSpec((8, Np), lambda i: (0, 0)),           # src row scalars
            pl.BlockSpec((TM, 1), lambda i: (i, 0)),           # subgraph_type (dst)
            pl.BlockSpec((TM, Np), lambda i: (i, 0)),          # per-edge norm slab (bf16)
            pl.BlockSpec((TM, Np), lambda i: (i, 0)),          # relation-id slab (int8)
            pl.BlockSpec((R * Np, H), lambda i: (0, 0)),       # stacked h @ W_r (bf16)
            pl.BlockSpec((Np, Hp_sub), lambda i: (0, 0)),      # h @ [w_proj|w_gate_m] (bf16)
            pl.BlockSpec((H, Hp_dst), lambda i: (0, 0)),       # packed dst weights (bf16)
            pl.BlockSpec((1, H), lambda i: (0, 0)),            # b_proj
            pl.BlockSpec((1, H), lambda i: (0, 0)),            # b_self
        ],
        out_specs=pl.BlockSpec((TM, H), lambda i: (i, 0)),
        input_output_aliases={0: 0},                           # reuse h_p's HBM buffer
        compiler_params=pltpu.CompilerParams(
            dimension_semantics=("parallel",),
            vmem_limit_bytes=vmem_limit),
        cost_estimate=pl.CostEstimate(flops=int(flops), transcendentals=int(transc),
                                      bytes_accessed=int(hbm_bytes)),
    )(h_p, src_rows, type_p.reshape(Np, 1), norm_p, rel_p,
      hW, hw_sub, w_dst.astype(bf16), params["b_proj"], params["b_self"])

    return out_p[:N]


def rgat_forward(h, answer, adj, rel, subgraph_type, params, exten_edges_ids, pad_value=-1):
    N = h.shape[0]
    h_out = rgat_pallas(h, adj, rel, subgraph_type, params)

    # remaining outputs of the PyTorch forward (single-graph batch bookkeeping)
    rel_scores = extension_rel_scores(h, answer, exten_edges_ids,
                                      params["w_ext"], params["b_ext"], pad_value)
    origin_id = jnp.arange(N, dtype=jnp.int32)
    batch_num_nodes = jnp.array([N], jnp.int32)
    batch_num_edges = jnp.sum(adj).astype(jnp.int32).reshape(1)
    # dropout == identity (eval), activation is None, bias is None
    return h_out, origin_id, batch_num_nodes, batch_num_edges, rel_scores.reshape(-1, 1)


# -------------------------- pure-JAX reference -------------------------------
def rgat_reference(h, adj, rel, subgraph_type, params):
    f32 = jnp.float32
    H = h.shape[1]
    R = params["w_rel"].shape[0]

    def bdot(a, b):  # mirror the kernel's bf16 MXU operands / f32 accumulation
        return jnp.dot(a.astype(jnp.bfloat16), b.astype(jnp.bfloat16),
                       preferred_element_type=f32)

    def leaky(x):
        return jnp.where(x >= 0, x, x * RRELU_SLOPE)

    def msm(s, m):
        s = jnp.where(m > 0, s, -1e30)
        e = jnp.exp(s - jnp.max(s, -1, keepdims=True)) * m
        return e / jnp.maximum(jnp.sum(e, -1, keepdims=True), 1e-30)

    w_attn_src, w_attn_dst = params["w_attn"][:H], params["w_attn"][H:]
    w_sub_src, w_sub_dst = params["w_sub_attn"][:H], params["w_sub_attn"][H:]
    w_gate_h, w_gate_m = params["w_gate"][:H], params["w_gate"][H:]

    st = subgraph_type.astype(f32)
    target = jnp.where(st == 1, 0.0, 1.0)
    sub_mask = (st[None, :] == target[:, None]).astype(f32)

    sub_alpha = msm(leaky(bdot(h, w_sub_dst) + (h @ w_sub_src).T), sub_mask)
    sub_msg = bdot(sub_alpha, h)
    alpha = msm(leaky(bdot(h, w_attn_dst) + (h @ w_attn_src).T), adj)

    norm = build_edge_norm(adj, rel, R)
    agg = sum(bdot(alpha * norm * (rel == r), bdot(h, params["w_rel"][r]))
              for r in range(R))

    self_h = bdot(h, params["w_self"]) + params["b_self"]
    gate = jax.nn.sigmoid(bdot(h, w_gate_h) + bdot(sub_msg, w_gate_m))
    h_new = agg + self_h + (bdot(sub_msg, params["w_proj"]) + params["b_proj"]) * gate
    deg = jnp.sum(adj, -1, keepdims=True)
    return jnp.where(deg > 0, h_new, h)


# --------------------------------- main ---------------------------------------
if __name__ == "__main__":
    N, H, R = 200, 128, 3          # Np pads to 256 -> grid of 2 dst tiles
    key = jax.random.PRNGKey(0)
    k_h, k_a, k_adj, k_rel, k_p = jax.random.split(key, 5)

    h = jax.random.normal(k_h, (N, H), jnp.float32)
    answer = jax.random.normal(k_a, (N, H), jnp.float32)
    adj = (jax.random.uniform(k_adj, (N, N)) < 0.15).astype(jnp.float32)
    adj = adj.at[jnp.arange(N), (jnp.arange(N) + 1) % N].set(1.0)   # every node has >=1 in-edge
    rel = jax.random.randint(k_rel, (N, N), 0, R)
    subgraph_type = (jnp.arange(N) % 2).astype(jnp.int32)           # mix of type-0 / type-1 nodes
    exten_edges_ids = np.array([[0, 1, 0], [2, 3, 1], [-1, -1, -1], [4, 5, 2]], np.int32)

    params = init_params(k_p, H, R)

    out, origin_id, bnn, bne, rel_scores = rgat_forward(
        h, answer, adj, rel, subgraph_type, params, exten_edges_ids)
    jax.block_until_ready(out)

    # correctness check against a pure-JAX reference of the same math
    ref = rgat_reference(h, adj, rel, subgraph_type, params)
    assert np.allclose(np.asarray(out), np.asarray(ref), atol=2e-2, rtol=2e-2), "mismatch vs reference"
    assert out.shape == (N, H) and rel_scores.shape == (1, 1)

    print("KERNEL_OK")
</pallas_src>

<mosaic_0001>
module attributes {stable_mosaic.version = 11 : i64} {
  func.func @rgat_kernel(%arg0: i32, %arg1: memref<128x128xf32, #tpu.memory_space<vmem>>, %arg2: memref<8x256xf32, #tpu.memory_space<vmem>>, %arg3: memref<128x1xf32, #tpu.memory_space<vmem>>, %arg4: memref<128x256xbf16, #tpu.memory_space<vmem>>, %arg5: memref<128x256xi8, #tpu.memory_space<vmem>>, %arg6: memref<768x128xbf16, #tpu.memory_space<vmem>>, %arg7: memref<256x256xbf16, #tpu.memory_space<vmem>>, %arg8: memref<128x256xbf16, #tpu.memory_space<vmem>>, %arg9: memref<1x128xf32, #tpu.memory_space<vmem>>, %arg10: memref<1x128xf32, #tpu.memory_space<vmem>>, %arg11: memref<128x128xf32, #tpu.memory_space<vmem>>) attributes {dimension_semantics = [#tpu.dimension_semantics<parallel>], iteration_bounds = array<i64: 2>, scalar_prefetch = 0 : i64, scratch_operands = 0 : i64, tpu.core_type = #tpu.core_type<tc>, window_params = [{transform_indices = @transform_0, window_bounds = array<i64: 128, 128>}, {pipeline_mode = #tpu.pipeline_mode<synchronous>, transform_indices = @transform_1, window_bounds = array<i64: 8, 256>}, {transform_indices = @transform_2, window_bounds = array<i64: 128, 1>}, {transform_indices = @transform_3, window_bounds = array<i64: 128, 256>}, {transform_indices = @transform_4, window_bounds = array<i64: 128, 256>}, {pipeline_mode = #tpu.pipeline_mode<synchronous>, transform_indices = @transform_5, window_bounds = array<i64: 768, 128>}, {pipeline_mode = #tpu.pipeline_mode<synchronous>, transform_indices = @transform_6, window_bounds = array<i64: 256, 256>}, {pipeline_mode = #tpu.pipeline_mode<synchronous>, transform_indices = @transform_7, window_bounds = array<i64: 128, 256>}, {pipeline_mode = #tpu.pipeline_mode<synchronous>, transform_indices = @transform_8, window_bounds = array<i64: 1, 128>}, {pipeline_mode = #tpu.pipeline_mode<synchronous>, transform_indices = @transform_9, window_bounds = array<i64: 1, 128>}, {transform_indices = @transform_10, window_bounds = array<i64: 128, 128>}]} {
    %c0 = arith.constant 0 : index
    %c0_0 = arith.constant 0 : index
    %0 = vector.load %arg1[%c0, %c0_0] : memref<128x128xf32, #tpu.memory_space<vmem>>, vector<128x128xf32>
    %1 = arith.truncf %0 : vector<128x128xf32> to vector<128x128xbf16>
    %c0_1 = arith.constant 0 : index
    %c0_2 = arith.constant 0 : index
    %2 = vector.load %arg4[%c0_1, %c0_2] : memref<128x256xbf16, #tpu.memory_space<vmem>>, vector<128x256xbf16>
    %3 = arith.extf %2 : vector<128x256xbf16> to vector<128x256xf32>
    %c0_3 = arith.constant 0 : index
    %c0_4 = arith.constant 0 : index
    %4 = vector.load %arg5[%c0_3, %c0_4] : memref<128x256xi8, #tpu.memory_space<vmem>>, vector<128x256xi8>
    %5 = arith.extsi %4 : vector<128x256xi8> to vector<128x256xi32>
    %cst = arith.constant 0.000000e+00 : f32
    %6 = vector.broadcast %cst : f32 to vector<128x256xf32>
    %7 = arith.cmpf ogt, %3, %6 : vector<128x256xf32>
    %c0_5 = arith.constant 0 : index
    %c0_6 = arith.constant 0 : index
    %8 = vector.load %arg3[%c0_5, %c0_6] : memref<128x1xf32, #tpu.memory_space<vmem>>, vector<128x1xf32>
    %c0_7 = arith.constant 0 : index
    %c0_8 = arith.constant 0 : index
    %9 = vector.load %arg2[%c0_7, %c0_8] : memref<8x256xf32, #tpu.memory_space<vmem>>, vector<1x256xf32>
    %c1 = arith.constant 1 : index
    %c0_9 = arith.constant 0 : index
    %10 = vector.load %arg2[%c1, %c0_9] : memref<8x256xf32, #tpu.memory_space<vmem>>, vector<1x256xf32>
    %c2 = arith.constant 2 : index
    %c0_10 = arith.constant 0 : index
    %11 = vector.load %arg2[%c2, %c0_10] : memref<8x256xf32, #tpu.memory_space<vmem>>, vector<1x256xf32>
    %c0_11 = arith.constant 0 : index
    %c0_12 = arith.constant 0 : index
    %12 = vector.load %arg8[%c0_11, %c0_12] : memref<128x256xbf16, #tpu.memory_space<vmem>>, vector<128x256xbf16>
    %cst_13 = arith.constant dense<0.000000e+00> : vector<128x256xf32>
    %13 = tpu.matmul %1, %12, %cst_13 {dimension_numbers = #tpu.dot_dimension_numbers<[1], [0], [0], [1], [0, 0, 1, 1], [], []>} : vector<128x128xbf16>, vector<128x256xbf16>, vector<128x256xf32> -> vector<128x256xf32>
    %14 = vector.extract_strided_slice %13 {offsets = [0, 0], sizes = [128, 128], strides = [1, 1]} : vector<128x256xf32> to vector<128x128xf32>
    %c0_14 = arith.constant 0 : index
    %c0_15 = arith.constant 0 : index
    %15 = vector.load %arg10[%c0_14, %c0_15] : memref<1x128xf32, #tpu.memory_space<vmem>>, vector<1x128xf32>
    %16 = vector.broadcast %15 : vector<1x128xf32> to vector<128x128xf32>
    %17 = arith.addf %14, %16 : vector<128x128xf32>
    %18 = vector.extract_strided_slice %13 {offsets = [0, 128], sizes = [128, 1], strides = [1, 1]} : vector<128x256xf32> to vector<128x1xf32>
    %19 = vector.extract_strided_slice %13 {offsets = [0, 129], sizes = [128, 1], strides = [1, 1]} : vector<128x256xf32> to vector<128x1xf32>
    %20 = vector.extract_strided_slice %13 {offsets = [0, 130], sizes = [128, 1], strides = [1, 1]} : vector<128x256xf32> to vector<128x1xf32>
    %cst_16 = arith.constant 1.000000e+00 : f32
    %21 = vector.broadcast %cst_16 : f32 to vector<128x1xf32>
    %22 = arith.cmpf oeq, %8, %21 : vector<128x1xf32>
    %cst_17 = arith.constant 0.000000e+00 : f32
    %cst_18 = arith.constant 1.000000e+00 : f32
    %23 = vector.broadcast %cst_17 : f32 to vector<128x1xf32>
    %24 = vector.broadcast %cst_18 : f32 to vector<128x1xf32>
    %25 = arith.select %22, %23, %24 : vector<128x1xi1>, vector<128x1xf32>
    %26 = vector.broadcast %11 : vector<1x256xf32> to vector<128x256xf32>
    %27 = vector.broadcast %25 : vector<128x1xf32> to vector<128x256xf32>
    %28 = arith.cmpf oeq, %26, %27 : vector<128x256xf32>
    %29 = vector.broadcast %19 : vector<128x1xf32> to vector<128x256xf32>
    %30 = vector.broadcast %10 : vector<1x256xf32> to vector<128x256xf32>
    %31 = arith.addf %29, %30 : vector<128x256xf32>
    %cst_19 = arith.constant 0.000000e+00 : f32
    %32 = vector.broadcast %cst_19 : f32 to vector<128x256xf32>
    %33 = arith.cmpf oge, %31, %32 : vector<128x256xf32>
    %cst_20 = arith.constant 0.229166672 : f32
    %34 = vector.broadcast %cst_20 : f32 to vector<128x256xf32>
    %35 = arith.mulf %31, %34 : vector<128x256xf32>
    %36 = arith.select %33, %31, %35 : vector<128x256xi1>, vector<128x256xf32>
    %cst_21 = arith.constant -1.000000e+30 : f32
    %37 = vector.broadcast %cst_21 : f32 to vector<128x256xf32>
    %38 = arith.select %28, %36, %37 : vector<128x256xi1>, vector<128x256xf32>
    %cst_22 = arith.constant dense<0xFF800000> : vector<128xf32>
    %39 = vector.multi_reduction <maximumf>, %38, %cst_22 [1] : vector<128x256xf32> to vector<128xf32>
    %40 = vector.shape_cast %39 : vector<128xf32> to vector<128x1xf32>
    %41 = vector.broadcast %40 : vector<128x1xf32> to vector<128x256xf32>
    %42 = arith.subf %38, %41 : vector<128x256xf32>
    %43 = math.exp %42 : vector<128x256xf32>
    %cst_23 = arith.constant 0.000000e+00 : f32
    %44 = vector.broadcast %cst_23 : f32 to vector<128x256xf32>
    %45 = arith.select %28, %43, %44 : vector<128x256xi1>, vector<128x256xf32>
    %cst_24 = arith.constant dense<0.000000e+00> : vector<128xf32>
    %46 = vector.multi_reduction <add>, %45, %cst_24 [1] : vector<128x256xf32> to vector<128xf32>
    %47 = vector.shape_cast %46 : vector<128xf32> to vector<128x1xf32>
    %cst_25 = arith.constant 1.000000e-30 : f32
    %48 = vector.broadcast %cst_25 : f32 to vector<128x1xf32>
    %49 = arith.maximumf %47, %48 : vector<128x1xf32>
    %50 = tpu.reciprocal %49 {approx = true} : vector<128x1xf32> -> vector<128x1xf32>
    %51 = vector.broadcast %50 : vector<128x1xf32> to vector<128x256xf32>
    %52 = arith.mulf %45, %51 : vector<128x256xf32>
    %53 = arith.truncf %52 : vector<128x256xf32> to vector<128x256xbf16>
    %c0_26 = arith.constant 0 : index
    %c0_27 = arith.constant 0 : index
    %54 = vector.load %arg7[%c0_26, %c0_27] : memref<256x256xbf16, #tpu.memory_space<vmem>>, vector<256x256xbf16>
    %cst_28 = arith.constant dense<0.000000e+00> : vector<128x256xf32>
    %55 = tpu.matmul %53, %54, %cst_28 {dimension_numbers = #tpu.dot_dimension_numbers<[1], [0], [0], [1], [0, 0, 1, 1], [], []>} : vector<128x256xbf16>, vector<256x256xbf16>, vector<128x256xf32> -> vector<128x256xf32>
    %56 = vector.extract_strided_slice %55 {offsets = [0, 0], sizes = [128, 128], strides = [1, 1]} : vector<128x256xf32> to vector<128x128xf32>
    %c0_29 = arith.constant 0 : index
    %c0_30 = arith.constant 0 : index
    %57 = vector.load %arg9[%c0_29, %c0_30] : memref<1x128xf32, #tpu.memory_space<vmem>>, vector<1x128xf32>
    %58 = vector.broadcast %57 : vector<1x128xf32> to vector<128x128xf32>
    %59 = arith.addf %56, %58 : vector<128x128xf32>
    %60 = vector.extract_strided_slice %55 {offsets = [0, 128], sizes = [128, 1], strides = [1, 1]} : vector<128x256xf32> to vector<128x1xf32>
    %61 = arith.addf %20, %60 : vector<128x1xf32>
    %62 = arith.negf %61 : vector<128x1xf32>
    %63 = math.exp %62 : vector<128x1xf32>
    %cst_31 = arith.constant 1.000000e+00 : f32
    %64 = vector.broadcast %cst_31 : f32 to vector<128x1xf32>
    %65 = arith.addf %64, %63 : vector<128x1xf32>
    %66 = arith.divf %64, %65 : vector<128x1xf32>
    %67 = vector.broadcast %18 : vector<128x1xf32> to vector<128x256xf32>
    %68 = vector.broadcast %9 : vector<1x256xf32> to vector<128x256xf32>
    %69 = arith.addf %67, %68 : vector<128x256xf32>
    %cst_32 = arith.constant 0.000000e+00 : f32
    %70 = vector.broadcast %cst_32 : f32 to vector<128x256xf32>
    %71 = arith.cmpf oge, %69, %70 : vector<128x256xf32>
    %cst_33 = arith.constant 0.229166672 : f32
    %72 = vector.broadcast %cst_33 : f32 to vector<128x256xf32>
    %73 = arith.mulf %69, %72 : vector<128x256xf32>
    %74 = arith.select %71, %69, %73 : vector<128x256xi1>, vector<128x256xf32>
    %cst_34 = arith.constant -1.000000e+30 : f32
    %75 = vector.broadcast %cst_34 : f32 to vector<128x256xf32>
    %76 = arith.select %7, %74, %75 : vector<128x256xi1>, vector<128x256xf32>
    %cst_35 = arith.constant dense<0xFF800000> : vector<128xf32>
    %77 = vector.multi_reduction <maximumf>, %76, %cst_35 [1] : vector<128x256xf32> to vector<128xf32>
    %78 = vector.shape_cast %77 : vector<128xf32> to vector<128x1xf32>
    %79 = vector.broadcast %78 : vector<128x1xf32> to vector<128x256xf32>
    %80 = arith.subf %76, %79 : vector<128x256xf32>
    %81 = math.exp %80 : vector<128x256xf32>
    %cst_36 = arith.constant 0.000000e+00 : f32
    %82 = vector.broadcast %cst_36 : f32 to vector<128x256xf32>
    %83 = arith.select %7, %81, %82 : vector<128x256xi1>, vector<128x256xf32>
    %cst_37 = arith.constant dense<0.000000e+00> : vector<128xf32>
    %84 = vector.multi_reduction <add>, %83, %cst_37 [1] : vector<128x256xf32> to vector<128xf32>
    %85 = vector.shape_cast %84 : vector<128xf32> to vector<128x1xf32>
    %cst_38 = arith.constant 1.000000e-30 : f32
    %86 = vector.broadcast %cst_38 : f32 to vector<128x1xf32>
    %87 = arith.maximumf %85, %86 : vector<128x1xf32>
    %88 = tpu.reciprocal %87 {approx = true} : vector<128x1xf32> -> vector<128x1xf32>
    %89 = vector.broadcast %88 : vector<128x1xf32> to vector<128x256xf32>
    %90 = arith.mulf %83, %89 : vector<128x256xf32>
    %91 = arith.mulf %90, %3 : vector<128x256xf32>
    %cst_39 = arith.constant 0.000000e+00 : f32
    %92 = vector.broadcast %cst_39 : f32 to vector<128x128xf32>
    %c0_i32 = arith.constant 0 : i32
    %93 = vector.broadcast %c0_i32 : i32 to vector<128x256xi32>
    %94 = arith.cmpi eq, %5, %93 : vector<128x256xi32>
    %cst_40 = arith.constant 0.000000e+00 : f32
    %95 = vector.broadcast %cst_40 : f32 to vector<128x256xf32>
    %96 = arith.select %94, %91, %95 : vector<128x256xi1>, vector<128x256xf32>
    %97 = arith.truncf %96 : vector<128x256xf32> to vector<128x256xbf16>
    %c0_41 = arith.constant 0 : index
    %c0_42 = arith.constant 0 : index
    %98 = vector.load %arg6[%c0_41, %c0_42] : memref<768x128xbf16, #tpu.memory_space<vmem>>, vector<256x128xbf16>
    %cst_43 = arith.constant dense<0.000000e+00> : vector<128x128xf32>
    %99 = tpu.matmul %97, %98, %cst_43 {dimension_numbers = #tpu.dot_dimension_numbers<[1], [0], [0], [1], [0, 0, 1, 1], [], []>} : vector<128x256xbf16>, vector<256x128xbf16>, vector<128x128xf32> -> vector<128x128xf32>
    %100 = arith.addf %92, %99 : vector<128x128xf32>
    %c1_i32 = arith.constant 1 : i32
    %101 = vector.broadcast %c1_i32 : i32 to vector<128x256xi32>
    %102 = arith.cmpi eq, %5, %101 : vector<128x256xi32>
    %cst_44 = arith.constant 0.000000e+00 : f32
    %103 = vector.broadcast %cst_44 : f32 to vector<128x256xf32>
    %104 = arith.select %102, %91, %103 : vector<128x256xi1>, vector<128x256xf32>
    %105 = arith.truncf %104 : vector<128x256xf32> to vector<128x256xbf16>
    %c256 = arith.constant 256 : index
    %c0_45 = arith.constant 0 : index
    %106 = vector.load %arg6[%c256, %c0_45] : memref<768x128xbf16, #tpu.memory_space<vmem>>, vector<256x128xbf16>
    %cst_46 = arith.constant dense<0.000000e+00> : vector<128x128xf32>
    %107 = tpu.matmul %105, %106, %cst_46 {dimension_numbers = #tpu.dot_dimension_numbers<[1], [0], [0], [1], [0, 0, 1, 1], [], []>} : vector<128x256xbf16>, vector<256x128xbf16>, vector<128x128xf32> -> vector<128x128xf32>
    %108 = arith.addf %100, %107 : vector<128x128xf32>
    %c2_i32 = arith.constant 2 : i32
    %109 = vector.broadcast %c2_i32 : i32 to vector<128x256xi32>
    %110 = arith.cmpi eq, %5, %109 : vector<128x256xi32>
    %cst_47 = arith.constant 0.000000e+00 : f32
    %111 = vector.broadcast %cst_47 : f32 to vector<128x256xf32>
    %112 = arith.select %110, %91, %111 : vector<128x256xi1>, vector<128x256xf32>
    %113 = arith.truncf %112 : vector<128x256xf32> to vector<128x256xbf16>
    %c512 = arith.constant 512 : index
    %c0_48 = arith.constant 0 : index
    %114 = vector.load %arg6[%c512, %c0_48] : memref<768x128xbf16, #tpu.memory_space<vmem>>, vector<256x128xbf16>
    %cst_49 = arith.constant dense<0.000000e+00> : vector<128x128xf32>
    %115 = tpu.matmul %113, %114, %cst_49 {dimension_numbers = #tpu.dot_dimension_numbers<[1], [0], [0], [1], [0, 0, 1, 1], [], []>} : vector<128x256xbf16>, vector<256x128xbf16>, vector<128x128xf32> -> vector<128x128xf32>
    %116 = arith.addf %108, %115 : vector<128x128xf32>
    %117 = arith.addf %116, %17 : vector<128x128xf32>
    %118 = vector.broadcast %66 : vector<128x1xf32> to vector<128x128xf32>
    %119 = arith.mulf %59, %118 : vector<128x128xf32>
    %120 = arith.addf %117, %119 : vector<128x128xf32>
    %cst_50 = arith.constant dense<0.000000e+00> : vector<128xf32>
    %121 = vector.multi_reduction <add>, %3, %cst_50 [1] : vector<128x256xf32> to vector<128xf32>
    %122 = vector.shape_cast %121 : vector<128xf32> to vector<128x1xf32>
    %cst_51 = arith.constant 0.000000e+00 : f32
    %123 = vector.broadcast %cst_51 : f32 to vector<128x1xf32>
    %124 = arith.cmpf ogt, %122, %123 : vector<128x1xf32>
    %125 = vector.shape_cast %124 : vector<128x1xi1> to vector<128x1xi1>
    %126 = vector.broadcast %125 : vector<128x1xi1> to vector<128x128xi1>
    %127 = arith.select %126, %120, %0 : vector<128x128xi1>, vector<128x128xf32>
    %c0_52 = arith.constant 0 : index
    %c0_53 = arith.constant 0 : index
    %128 = vector.load %arg11[%c0_52, %c0_53] : memref<128x128xf32, #tpu.memory_space<vmem>>, vector<128x128xf32>
    tpu.vector_store %arg11[%c0_52, %c0_53], %127 {strides = array<i32>} : memref<128x128xf32, #tpu.memory_space<vmem>>, vector<128x128xf32>,
    return
  }
  func.func @transform_0(%arg0: i32) -> (i32, i32) {
    %c0_i32 = arith.constant 0 : i32
    %c0_i32_0 = arith.constant 0 : i32
    return %arg0, %c0_i32 : i32, i32
  }
  func.func @transform_1(%arg0: i32) -> (i32, i32) {
    %c0_i32 = arith.constant 0 : i32
    %c0_i32_0 = arith.constant 0 : i32
    %c0_i32_1 = arith.constant 0 : i32
    return %c0_i32, %c0_i32_0 : i32, i32
  }
  func.func @transform_2(%arg0: i32) -> (i32, i32) {
    %c0_i32 = arith.constant 0 : i32
    %c0_i32_0 = arith.constant 0 : i32
    return %arg0, %c0_i32 : i32, i32
  }
  func.func @transform_3(%arg0: i32) -> (i32, i32) {
    %c0_i32 = arith.constant 0 : i32
    %c0_i32_0 = arith.constant 0 : i32
    return %arg0, %c0_i32 : i32, i32
  }
  func.func @transform_4(%arg0: i32) -> (i32, i32) {
    %c0_i32 = arith.constant 0 : i32
    %c0_i32_0 = arith.constant 0 : i32
    return %arg0, %c0_i32 : i32, i32
  }
  func.func @transform_5(%arg0: i32) -> (i32, i32) {
    %c0_i32 = arith.constant 0 : i32
    %c0_i32_0 = arith.constant 0 : i32
    %c0_i32_1 = arith.constant 0 : i32
    return %c0_i32, %c0_i32_0 : i32, i32
  }
  func.func @transform_6(%arg0: i32) -> (i32, i32) {
    %c0_i32 = arith.constant 0 : i32
    %c0_i32_0 = arith.constant 0 : i32
    %c0_i32_1 = arith.constant 0 : i32
    return %c0_i32, %c0_i32_0 : i32, i32
  }
  func.func @transform_7(%arg0: i32) -> (i32, i32) {
    %c0_i32 = arith.constant 0 : i32
    %c0_i32_0 = arith.constant 0 : i32
    %c0_i32_1 = arith.constant 0 : i32
    return %c0_i32, %c0_i32_0 : i32, i32
  }
  func.func @transform_8(%arg0: i32) -> (i32, i32) {
    %c0_i32 = arith.constant 0 : i32
    %c0_i32_0 = arith.constant 0 : i32
    %c0_i32_1 = arith.constant 0 : i32
    return %c0_i32, %c0_i32_0 : i32, i32
  }
  func.func @transform_9(%arg0: i32) -> (i32, i32) {
    %c0_i32 = arith.constant 0 : i32
    %c0_i32_0 = arith.constant 0 : i32
    %c0_i32_1 = arith.constant 0 : i32
    return %c0_i32, %c0_i32_0 : i32, i32
  }
  func.func @transform_10(%arg0: i32) -> (i32, i32) {
    %c0_i32 = arith.constant 0 : i32
    %c0_i32_0 = arith.constant 0 : i32
    return %arg0, %c0_i32 : i32, i32
  }
}

</mosaic_0001>

<llo_original>
// kernel: rgat_pallas.1
$region0: #{rgat_pallas.1}
  #allocation0 [shape = 'u32[]', space=smem, size = 0x4, offset = 0x4, fixed_abs, tag = 'smem constant byte address 0x4 - core index']
  #allocation1 [shape = 'u32[72,128]{1,0:T(1,128)}', space=vmem, size = 0x9000, scoped, tag = 'internal scratch']
  %s0 = inlined_call_operand.vmem [shape: f32[256,128], index: 0, kind: input, shape index: {}, may-alias: {0,10}]
  %s1 = inlined_call_operand.vmem [shape: f32[8,256], index: 1, kind: input, shape index: {}]
  %s2 = inlined_call_operand.vmem [shape: f32[256,1], index: 2, kind: input, shape index: {}]
  %s3 = inlined_call_operand.vmem [shape: bf16[256,256], index: 3, kind: input, shape index: {}]
  %s4 = inlined_call_operand.vmem [shape: s8[256,256], index: 4, kind: input, shape index: {}]
  %s5 = inlined_call_operand.vmem [shape: bf16[768,128], index: 5, kind: input, shape index: {}]
  %s6 = inlined_call_operand.vmem [shape: bf16[256,256], index: 6, kind: input, shape index: {}]
  %s7 = inlined_call_operand.vmem [shape: bf16[128,256], index: 7, kind: input, shape index: {}]
  %s8 = inlined_call_operand.vmem [shape: f32[1,128], index: 8, kind: input, shape index: {}]
  %s9 = inlined_call_operand.vmem [shape: f32[1,128], index: 9, kind: input, shape index: {}]
  %s10 = inlined_call_operand.vmem [shape: f32[256,128], index: 10, kind: output, shape index: {}, may-alias: {0,10}]
  %s11 = sld [smem:[#allocation0]]
  $region73: #{rgat_pallas.1} parent=0
    _
  %s13 = ssub.s32 1, %s11
  %s14 = scalar_select 0, %s13, %s11
  loop: start=0, step=1, limit=4
  $region2: #{rgat_pallas.1} parent=0 // loop_pre_header
    _
  $region3: #{rgat_pallas.1} parent=0 // loop_header
    %s16 = sphi 0, %s20
    %p17 = scmp.ge.s32.totalorder %s16, 4
    %s26 = sphi 0, %s28
    %s29 = sphi 0, %s26
    %s30 = sphi 0, %s29
    %s46 = sphi 0, %s30
    %s50 = sphi 0, %s50
    %s52 = sphi 0, %s50
    %s53 = sphi 0, %s52
    %s67 = sphi 0, %s53
    %s73 = sphi 0, %s75
    %s76 = sphi 0, %s73
    %s77 = sphi 0, %s76
    %s93 = sphi 0, %s77
    %s99 = sphi 0, %s101
    %s102 = sphi 0, %s99
    %s103 = sphi 0, %s102
    %s119 = sphi 0, %s103
    %s125 = sphi 0, %s127
    %s128 = sphi 0, %s125
    %s129 = sphi 0, %s128
    %s145 = sphi 0, %s129
    %s149 = sphi 0, %s149
    %s151 = sphi 0, %s149
    %s152 = sphi 0, %s151
    %s166 = sphi 0, %s152
    %s170 = sphi 0, %s170
    %s172 = sphi 0, %s170
    %s173 = sphi 0, %s172
    %s187 = sphi 0, %s173
    %s191 = sphi 0, %s191
    %s193 = sphi 0, %s191
    %s194 = sphi 0, %s193
    %s208 = sphi 0, %s194
    %s212 = sphi 0, %s212
    %s214 = sphi 0, %s212
    %s215 = sphi 0, %s214
    %s229 = sphi 0, %s215
    %s233 = sphi 0, %s233
    %s235 = sphi 0, %s233
    %s236 = sphi 0, %s235
    %s250 = sphi 0, %s236
    %s256 = sphi 0, %s258
    %s259 = sphi 0, %s256
    %s260 = sphi 0, %s259
    %s276 = sphi 0, %s260
  $region4: #{rgat_pallas.1} parent=0 // loop_header_branch
    %19 = sbr.rel (%p17) target = $region8
  $region5: #{rgat_pallas.1} parent=0 // loop_body
    %s21 = ssub.s32 %s16, 1
    %s22 = ssub.s32 %s16, 2
    %s23 = sadd.s32 %s16, 1
    %s24 = ssub.s32 %s16, %s23
    %p25 = scmp.eq.s32.totalorder %s24, 0
    %s27 = sadd.s32 %s26, 1
    %s28 = scalar_select %p25, %s26, %s27
    %p31 = pneg %p25
    %p32 = scmp.eq.s32.totalorder %s16, 1
    %p33 = por %p31, %p32
    %p34 = scmp.ne.s32.totalorder %s26, %s29
    %p35 = scmp.eq.s32.totalorder %s16, 0
    %p36 = por %p34, %p35
    %p37 = scmp.ne.s32.totalorder %s26, %s29
    %p38 = scmp.eq.s32.totalorder %s21, 1
    %p39 = por %p37, %p38
    %p40 = scmp.ne.s32.totalorder %s29, %s30
    %p41 = scmp.eq.s32.totalorder %s21, 0
    %p42 = por %p40, %p41
    %p43 = scmp.ne.s32.totalorder %s29, %s30
    %p44 = scmp.eq.s32.totalorder %s22, 1
    %p45 = por %p43, %p44
    %p47 = scmp.ne.s32.totalorder %s30, %s46
    %p48 = scmp.eq.s32.totalorder %s22, 0
    %p49 = por %p47, %p48
    %s51 = sadd.s32 %s50, 1
    %p54 = scmp.eq.s32.totalorder %s16, 1
    %p55 = scmp.ne.s32.totalorder %s50, %s52
    %p56 = scmp.eq.s32.totalorder %s16, 0
    %p57 = por %p55, %p56
    %p58 = scmp.ne.s32.totalorder %s50, %s52
    %p59 = scmp.eq.s32.totalorder %s21, 1
    %p60 = por %p58, %p59
    %p61 = scmp.ne.s32.totalorder %s52, %s53
    %p62 = scmp.eq.s32.totalorder %s21, 0
    %p63 = por %p61, %p62
    %p64 = scmp.ne.s32.totalorder %s52, %s53
    %p65 = scmp.eq.s32.totalorder %s22, 1
    %p66 = por %p64, %p65
    %p68 = scmp.ne.s32.totalorder %s53, %s67
    %p69 = scmp.eq.s32.totalorder %s22, 0
    %p70 = por %p68, %p69
    %s71 = ssub.s32 %s16, %s23
    %p72 = scmp.eq.s32.totalorder %s71, 0
    %s74 = sadd.s32 %s73, 1
    %s75 = scalar_select %p72, %s73, %s74
    %p78 = pneg %p72
    %p79 = scmp.eq.s32.totalorder %s16, 1
    %p80 = por %p78, %p79
    %p81 = scmp.ne.s32.totalorder %s73, %s76
    %p82 = scmp.eq.s32.totalorder %s16, 0
    %p83 = por %p81, %p82
    %p84 = scmp.ne.s32.totalorder %s73, %s76
    %p85 = scmp.eq.s32.totalorder %s21, 1
    %p86 = por %p84, %p85
    %p87 = scmp.ne.s32.totalorder %s76, %s77
    %p88 = scmp.eq.s32.totalorder %s21, 0
    %p89 = por %p87, %p88
    %p90 = scmp.ne.s32.totalorder %s76, %s77
    %p91 = scmp.eq.s32.totalorder %s22, 1
    %p92 = por %p90, %p91
    %p94 = scmp.ne.s32.totalorder %s77, %s93
    %p95 = scmp.eq.s32.totalorder %s22, 0
    %p96 = por %p94, %p95
    %s97 = ssub.s32 %s16, %s23
    %p98 = scmp.eq.s32.totalorder %s97, 0
    %s100 = sadd.s32 %s99, 1
    %s101 = scalar_select %p98, %s99, %s100
    %p104 = pneg %p98
    %p105 = scmp.eq.s32.totalorder %s16, 1
    %p106 = por %p104, %p105
    %p107 = scmp.ne.s32.totalorder %s99, %s102
    %p108 = scmp.eq.s32.totalorder %s16, 0
    %p109 = por %p107, %p108
    %p110 = scmp.ne.s32.totalorder %s99, %s102
    %p111 = scmp.eq.s32.totalorder %s21, 1
    %p112 = por %p110, %p111
    %p113 = scmp.ne.s32.totalorder %s102, %s103
    %p114 = scmp.eq.s32.totalorder %s21, 0
    %p115 = por %p113, %p114
    %p116 = scmp.ne.s32.totalorder %s102, %s103
    %p117 = scmp.eq.s32.totalorder %s22, 1
    %p118 = por %p116, %p117
    %p120 = scmp.ne.s32.totalorder %s103, %s119
    %p121 = scmp.eq.s32.totalorder %s22, 0
    %p122 = por %p120, %p121
    %s123 = ssub.s32 %s16, %s23
    %p124 = scmp.eq.s32.totalorder %s123, 0
    %s126 = sadd.s32 %s125, 1
    %s127 = scalar_select %p124, %s125, %s126
    %p130 = pneg %p124
    %p131 = scmp.eq.s32.totalorder %s16, 1
    %p132 = por %p130, %p131
    %p133 = scmp.ne.s32.totalorder %s125, %s128
    %p134 = scmp.eq.s32.totalorder %s16, 0
    %p135 = por %p133, %p134
    %p136 = scmp.ne.s32.totalorder %s125, %s128
    %p137 = scmp.eq.s32.totalorder %s21, 1
    %p138 = por %p136, %p137
    %p139 = scmp.ne.s32.totalorder %s128, %s129
    %p140 = scmp.eq.s32.totalorder %s21, 0
    %p141 = por %p139, %p140
    %p142 = scmp.ne.s32.totalorder %s128, %s129
    %p143 = scmp.eq.s32.totalorder %s22, 1
    %p144 = por %p142, %p143
    %p146 = scmp.ne.s32.totalorder %s129, %s145
    %p147 = scmp.eq.s32.totalorder %s22, 0
    %p148 = por %p146, %p147
    %s150 = sadd.s32 %s149, 1
    %p153 = scmp.eq.s32.totalorder %s16, 1
    %p154 = scmp.ne.s32.totalorder %s149, %s151
    %p155 = scmp.eq.s32.totalorder %s16, 0
    %p156 = por %p154, %p155
    %p157 = scmp.ne.s32.totalorder %s149, %s151
    %p158 = scmp.eq.s32.totalorder %s21, 1
    %p159 = por %p157, %p158
    %p160 = scmp.ne.s32.totalorder %s151, %s152
    %p161 = scmp.eq.s32.totalorder %s21, 0
    %p162 = por %p160, %p161
    %p163 = scmp.ne.s32.totalorder %s151, %s152
    %p164 = scmp.eq.s32.totalorder %s22, 1
    %p165 = por %p163, %p164
    %p167 = scmp.ne.s32.totalorder %s152, %s166
    %p168 = scmp.eq.s32.totalorder %s22, 0
    %p169 = por %p167, %p168
    %s171 = sadd.s32 %s170, 1
    %p174 = scmp.eq.s32.totalorder %s16, 1
    %p175 = scmp.ne.s32.totalorder %s170, %s172
    %p176 = scmp.eq.s32.totalorder %s16, 0
    %p177 = por %p175, %p176
    %p178 = scmp.ne.s32.totalorder %s170, %s172
    %p179 = scmp.eq.s32.totalorder %s21, 1
    %p180 = por %p178, %p179
    %p181 = scmp.ne.s32.totalorder %s172, %s173
    %p182 = scmp.eq.s32.totalorder %s21, 0
    %p183 = por %p181, %p182
    %p184 = scmp.ne.s32.totalorder %s172, %s173
    %p185 = scmp.eq.s32.totalorder %s22, 1
    %p186 = por %p184, %p185
    %p188 = scmp.ne.s32.totalorder %s173, %s187
    %p189 = scmp.eq.s32.totalorder %s22, 0
    %p190 = por %p188, %p189
    %s192 = sadd.s32 %s191, 1
    %p195 = scmp.eq.s32.totalorder %s16, 1
    %p196 = scmp.ne.s32.totalorder %s191, %s193
    %p197 = scmp.eq.s32.totalorder %s16, 0
    %p198 = por %p196, %p197
    %p199 = scmp.ne.s32.totalorder %s191, %s193
    %p200 = scmp.eq.s32.totalorder %s21, 1
    %p201 = por %p199, %p200
    %p202 = scmp.ne.s32.totalorder %s193, %s194
    %p203 = scmp.eq.s32.totalorder %s21, 0
    %p204 = por %p202, %p203
    %p205 = scmp.ne.s32.totalorder %s193, %s194
    %p206 = scmp.eq.s32.totalorder %s22, 1
    %p207 = por %p205, %p206
    %p209 = scmp.ne.s32.totalorder %s194, %s208
    %p210 = scmp.eq.s32.totalorder %s22, 0
    %p211 = por %p209, %p210
    %s213 = sadd.s32 %s212, 1
    %p216 = scmp.eq.s32.totalorder %s16, 1
    %p217 = scmp.ne.s32.totalorder %s212, %s214
    %p218 = scmp.eq.s32.totalorder %s16, 0
    %p219 = por %p217, %p218
    %p220 = scmp.ne.s32.totalorder %s212, %s214
    %p221 = scmp.eq.s32.totalorder %s21, 1
    %p222 = por %p220, %p221
    %p223 = scmp.ne.s32.totalorder %s214, %s215
    %p224 = scmp.eq.s32.totalorder %s21, 0
    %p225 = por %p223, %p224
    %p226 = scmp.ne.s32.totalorder %s214, %s215
    %p227 = scmp.eq.s32.totalorder %s22, 1
    %p228 = por %p226, %p227
    %p230 = scmp.ne.s32.totalorder %s215, %s229
    %p231 = scmp.eq.s32.totalorder %s22, 0
    %p232 = por %p230, %p231
    %s234 = sadd.s32 %s233, 1
    %p237 = scmp.eq.s32.totalorder %s16, 1
    %p238 = scmp.ne.s32.totalorder %s233, %s235
    %p239 = scmp.eq.s32.totalorder %s16, 0
    %p240 = por %p238, %p239
    %p241 = scmp.ne.s32.totalorder %s233, %s235
    %p242 = scmp.eq.s32.totalorder %s21, 1
    %p243 = por %p241, %p242
    %p244 = scmp.ne.s32.totalorder %s235, %s236
    %p245 = scmp.eq.s32.totalorder %s21, 0
    %p246 = por %p244, %p245
    %p247 = scmp.ne.s32.totalorder %s235, %s236
    %p248 = scmp.eq.s32.totalorder %s22, 1
    %p249 = por %p247, %p248
    %p251 = scmp.ne.s32.totalorder %s236, %s250
    %p252 = scmp.eq.s32.totalorder %s22, 0
    %p253 = por %p251, %p252
    %s254 = ssub.s32 %s16, %s23
    %p255 = scmp.eq.s32.totalorder %s254, 0
    %s257 = sadd.s32 %s256, 1
    %s258 = scalar_select %p255, %s256, %s257
    %p261 = pneg %p255
    %p262 = scmp.eq.s32.totalorder %s16, 1
    %p263 = por %p261, %p262
    %p264 = scmp.ne.s32.totalorder %s256, %s259
    %p265 = scmp.eq.s32.totalorder %s16, 0
    %p266 = por %p264, %p265
    %p267 = scmp.ne.s32.totalorder %s256, %s259
    %p268 = scmp.eq.s32.totalorder %s21, 1
    %p269 = por %p267, %p268
    %p270 = scmp.ne.s32.totalorder %s259, %s260
    %p271 = scmp.eq.s32.totalorder %s21, 0
    %p272 = por %p270, %p271
    %p273 = scmp.ne.s32.totalorder %s259, %s260
    %p274 = scmp.eq.s32.totalorder %s22, 1
    %p275 = por %p273, %p274
    %p277 = scmp.ne.s32.totalorder %s260, %s276
    %p278 = scmp.eq.s32.totalorder %s22, 0
    %p279 = por %p277, %p278
    %p280 = scmp.le.s32.totalorder 1, %s16
    %p281 = scmp.lt.s32.totalorder %s16, 3
    %p282 = pnand %p280, %p281
    %p283 = pneg %p282
    // Predicated region
    $region9: #{rgat_pallas.1} parent=5 // pred_check
      _
    $region10: #{rgat_pallas.1} parent=5 // pred_check_branch
      %285 = sbr.rel (%p282) target = $region12
    $region11: #{rgat_pallas.1} parent=5 // pred_region
      %s286 = ssub.s32 %s16, 1
      // Predicated region
      $region13: #{rgat_pallas.1} parent=11 // pred_check
        %p287 = pneg %p63
      $region14: #{rgat_pallas.1} parent=11 // pred_check_branch
        %289 = sbr.rel (%p287) target = $region16
      $region15: #{rgat_pallas.1} parent=11 // pred_region
        _
      $region16: #{rgat_pallas.1} parent=11 // pred_fallthru
        _
      // Predicated region
      $region17: #{rgat_pallas.1} parent=11 // pred_check
        %p290 = pneg %p162
      $region18: #{rgat_pallas.1} parent=11 // pred_check_branch
        %292 = sbr.rel (%p290) target = $region20
      $region19: #{rgat_pallas.1} parent=11 // pred_region
        _
      $region20: #{rgat_pallas.1} parent=11 // pred_fallthru
        _
      // Predicated region
      $region21: #{rgat_pallas.1} parent=11 // pred_check
        %p293 = pneg %p183
      $region22: #{rgat_pallas.1} parent=11 // pred_check_branch
        %295 = sbr.rel (%p293) target = $region24
      $region23: #{rgat_pallas.1} parent=11 // pred_region
        _
      $region24: #{rgat_pallas.1} parent=11 // pred_fallthru
        _
      // Predicated region
      $region25: #{rgat_pallas.1} parent=11 // pred_check
        %p296 = pneg %p204
      $region26: #{rgat_pallas.1} parent=11 // pred_check_branch
        %298 = sbr.rel (%p296) target = $region28
      $region27: #{rgat_pallas.1} parent=11 // pred_region
        _
      $region28: #{rgat_pallas.1} parent=11 // pred_fallthru
        _
      // Predicated region
      $region29: #{rgat_pallas.1} parent=11 // pred_check
        %p299 = pneg %p225
      $region30: #{rgat_pallas.1} parent=11 // pred_check_branch
        %301 = sbr.rel (%p299) target = $region32
      $region31: #{rgat_pallas.1} parent=11 // pred_region
        _
      $region32: #{rgat_pallas.1} parent=11 // pred_fallthru
        _
      // Predicated region
      $region33: #{rgat_pallas.1} parent=11 // pred_check
        %p302 = pneg %p246
      $region34: #{rgat_pallas.1} parent=11 // pred_check_branch
        %304 = sbr.rel (%p302) target = $region36
      $region35: #{rgat_pallas.1} parent=11 // pred_region
        _
      $region36: #{rgat_pallas.1} parent=11 // pred_fallthru
        _
    $region12: #{rgat_pallas.1} parent=5 // pred_fallthru
      _
    %p305 = scmp.lt.s32.totalorder %s16, 2
    // Predicated region
    $region37: #{rgat_pallas.1} parent=5 // pred_check
      %p306 = pneg %p305
    $region38: #{rgat_pallas.1} parent=5 // pred_check_branch
      %308 = sbr.rel (%p306) target = $region40
    $region39: #{rgat_pallas.1} parent=5 // pred_region
      // Predicated region
      $region41: #{rgat_pallas.1} parent=39 // pred_check
        %p309 = pneg %p36
      $region42: #{rgat_pallas.1} parent=39 // pred_check_branch
        %311 = sbr.rel (%p309) target = $region44
      $region43: #{rgat_pallas.1} parent=39 // pred_region
        %s312 = smul.u32 16, %s16
        %p313 = scmp.lt.s32.totalorder %s312, 31
        %s314 = scalar_select %p313, %s312, 31
        %s315 = smul.addr %s314, 8
        %s316 = scalar_lea.vmem %s0, %s315
        %s317 = smul.u32 16, %s16
      $region44: #{rgat_pallas.1} parent=39 // pred_fallthru
        _
      // Predicated region
      $region45: #{rgat_pallas.1} parent=39 // pred_check
        %p318 = pneg %p83
      $region46: #{rgat_pallas.1} parent=39 // pred_check_branch
        %320 = sbr.rel (%p318) target = $region48
      $region47: #{rgat_pallas.1} parent=39 // pred_region
        %s321 = smul.u32 16, %s16
        %p322 = scmp.lt.s32.totalorder %s321, 31
        %s323 = scalar_select %p322, %s321, 31
        %s324 = smul.addr %s323, 8
        %s325 = scalar_lea.vmem %s2, %s324
        %s326 = smul.u32 16, %s16
      $region48: #{rgat_pallas.1} parent=39 // pred_fallthru
        _
      // Predicated region
      $region49: #{rgat_pallas.1} parent=39 // pred_check
        %p327 = pneg %p109
      $region50: #{rgat_pallas.1} parent=39 // pred_check_branch
        %329 = sbr.rel (%p327) target = $region52
      $region51: #{rgat_pallas.1} parent=39 // pred_region
        %s330 = smul.u32 16, %s16
        %p331 = scmp.lt.s32.totalorder %s330, 31
        %s332 = scalar_select %p331, %s330, 31
        %s333 = smul.addr %s332, 2
        %s334 = smul.addr %s333, 4
        %s335 = scalar_lea.vmem %s3, %s334
        %s336 = smul.u32 16, %s16
      $region52: #{rgat_pallas.1} parent=39 // pred_fallthru
        _
      // Predicated region
      $region53: #{rgat_pallas.1} parent=39 // pred_check
        %p337 = pneg %p135
      $region54: #{rgat_pallas.1} parent=39 // pred_check_branch
        %339 = sbr.rel (%p337) target = $region56
      $region55: #{rgat_pallas.1} parent=39 // pred_region
        %s340 = smul.u32 4, %s16
        %p341 = scmp.lt.s32.totalorder %s340, 7
        %s342 = scalar_select %p341, %s340, 7
        %s343 = smul.addr %s342, 2
        %s344 = smul.addr %s343, 8
        %s345 = scalar_lea.vmem %s4, %s344
        %s346 = smul.u32 4, %s16
      $region56: #{rgat_pallas.1} parent=39 // pred_fallthru
        _
    $region40: #{rgat_pallas.1} parent=5 // pred_fallthru
      _
    %p347 = scmp.le.s32.totalorder 1, %s16
    %p348 = scmp.lt.s32.totalorder %s16, 3
    %p349 = pnand %p347, %p348
    %p350 = pneg %p349
    // Predicated region
    $region57: #{rgat_pallas.1} parent=5 // pred_check
      _
    $region58: #{rgat_pallas.1} parent=5 // pred_check_branch
      %352 = sbr.rel (%p349) target = $region60
    $region59: #{rgat_pallas.1} parent=5 // pred_region
      %s353 = ssub.s32 %s16, 1
      %s354 = smul.u32 16, %s21
      %p355 = scmp.lt.s32.totalorder %s354, 31
      %s356 = scalar_select %p355, %s354, 31
      %s357 = smul.addr %s356, 8
      %s358 = scalar_lea.vmem %s0, %s357
      %p359 = pneg %p42
      %p360 = pneg %p39
      %p361 = pneg %p63
      %p362 = pneg %p60
      %s363 = smul.u32 16, %s21
      %p364 = scmp.lt.s32.totalorder %s363, 31
      %s365 = scalar_select %p364, %s363, 31
      %s366 = smul.addr %s365, 8
      %s367 = scalar_lea.vmem %s2, %s366
      %p368 = pneg %p89
      %p369 = pneg %p86
      %s370 = smul.u32 16, %s21
      %p371 = scmp.lt.s32.totalorder %s370, 31
      %s372 = scalar_select %p371, %s370, 31
      %s373 = smul.addr %s372, 2
      %s374 = smul.addr %s373, 4
      %s375 = scalar_lea.vmem %s3, %s374
      %p376 = pneg %p115
      %p377 = pneg %p112
      %s378 = smul.u32 4, %s21
      %p379 = scmp.lt.s32.totalorder %s378, 7
      %s380 = scalar_select %p379, %s378, 7
      %s381 = smul.addr %s380, 2
      %s382 = smul.addr %s381, 8
      %s383 = scalar_lea.vmem %s4, %s382
      %p384 = pneg %p141
      %p385 = pneg %p138
      %p386 = pneg %p162
      %p387 = pneg %p159
      %p388 = pneg %p183
      %p389 = pneg %p180
      %p390 = pneg %p204
      %p391 = pneg %p201
      %p392 = pneg %p225
      %p393 = pneg %p222
      %p394 = pneg %p246
      %p395 = pneg %p243
      %p396 = pneg %p272
      %p397 = pneg %p269
      %s398 = smul.u32 16, %s21
      %p399 = scmp.lt.s32.totalorder %s398, 31
      %s400 = scalar_select %p399, %s398, 31
      %s401 = smul.addr %s400, 8
      %s402 = scalar_lea.vmem %s10, %s401
      %s403 = smul.u32 16, %s21
      %p404 = scmp.lt.s32.totalorder %s403, 31
      %s405 = scalar_select %p404, %s403, 31
      %s406 = smul.addr %s405, 8
      %s407 = scalar_lea.vmem %s0, %s406
      %s408 = smul.u32 16, %s21
      %s409 = smul.u32 16, %s21
      %p410 = scmp.lt.s32.totalorder %s409, 31
      %s411 = scalar_select %p410, %s409, 31
      %s412 = smul.addr %s411, 8
      %s413 = scalar_lea.vmem %s2, %s412
      %s414 = smul.u32 16, %s21
      %s415 = smul.u32 16, %s21
      %p416 = scmp.lt.s32.totalorder %s415, 31
      %s417 = scalar_select %p416, %s415, 31
      %s418 = smul.addr %s417, 2
      %s419 = smul.addr %s418, 4
      %s420 = scalar_lea.vmem %s3, %s419
      %s421 = smul.u32 16, %s21
      %s422 = smul.u32 4, %s21
      %p423 = scmp.lt.s32.totalorder %s422, 7
      %s424 = scalar_select %p423, %s422, 7
      %s425 = smul.addr %s424, 2
      %s426 = smul.addr %s425, 8
      %s427 = scalar_lea.vmem %s4, %s426
      %s428 = smul.u32 4, %s21
      %s429 = smul.u32 16, %s21
      %p430 = scmp.lt.s32.totalorder %s429, 31
      %s431 = scalar_select %p430, %s429, 31
      %s432 = smul.addr %s431, 8
      %s433 = scalar_lea.vmem %s10, %s432
      %s434 = smul.u32 16, %s21
      %v435 = vld [vmem:[%s407] sm:$0xff]
      %v436 = vld [vmem:[%s407 + $0x8] sm:$0xff]
      %v437 = vld [vmem:[%s407 + $0x10] sm:$0xff]
      %v438 = vld [vmem:[%s407 + $0x18] sm:$0xff]
      %v439 = vld [vmem:[%s407 + $0x20] sm:$0xff]
      %v440 = vld [vmem:[%s407 + $0x28] sm:$0xff]
      %v441 = vld [vmem:[%s407 + $0x30] sm:$0xff]
      %v442 = vld [vmem:[%s407 + $0x38] sm:$0xff]
      %v443 = vld [vmem:[%s407 + $0x40] sm:$0xff]
      %v444 = vld [vmem:[%s407 + $0x48] sm:$0xff]
      %v445 = vld [vmem:[%s407 + $0x50] sm:$0xff]
      %v446 = vld [vmem:[%s407 + $0x58] sm:$0xff]
      %v447 = vld [vmem:[%s407 + $0x60] sm:$0xff]
      %v448 = vld [vmem:[%s407 + $0x68] sm:$0xff]
      %v449 = vld [vmem:[%s407 + $0x70] sm:$0xff]
      %v450 = vld [vmem:[%s407 + $0x78] sm:$0xff]
      %v451 = vpack.c.bf16 %v436, %v435
      %v452 = vpack.c.bf16 %v438, %v437
      %v453 = vpack.c.bf16 %v440, %v439
      %v454 = vpack.c.bf16 %v442, %v441
      %v455 = vpack.c.bf16 %v444, %v443
      %v456 = vpack.c.bf16 %v446, %v445
      %v457 = vpack.c.bf16 %v448, %v447
      %v458 = vpack.c.bf16 %v450, %v449
      %v459 = vld [vmem:[%s420] sm:$0xff]
      %v460 = vld [vmem:[%s420 + $0x8] sm:$0xff]
      %v461 = vld [vmem:[%s420 + $0x10] sm:$0xff]
      %v462 = vld [vmem:[%s420 + $0x18] sm:$0xff]
      %v463 = vld [vmem:[%s420 + $0x20] sm:$0xff]
      %v464 = vld [vmem:[%s420 + $0x28] sm:$0xff]
      %v465 = vld [vmem:[%s420 + $0x30] sm:$0xff]
      %v466 = vld [vmem:[%s420 + $0x38] sm:$0xff]
      %v467 = vld [vmem:[%s420 + $0x40] sm:$0xff]
      %v468 = vld [vmem:[%s420 + $0x48] sm:$0xff]
      %v469 = vld [vmem:[%s420 + $0x50] sm:$0xff]
      %v470 = vld [vmem:[%s420 + $0x58] sm:$0xff]
      %v471 = vld [vmem:[%s420 + $0x60] sm:$0xff]
      %v472 = vld [vmem:[%s420 + $0x68] sm:$0xff]
      %v473 = vld [vmem:[%s420 + $0x70] sm:$0xff]
      %v474 = vld [vmem:[%s420 + $0x78] sm:$0xff]
      %v475 = vunpack.c.l.bf16 %v459
      %v476 = vunpack.c.h.bf16 %v459
      %v477 = vunpack.c.l.bf16 %v460
      %v478 = vunpack.c.h.bf16 %v460
      %v479 = vunpack.c.l.bf16 %v461
      %v480 = vunpack.c.h.bf16 %v461
      %v481 = vunpack.c.l.bf16 %v462
      %v482 = vunpack.c.h.bf16 %v462
      %v483 = vunpack.c.l.bf16 %v463
      %v484 = vunpack.c.h.bf16 %v463
      %v485 = vunpack.c.l.bf16 %v464
      %v486 = vunpack.c.h.bf16 %v464
      %v487 = vunpack.c.l.bf16 %v465
      %v488 = vunpack.c.h.bf16 %v465
      %v489 = vunpack.c.l.bf16 %v466
      %v490 = vunpack.c.h.bf16 %v466
      %v491 = vunpack.c.l.bf16 %v467
      %v492 = vunpack.c.h.bf16 %v467
      %v493 = vunpack.c.l.bf16 %v468
      %v494 = vunpack.c.h.bf16 %v468
      %v495 = vunpack.c.l.bf16 %v469
      %v496 = vunpack.c.h.bf16 %v469
      %v497 = vunpack.c.l.bf16 %v470
      %v498 = vunpack.c.h.bf16 %v470
      %v499 = vunpack.c.l.bf16 %v471
      %v500 = vunpack.c.h.bf16 %v471
      %v501 = vunpack.c.l.bf16 %v472
      %v502 = vunpack.c.h.bf16 %v472
      %v503 = vunpack.c.l.bf16 %v473
      %v504 = vunpack.c.h.bf16 %v473
      %v505 = vunpack.c.l.bf16 %v474
      %v506 = vunpack.c.h.bf16 %v474
      %v507 = vld [vmem:[%s427] sm:$0xff]
      %v508 = vld [vmem:[%s427 + $0x8] sm:$0xff]
      %v509 = vld [vmem:[%s427 + $0x10] sm:$0xff]
      %v510 = vld [vmem:[%s427 + $0x18] sm:$0xff]
      %v511 = vld [vmem:[%s427 + $0x20] sm:$0xff]
      %v512 = vld [vmem:[%s427 + $0x28] sm:$0xff]
      %v513 = vld [vmem:[%s427 + $0x30] sm:$0xff]
      %v514 = vld [vmem:[%s427 + $0x38] sm:$0xff]
      %v515 = vunpack.c.0.s8 %v507
      %v516 = vunpack.c.0.s8 %v508
      %v517 = vunpack.c.1.s8 %v507
      %v518 = vunpack.c.1.s8 %v508
      %v519 = vunpack.c.2.s8 %v507
      %v520 = vunpack.c.2.s8 %v508
      %v521 = vunpack.c.3.s8 %v507
      %v522 = vunpack.c.3.s8 %v508
      %v523 = vunpack.c.0.s8 %v509
      %v524 = vunpack.c.0.s8 %v510
      %v525 = vunpack.c.1.s8 %v509
      %v526 = vunpack.c.1.s8 %v510
      %v527 = vunpack.c.2.s8 %v509
      %v528 = vunpack.c.2.s8 %v510
      %v529 = vunpack.c.3.s8 %v509
      %v530 = vunpack.c.3.s8 %v510
      %v531 = vunpack.c.0.s8 %v511
      %v532 = vunpack.c.0.s8 %v512
      %v533 = vunpack.c.1.s8 %v511
      %v534 = vunpack.c.1.s8 %v512
      %v535 = vunpack.c.2.s8 %v511
      %v536 = vunpack.c.2.s8 %v512
      %v537 = vunpack.c.3.s8 %v511
      %v538 = vunpack.c.3.s8 %v512
      %v539 = vunpack.c.0.s8 %v513
      %v540 = vunpack.c.0.s8 %v514
      %v541 = vunpack.c.1.s8 %v513
      %v542 = vunpack.c.1.s8 %v514
      %v543 = vunpack.c.2.s8 %v513
      %v544 = vunpack.c.2.s8 %v514
      %v545 = vunpack.c.3.s8 %v513
      %v546 = vunpack.c.3.s8 %v514
      %vm547 = vcmp.gt.f32.partialorder %v475, 0.0
      %vm548 = vcmp.gt.f32.partialorder %v476, 0.0
      %vm549 = vcmp.gt.f32.partialorder %v477, 0.0
      %vm550 = vcmp.gt.f32.partialorder %v478, 0.0
      %vm551 = vcmp.gt.f32.partialorder %v479, 0.0
      %vm552 = vcmp.gt.f32.partialorder %v480, 0.0
      %vm553 = vcmp.gt.f32.partialorder %v481, 0.0
      %vm554 = vcmp.gt.f32.partialorder %v482, 0.0
      %vm555 = vcmp.gt.f32.partialorder %v483, 0.0
      %vm556 = vcmp.gt.f32.partialorder %v484, 0.0
      %vm557 = vcmp.gt.f32.partialorder %v485, 0.0
      %vm558 = vcmp.gt.f32.partialorder %v486, 0.0
      %vm559 = vcmp.gt.f32.partialorder %v487, 0.0
      %vm560 = vcmp.gt.f32.partialorder %v488, 0.0
      %vm561 = vcmp.gt.f32.partialorder %v489, 0.0
      %vm562 = vcmp.gt.f32.partialorder %v490, 0.0
      %vm563 = vcmp.gt.f32.partialorder %v491, 0.0
      %vm564 = vcmp.gt.f32.partialorder %v492, 0.0
      %vm565 = vcmp.gt.f32.partialorder %v493, 0.0
      %vm566 = vcmp.gt.f32.partialorder %v494, 0.0
      %vm567 = vcmp.gt.f32.partialorder %v495, 0.0
      %vm568 = vcmp.gt.f32.partialorder %v496, 0.0
      %vm569 = vcmp.gt.f32.partialorder %v497, 0.0
      %vm570 = vcmp.gt.f32.partialorder %v498, 0.0
      %vm571 = vcmp.gt.f32.partialorder %v499, 0.0
      %vm572 = vcmp.gt.f32.partialorder %v500, 0.0
      %vm573 = vcmp.gt.f32.partialorder %v501, 0.0
      %vm574 = vcmp.gt.f32.partialorder %v502, 0.0
      %vm575 = vcmp.gt.f32.partialorder %v503, 0.0
      %vm576 = vcmp.gt.f32.partialorder %v504, 0.0
      %vm577 = vcmp.gt.f32.partialorder %v505, 0.0
      %vm578 = vcmp.gt.f32.partialorder %v506, 0.0
      %v579 = vld [vmem:[%s413] sm:$0xff]
      %v580 = vld [vmem:[%s413 + $0x8] sm:$0xff]
      %v581 = vld [vmem:[%s413 + $0x10] sm:$0xff]
      %v582 = vld [vmem:[%s413 + $0x18] sm:$0xff]
      %v583 = vld [vmem:[%s413 + $0x20] sm:$0xff]
      %v584 = vld [vmem:[%s413 + $0x28] sm:$0xff]
      %v585 = vld [vmem:[%s413 + $0x30] sm:$0xff]
      %v586 = vld [vmem:[%s413 + $0x38] sm:$0xff]
      %v587 = vld [vmem:[%s413 + $0x40] sm:$0xff]
      %v588 = vld [vmem:[%s413 + $0x48] sm:$0xff]
      %v589 = vld [vmem:[%s413 + $0x50] sm:$0xff]
      %v590 = vld [vmem:[%s413 + $0x58] sm:$0xff]
      %v591 = vld [vmem:[%s413 + $0x60] sm:$0xff]
      %v592 = vld [vmem:[%s413 + $0x68] sm:$0xff]
      %v593 = vld [vmem:[%s413 + $0x70] sm:$0xff]
      %v594 = vld [vmem:[%s413 + $0x78] sm:$0xff]
      %v595 = vld [vmem:[%s1] ss:$8 sm:$0x3]
      %s596 = scalar_lea.vmem %s1, 1
      %v597 = vld [vmem:[%s596] ss:$8 sm:$0x3]
      %s598 = scalar_lea.vmem %s1, 2
      %v599 = vld [vmem:[%s598] ss:$8 sm:$0x3]
      %v600 = vld [vmem:[%s7] sm:$0xff]
      %v601 = vld [vmem:[%s7 + $0x8] sm:$0xff]
      %v602 = vld [vmem:[%s7 + $0x10] sm:$0xff]
      %v603 = vld [vmem:[%s7 + $0x18] sm:$0xff]
      %v604 = vld [vmem:[%s7 + $0x20] sm:$0xff]
      %v605 = vld [vmem:[%s7 + $0x28] sm:$0xff]
      %v606 = vld [vmem:[%s7 + $0x30] sm:$0xff]
      %v607 = vld [vmem:[%s7 + $0x38] sm:$0xff]
      %v608 = vld [vmem:[%s7 + $0x40] sm:$0xff]
      %v609 = vld [vmem:[%s7 + $0x48] sm:$0xff]
      %v610 = vld [vmem:[%s7 + $0x50] sm:$0xff]
      %v611 = vld [vmem:[%s7 + $0x58] sm:$0xff]
      %v612 = vld [vmem:[%s7 + $0x60] sm:$0xff]
      %v613 = vld [vmem:[%s7 + $0x68] sm:$0xff]
      %v614 = vld [vmem:[%s7 + $0x70] sm:$0xff]
      %v615 = vld [vmem:[%s7 + $0x78] sm:$0xff]
      %v632 = vunpack.c.l.b16 %v600
      %v633 = vunpack.c.h.b16 %v600
      %v634 = vunpack.c.l.b16 %v601
      %v635 = vunpack.c.h.b16 %v601
      %v636 = vunpack.c.l.b16 %v602
      %v637 = vunpack.c.h.b16 %v602
      %v638 = vunpack.c.l.b16 %v603
      %v639 = vunpack.c.h.b16 %v603
      %v640 = vunpack.c.l.b16 %v604
      %v641 = vunpack.c.h.b16 %v604
      %v642 = vunpack.c.l.b16 %v605
      %v643 = vunpack.c.h.b16 %v605
      %v644 = vunpack.c.l.b16 %v606
      %v645 = vunpack.c.h.b16 %v606
      %v646 = vunpack.c.l.b16 %v607
      %v647 = vunpack.c.h.b16 %v607
      %v648 = vunpack.c.l.b16 %v608
      %v649 = vunpack.c.h.b16 %v608
      %v650 = vunpack.c.l.b16 %v609
      %v651 = vunpack.c.h.b16 %v609
      %v652 = vunpack.c.l.b16 %v610
      %v653 = vunpack.c.h.b16 %v610
      %v654 = vunpack.c.l.b16 %v611
      %v655 = vunpack.c.h.b16 %v611
      %v656 = vunpack.c.l.b16 %v612
      %v657 = vunpack.c.h.b16 %v612
      %v658 = vunpack.c.l.b16 %v613
      %v659 = vunpack.c.h.b16 %v613
      %v660 = vunpack.c.l.b16 %v614
      %v661 = vunpack.c.h.b16 %v614
      %v662 = vunpack.c.l.b16 %v615
      %v663 = vunpack.c.h.b16 %v615
      %v664 = vpack.c.b16 %v634, %v632
      %v665 = vpack.c.b16 %v635, %v633
      %v666 = vpack.c.b16 %v638, %v636
      %v667 = vpack.c.b16 %v639, %v637
      %v668 = vpack.c.b16 %v642, %v640
      %v669 = vpack.c.b16 %v643, %v641
      %v670 = vpack.c.b16 %v646, %v644
      %v671 = vpack.c.b16 %v647, %v645
      %v672 = vpack.c.b16 %v650, %v648
      %v673 = vpack.c.b16 %v651, %v649
      %v674 = vpack.c.b16 %v654, %v652
      %v675 = vpack.c.b16 %v655, %v653
      %v676 = vpack.c.b16 %v658, %v656
      %v677 = vpack.c.b16 %v659, %v657
      %v678 = vpack.c.b16 %v662, %v660
      %v679 = vpack.c.b16 %v663, %v661
      %696 = vmatpush.bf16.msra.mxu0 %v678
      %697 = vmatpush.bf16.msra.mxu0 %v676
      %698 = vmatpush.bf16.msra.mxu0 %v674
      %699 = vmatpush.bf16.msra.mxu0 %v672
      %700 = vmatpush.bf16.msra.mxu0 %v670
      %701 = vmatpush.bf16.msra.mxu0 %v668
      %702 = vmatpush.bf16.msra.mxu0 %v666
      %703 = vmatpush.bf16.msra.mxu0 %v664
      %704 = vmatmul.bf16.gmra.mxu0 %v451
      %v705 = vpop.f32.mrf.mxu0
      %v706 = vadd.f32 0.0, %v705
      %v707 = vpop.f32.mrf.mxu0
      %v708 = vadd.f32 0.0, %v707
      %709 = vmatmul.bf16.gmra.mxu0 %v452
      %v710 = vpop.f32.mrf.mxu0
      %v711 = vadd.f32 0.0, %v710
      %v712 = vpop.f32.mrf.mxu0
      %v713 = vadd.f32 0.0, %v712
      %714 = vmatmul.bf16.gmra.mxu0 %v453
      %v715 = vpop.f32.mrf.mxu0
      %v716 = vadd.f32 0.0, %v715
      %v717 = vpop.f32.mrf.mxu0
      %v718 = vadd.f32 0.0, %v717
      %719 = vmatmul.bf16.gmra.mxu0 %v454
      %v720 = vpop.f32.mrf.mxu0
      %v721 = vadd.f32 0.0, %v720
      %v722 = vpop.f32.mrf.mxu0
      %v723 = vadd.f32 0.0, %v722
      %724 = vmatmul.bf16.gmra.mxu0 %v455
      %v725 = vpop.f32.mrf.mxu0
      %v726 = vadd.f32 0.0, %v725
      %v727 = vpop.f32.mrf.mxu0
      %v728 = vadd.f32 0.0, %v727
      %729 = vmatmul.bf16.gmra.mxu0 %v456
      %v730 = vpop.f32.mrf.mxu0
      %v731 = vadd.f32 0.0, %v730
      %v732 = vpop.f32.mrf.mxu0
      %v733 = vadd.f32 0.0, %v732
      %734 = vmatmul.bf16.gmra.mxu0 %v457
      %v735 = vpop.f32.mrf.mxu0
      %v736 = vadd.f32 0.0, %v735
      %v737 = vpop.f32.mrf.mxu0
      %v738 = vadd.f32 0.0, %v737
      %739 = vmatmul.bf16.gmra.mxu0 %v458
      %v740 = vpop.f32.mrf.mxu0
      %v741 = vadd.f32 0.0, %v740
      %v742 = vpop.f32.mrf.mxu0
      %v743 = vadd.f32 0.0, %v742
      %744 = vdwg.mxu0
      %745 = vmatpush.bf16.msra.mxu0 %v679
      %746 = vmatpush.bf16.msra.mxu0 %v677
      %747 = vmatpush.bf16.msra.mxu0 %v675
      %748 = vmatpush.bf16.msra.mxu0 %v673
      %749 = vmatpush.bf16.msra.mxu0 %v671
      %750 = vmatpush.bf16.msra.mxu0 %v669
      %751 = vmatpush.bf16.msra.mxu0 %v667
      %752 = vmatpush.bf16.msra.mxu0 %v665
      %753 = vmatmul.bf16.gmra.mxu0 %v451
      %v754 = vpop.f32.mrf.mxu0
      %v755 = vadd.f32 0.0, %v754
      %v756 = vpop.f32.mrf.mxu0
      %v757 = vadd.f32 0.0, %v756
      %758 = vmatmul.bf16.gmra.mxu0 %v452
      %v759 = vpop.f32.mrf.mxu0
      %v760 = vadd.f32 0.0, %v759
      %v761 = vpop.f32.mrf.mxu0
      %v762 = vadd.f32 0.0, %v761
      %763 = vmatmul.bf16.gmra.mxu0 %v453
      %v764 = vpop.f32.mrf.mxu0
      %v765 = vadd.f32 0.0, %v764
      %v766 = vpop.f32.mrf.mxu0
      %v767 = vadd.f32 0.0, %v766
      %768 = vmatmul.bf16.gmra.mxu0 %v454
      %v769 = vpop.f32.mrf.mxu0
      %v770 = vadd.f32 0.0, %v769
      %v771 = vpop.f32.mrf.mxu0
      %v772 = vadd.f32 0.0, %v771
      %773 = vmatmul.bf16.gmra.mxu0 %v455
      %v774 = vpop.f32.mrf.mxu0
      %v775 = vadd.f32 0.0, %v774
      %v776 = vpop.f32.mrf.mxu0
      %v777 = vadd.f32 0.0, %v776
      %778 = vmatmul.bf16.gmra.mxu0 %v456
      %v779 = vpop.f32.mrf.mxu0
      %v780 = vadd.f32 0.0, %v779
      %v781 = vpop.f32.mrf.mxu0
      %v782 = vadd.f32 0.0, %v781
      %783 = vmatmul.bf16.gmra.mxu0 %v457
      %v784 = vpop.f32.mrf.mxu0
      %v785 = vadd.f32 0.0, %v784
      %v786 = vpop.f32.mrf.mxu0
      %v787 = vadd.f32 0.0, %v786
      %788 = vmatmul.bf16.gmra.mxu0 %v458
      %v789 = vpop.f32.mrf.mxu0
      %v790 = vadd.f32 0.0, %v789
      %v791 = vpop.f32.mrf.mxu0
      %v792 = vadd.f32 0.0, %v791
      %793 = vdwg.mxu0
      %v794 = vld [vmem:[%s9] sm:$0x1]
      %v796 = vperm.slane %v794, 0
      %v798 = vadd.f32 %v706, %v796
      %v799 = vadd.f32 %v708, %v796
      %v800 = vadd.f32 %v711, %v796
      %v801 = vadd.f32 %v713, %v796
      %v802 = vadd.f32 %v716, %v796
      %v803 = vadd.f32 %v718, %v796
      %v804 = vadd.f32 %v721, %v796
      %v805 = vadd.f32 %v723, %v796
      %v806 = vadd.f32 %v726, %v796
      %v807 = vadd.f32 %v728, %v796
      %v808 = vadd.f32 %v731, %v796
      %v809 = vadd.f32 %v733, %v796
      %v810 = vadd.f32 %v736, %v796
      %v811 = vadd.f32 %v738, %v796
      %v812 = vadd.f32 %v741, %v796
      %v813 = vadd.f32 %v743, %v796
      %vm814 = vcmp.eq.f32.partialorder %v579, 1.0
      %vm815 = vcmp.eq.f32.partialorder %v580, 1.0
      %vm816 = vcmp.eq.f32.partialorder %v581, 1.0
      %vm817 = vcmp.eq.f32.partialorder %v582, 1.0
      %vm818 = vcmp.eq.f32.partialorder %v583, 1.0
      %vm819 = vcmp.eq.f32.partialorder %v584, 1.0
      %vm820 = vcmp.eq.f32.partialorder %v585, 1.0
      %vm821 = vcmp.eq.f32.partialorder %v586, 1.0
      %vm822 = vcmp.eq.f32.partialorder %v587, 1.0
      %vm823 = vcmp.eq.f32.partialorder %v588, 1.0
      %vm824 = vcmp.eq.f32.partialorder %v589, 1.0
      %vm825 = vcmp.eq.f32.partialorder %v590, 1.0
      %vm826 = vcmp.eq.f32.partialorder %v591, 1.0
      %vm827 = vcmp.eq.f32.partialorder %v592, 1.0
      %vm828 = vcmp.eq.f32.partialorder %v593, 1.0
      %vm829 = vcmp.eq.f32.partialorder %v594, 1.0
      %v830 = vsel %vm814, 0.0, 1.0
      %v831 = vsel %vm815, 0.0, 1.0
      %v832 = vsel %vm816, 0.0, 1.0
      %v833 = vsel %vm817, 0.0, 1.0
      %v834 = vsel %vm818, 0.0, 1.0
      %v835 = vsel %vm819, 0.0, 1.0
      %v836 = vsel %vm820, 0.0, 1.0
      %v837 = vsel %vm821, 0.0, 1.0
      %v838 = vsel %vm822, 0.0, 1.0
      %v839 = vsel %vm823, 0.0, 1.0
      %v840 = vsel %vm824, 0.0, 1.0
      %v841 = vsel %vm825, 0.0, 1.0
      %v842 = vsel %vm826, 0.0, 1.0
      %v843 = vsel %vm827, 0.0, 1.0
      %v844 = vsel %vm828, 0.0, 1.0
      %v845 = vsel %vm829, 0.0, 1.0
      %v847 = vperm.slane %v599, 0
      %v848 = vperm.slane %v599, 1
      %852 = vset.pattern.permute.xlu0 0
      %853 = vperm.xlu0 %852, %v830
      %v854 = vpop.permute.xlu0 %853
      %857 = vset.pattern.permute.xlu0 0
      %858 = vperm.xlu0 %857, %v831
      %v859 = vpop.permute.xlu0 %858
      %862 = vset.pattern.permute.xlu0 0
      %863 = vperm.xlu0 %862, %v832
      %v864 = vpop.permute.xlu0 %863
      %867 = vset.pattern.permute.xlu0 0
      %868 = vperm.xlu0 %867, %v833
      %v869 = vpop.permute.xlu0 %868
      %872 = vset.pattern.permute.xlu0 0
      %873 = vperm.xlu0 %872, %v834
      %v874 = vpop.permute.xlu0 %873
      %877 = vset.pattern.permute.xlu0 0
      %878 = vperm.xlu0 %877, %v835
      %v879 = vpop.permute.xlu0 %878
      %882 = vset.pattern.permute.xlu0 0
      %883 = vperm.xlu0 %882, %v836
      %v884 = vpop.permute.xlu0 %883
      %887 = vset.pattern.permute.xlu0 0
      %888 = vperm.xlu0 %887, %v837
      %v889 = vpop.permute.xlu0 %888
      %892 = vset.pattern.permute.xlu0 0
      %893 = vperm.xlu0 %892, %v838
      %v894 = vpop.permute.xlu0 %893
      %897 = vset.pattern.permute.xlu0 0
      %898 = vperm.xlu0 %897, %v839
      %v899 = vpop.permute.xlu0 %898
      %902 = vset.pattern.permute.xlu0 0
      %903 = vperm.xlu0 %902, %v840
      %v904 = vpop.permute.xlu0 %903
      %907 = vset.pattern.permute.xlu0 0
      %908 = vperm.xlu0 %907, %v841
      %v909 = vpop.permute.xlu0 %908
      %912 = vset.pattern.permute.xlu0 0
      %913 = vperm.xlu0 %912, %v842
      %v914 = vpop.permute.xlu0 %913
      %917 = vset.pattern.permute.xlu0 0
      %918 = vperm.xlu0 %917, %v843
      %v919 = vpop.permute.xlu0 %918
      %922 = vset.pattern.permute.xlu0 0
      %923 = vperm.xlu0 %922, %v844
      %v924 = vpop.permute.xlu0 %923
      %927 = vset.pattern.permute.xlu0 0
      %928 = vperm.xlu0 %927, %v845
      %v929 = vpop.permute.xlu0 %928
      %vm931 = vcmp.eq.f32.partialorder %v847, %v854
      %vm932 = vcmp.eq.f32.partialorder %v848, %v854
      %vm933 = vcmp.eq.f32.partialorder %v847, %v859
      %vm934 = vcmp.eq.f32.partialorder %v848, %v859
      %vm935 = vcmp.eq.f32.partialorder %v847, %v864
      %vm936 = vcmp.eq.f32.partialorder %v848, %v864
      %vm937 = vcmp.eq.f32.partialorder %v847, %v869
      %vm938 = vcmp.eq.f32.partialorder %v848, %v869
      %vm939 = vcmp.eq.f32.partialorder %v847, %v874
      %vm940 = vcmp.eq.f32.partialorder %v848, %v874
      %vm941 = vcmp.eq.f32.partialorder %v847, %v879
      %vm942 = vcmp.eq.f32.partialorder %v848, %v879
      %vm943 = vcmp.eq.f32.partialorder %v847, %v884
      %vm944 = vcmp.eq.f32.partialorder %v848, %v884
      %vm945 = vcmp.eq.f32.partialorder %v847, %v889
      %vm946 = vcmp.eq.f32.partialorder %v848, %v889
      %vm947 = vcmp.eq.f32.partialorder %v847, %v894
      %vm948 = vcmp.eq.f32.partialorder %v848, %v894
      %vm949 = vcmp.eq.f32.partialorder %v847, %v899
      %vm950 = vcmp.eq.f32.partialorder %v848, %v899
      %vm951 = vcmp.eq.f32.partialorder %v847, %v904
      %vm952 = vcmp.eq.f32.partialorder %v848, %v904
      %vm953 = vcmp.eq.f32.partialorder %v847, %v909
      %vm954 = vcmp.eq.f32.partialorder %v848, %v909
      %vm955 = vcmp.eq.f32.partialorder %v847, %v914
      %vm956 = vcmp.eq.f32.partialorder %v848, %v914
      %vm957 = vcmp.eq.f32.partialorder %v847, %v919
      %vm958 = vcmp.eq.f32.partialorder %v848, %v919
      %vm959 = vcmp.eq.f32.partialorder %v847, %v924
      %vm960 = vcmp.eq.f32.partialorder %v848, %v924
      %vm961 = vcmp.eq.f32.partialorder %v847, %v929
      %vm962 = vcmp.eq.f32.partialorder %v848, %v929
      %964 = vset.pattern.permute.xlu0 1
      %965 = vperm.xlu0 %964, %v755
      %v966 = vpop.permute.xlu0 %965
      %969 = vset.pattern.permute.xlu0 1
      %970 = vperm.xlu0 %969, %v757
      %v971 = vpop.permute.xlu0 %970
      %974 = vset.pattern.permute.xlu0 1
      %975 = vperm.xlu0 %974, %v760
      %v976 = vpop.permute.xlu0 %975
      %979 = vset.pattern.permute.xlu0 1
      %980 = vperm.xlu0 %979, %v762
      %v981 = vpop.permute.xlu0 %980
      %984 = vset.pattern.permute.xlu0 1
      %985 = vperm.xlu0 %984, %v765
      %v986 = vpop.permute.xlu0 %985
      %989 = vset.pattern.permute.xlu0 1
      %990 = vperm.xlu0 %989, %v767
      %v991 = vpop.permute.xlu0 %990
      %994 = vset.pattern.permute.xlu0 1
      %995 = vperm.xlu0 %994, %v770
      %v996 = vpop.permute.xlu0 %995
      %999 = vset.pattern.permute.xlu0 1
      %1000 = vperm.xlu0 %999, %v772
      %v1001 = vpop.permute.xlu0 %1000
      %1004 = vset.pattern.permute.xlu0 1
      %1005 = vperm.xlu0 %1004, %v775
      %v1006 = vpop.permute.xlu0 %1005
      %1009 = vset.pattern.permute.xlu0 1
      %1010 = vperm.xlu0 %1009, %v777
      %v1011 = vpop.permute.xlu0 %1010
      %1014 = vset.pattern.permute.xlu0 1
      %1015 = vperm.xlu0 %1014, %v780
      %v1016 = vpop.permute.xlu0 %1015
      %1019 = vset.pattern.permute.xlu0 1
      %1020 = vperm.xlu0 %1019, %v782
      %v1021 = vpop.permute.xlu0 %1020
      %1024 = vset.pattern.permute.xlu0 1
      %1025 = vperm.xlu0 %1024, %v785
      %v1026 = vpop.permute.xlu0 %1025
      %1029 = vset.pattern.permute.xlu0 1
      %1030 = vperm.xlu0 %1029, %v787
      %v1031 = vpop.permute.xlu0 %1030
      %1034 = vset.pattern.permute.xlu0 1
      %1035 = vperm.xlu0 %1034, %v790
      %v1036 = vpop.permute.xlu0 %1035
      %1039 = vset.pattern.permute.xlu0 1
      %1040 = vperm.xlu0 %1039, %v792
      %v1041 = vpop.permute.xlu0 %1040
      %v1044 = vperm.slane %v597, 0
      %v1045 = vperm.slane %v597, 1
      %v1048 = vadd.f32 %v966, %v1044
      %v1049 = vadd.f32 %v966, %v1045
      %v1050 = vadd.f32 %v971, %v1044
      %v1051 = vadd.f32 %v971, %v1045
      %v1052 = vadd.f32 %v976, %v1044
      %v1053 = vadd.f32 %v976, %v1045
      %v1054 = vadd.f32 %v981, %v1044
      %v1055 = vadd.f32 %v981, %v1045
      %v1056 = vadd.f32 %v986, %v1044
      %v1057 = vadd.f32 %v986, %v1045
      %v1058 = vadd.f32 %v991, %v1044
      %v1059 = vadd.f32 %v991, %v1045
      %v1060 = vadd.f32 %v996, %v1044
      %v1061 = vadd.f32 %v996, %v1045
      %v1062 = vadd.f32 %v1001, %v1044
      %v1063 = vadd.f32 %v1001, %v1045
      %v1064 = vadd.f32 %v1006, %v1044
      %v1065 = vadd.f32 %v1006, %v1045
      %v1066 = vadd.f32 %v1011, %v1044
      %v1067 = vadd.f32 %v1011, %v1045
      %v1068 = vadd.f32 %v1016, %v1044
      %v1069 = vadd.f32 %v1016, %v1045
      %v1070 = vadd.f32 %v1021, %v1044
      %v1071 = vadd.f32 %v1021, %v1045
      %v1072 = vadd.f32 %v1026, %v1044
      %v1073 = vadd.f32 %v1026, %v1045
      %v1074 = vadd.f32 %v1031, %v1044
      %v1075 = vadd.f32 %v1031, %v1045
      %v1076 = vadd.f32 %v1036, %v1044
      %v1077 = vadd.f32 %v1036, %v1045
      %v1078 = vadd.f32 %v1041, %v1044
      %v1079 = vadd.f32 %v1041, %v1045
      %vm1080 = vcmp.ge.f32.partialorder %v1048, 0.0
      %vm1081 = vcmp.ge.f32.partialorder %v1049, 0.0
      %vm1082 = vcmp.ge.f32.partialorder %v1050, 0.0
      %vm1083 = vcmp.ge.f32.partialorder %v1051, 0.0
      %vm1084 = vcmp.ge.f32.partialorder %v1052, 0.0
      %vm1085 = vcmp.ge.f32.partialorder %v1053, 0.0
      %vm1086 = vcmp.ge.f32.partialorder %v1054, 0.0
      %vm1087 = vcmp.ge.f32.partialorder %v1055, 0.0
      %vm1088 = vcmp.ge.f32.partialorder %v1056, 0.0
      %vm1089 = vcmp.ge.f32.partialorder %v1057, 0.0
      %vm1090 = vcmp.ge.f32.partialorder %v1058, 0.0
      %vm1091 = vcmp.ge.f32.partialorder %v1059, 0.0
      %vm1092 = vcmp.ge.f32.partialorder %v1060, 0.0
      %vm1093 = vcmp.ge.f32.partialorder %v1061, 0.0
      %vm1094 = vcmp.ge.f32.partialorder %v1062, 0.0
      %vm1095 = vcmp.ge.f32.partialorder %v1063, 0.0
      %vm1096 = vcmp.ge.f32.partialorder %v1064, 0.0
      %vm1097 = vcmp.ge.f32.partialorder %v1065, 0.0
      %vm1098 = vcmp.ge.f32.partialorder %v1066, 0.0
      %vm1099 = vcmp.ge.f32.partialorder %v1067, 0.0
      %vm1100 = vcmp.ge.f32.partialorder %v1068, 0.0
      %vm1101 = vcmp.ge.f32.partialorder %v1069, 0.0
      %vm1102 = vcmp.ge.f32.partialorder %v1070, 0.0
      %vm1103 = vcmp.ge.f32.partialorder %v1071, 0.0
      %vm1104 = vcmp.ge.f32.partialorder %v1072, 0.0
      %vm1105 = vcmp.ge.f32.partialorder %v1073, 0.0
      %vm1106 = vcmp.ge.f32.partialorder %v1074, 0.0
      %vm1107 = vcmp.ge.f32.partialorder %v1075, 0.0
      %vm1108 = vcmp.ge.f32.partialorder %v1076, 0.0
      %vm1109 = vcmp.ge.f32.partialorder %v1077, 0.0
      %vm1110 = vcmp.ge.f32.partialorder %v1078, 0.0
      %vm1111 = vcmp.ge.f32.partialorder %v1079, 0.0
      %v1112 = vmul.f32 %v1048, 0.22916667
      %v1113 = vmul.f32 %v1049, 0.22916667
      %v1114 = vmul.f32 %v1050, 0.22916667
      %v1115 = vmul.f32 %v1051, 0.22916667
      %v1116 = vmul.f32 %v1052, 0.22916667
      %v1117 = vmul.f32 %v1053, 0.22916667
      %v1118 = vmul.f32 %v1054, 0.22916667
      %v1119 = vmul.f32 %v1055, 0.22916667
      %v1120 = vmul.f32 %v1056, 0.22916667
      %v1121 = vmul.f32 %v1057, 0.22916667
      %v1122 = vmul.f32 %v1058, 0.22916667
      %v1123 = vmul.f32 %v1059, 0.22916667
      %v1124 = vmul.f32 %v1060, 0.22916667
      %v1125 = vmul.f32 %v1061, 0.22916667
      %v1126 = vmul.f32 %v1062, 0.22916667
      %v1127 = vmul.f32 %v1063, 0.22916667
      %v1128 = vmul.f32 %v1064, 0.22916667
      %v1129 = vmul.f32 %v1065, 0.22916667
      %v1130 = vmul.f32 %v1066, 0.22916667
      %v1131 = vmul.f32 %v1067, 0.22916667
      %v1132 = vmul.f32 %v1068, 0.22916667
      %v1133 = vmul.f32 %v1069, 0.22916667
      %v1134 = vmul.f32 %v1070, 0.22916667
      %v1135 = vmul.f32 %v1071, 0.22916667
      %v1136 = vmul.f32 %v1072, 0.22916667
      %v1137 = vmul.f32 %v1073, 0.22916667
      %v1138 = vmul.f32 %v1074, 0.22916667
      %v1139 = vmul.f32 %v1075, 0.22916667
      %v1140 = vmul.f32 %v1076, 0.22916667
      %v1141 = vmul.f32 %v1077, 0.22916667
      %v1142 = vmul.f32 %v1078, 0.22916667
      %v1143 = vmul.f32 %v1079, 0.22916667
      %v1144 = vsel %vm1080, %v1048, %v1112
      %v1145 = vsel %vm1081, %v1049, %v1113
      %v1146 = vsel %vm1082, %v1050, %v1114
      %v1147 = vsel %vm1083, %v1051, %v1115
      %v1148 = vsel %vm1084, %v1052, %v1116
      %v1149 = vsel %vm1085, %v1053, %v1117
      %v1150 = vsel %vm1086, %v1054, %v1118
      %v1151 = vsel %vm1087, %v1055, %v1119
      %v1152 = vsel %vm1088, %v1056, %v1120
      %v1153 = vsel %vm1089, %v1057, %v1121
      %v1154 = vsel %vm1090, %v1058, %v1122
      %v1155 = vsel %vm1091, %v1059, %v1123
      %v1156 = vsel %vm1092, %v1060, %v1124
      %v1157 = vsel %vm1093, %v1061, %v1125
      %v1158 = vsel %vm1094, %v1062, %v1126
      %v1159 = vsel %vm1095, %v1063, %v1127
      %v1160 = vsel %vm1096, %v1064, %v1128
      %v1161 = vsel %vm1097, %v1065, %v1129
      %v1162 = vsel %vm1098, %v1066, %v1130
      %v1163 = vsel %vm1099, %v1067, %v1131
      %v1164 = vsel %vm1100, %v1068, %v1132
      %v1165 = vsel %vm1101, %v1069, %v1133
      %v1166 = vsel %vm1102, %v1070, %v1134
      %v1167 = vsel %vm1103, %v1071, %v1135
      %v1168 = vsel %vm1104, %v1072, %v1136
      %v1169 = vsel %vm1105, %v1073, %v1137
      %v1170 = vsel %vm1106, %v1074, %v1138
      %v1171 = vsel %vm1107, %v1075, %v1139
      %v1172 = vsel %vm1108, %v1076, %v1140
      %v1173 = vsel %vm1109, %v1077, %v1141
      %v1174 = vsel %vm1110, %v1078, %v1142
      %v1175 = vsel %vm1111, %v1079, %v1143
      %v1176 = vsel %vm931, %v1144, -1e+30
      %v1177 = vsel %vm932, %v1145, -1e+30
      %v1178 = vsel %vm933, %v1146, -1e+30
      %v1179 = vsel %vm934, %v1147, -1e+30
      %v1180 = vsel %vm935, %v1148, -1e+30
      %v1181 = vsel %vm936, %v1149, -1e+30
      %v1182 = vsel %vm937, %v1150, -1e+30
      %v1183 = vsel %vm938, %v1151, -1e+30
      %v1184 = vsel %vm939, %v1152, -1e+30
      %v1185 = vsel %vm940, %v1153, -1e+30
      %v1186 = vsel %vm941, %v1154, -1e+30
      %v1187 = vsel %vm942, %v1155, -1e+30
      %v1188 = vsel %vm943, %v1156, -1e+30
      %v1189 = vsel %vm944, %v1157, -1e+30
      %v1190 = vsel %vm945, %v1158, -1e+30
      %v1191 = vsel %vm946, %v1159, -1e+30
      %v1192 = vsel %vm947, %v1160, -1e+30
      %v1193 = vsel %vm948, %v1161, -1e+30
      %v1194 = vsel %vm949, %v1162, -1e+30
      %v1195 = vsel %vm950, %v1163, -1e+30
      %v1196 = vsel %vm951, %v1164, -1e+30
      %v1197 = vsel %vm952, %v1165, -1e+30
      %v1198 = vsel %vm953, %v1166, -1e+30
      %v1199 = vsel %vm954, %v1167, -1e+30
      %v1200 = vsel %vm955, %v1168, -1e+30
      %v1201 = vsel %vm956, %v1169, -1e+30
      %v1202 = vsel %vm957, %v1170, -1e+30
      %v1203 = vsel %vm958, %v1171, -1e+30
      %v1204 = vsel %vm959, %v1172, -1e+30
      %v1205 = vsel %vm960, %v1173, -1e+30
      %v1206 = vsel %vm961, %v1174, -1e+30
      %v1207 = vsel %vm962, %v1175, -1e+30
      %v1208 = vmax.f32 %v1176, %v1177
      %1209 = vmax.xlane.f32.xlu0 %v1208
      %v1210 = vpop.xlane.xlu0 %1209
      %v1211 = vmax.f32 %v1178, %v1179
      %1212 = vmax.xlane.f32.xlu0 %v1211
      %v1213 = vpop.xlane.xlu0 %1212
      %v1214 = vmax.f32 %v1180, %v1181
      %1215 = vmax.xlane.f32.xlu0 %v1214
      %v1216 = vpop.xlane.xlu0 %1215
      %v1217 = vmax.f32 %v1182, %v1183
      %1218 = vmax.xlane.f32.xlu0 %v1217
      %v1219 = vpop.xlane.xlu0 %1218
      %v1220 = vmax.f32 %v1184, %v1185
      %1221 = vmax.xlane.f32.xlu0 %v1220
      %v1222 = vpop.xlane.xlu0 %1221
      %v1223 = vmax.f32 %v1186, %v1187
      %1224 = vmax.xlane.f32.xlu0 %v1223
      %v1225 = vpop.xlane.xlu0 %1224
      %v1226 = vmax.f32 %v1188, %v1189
      %1227 = vmax.xlane.f32.xlu0 %v1226
      %v1228 = vpop.xlane.xlu0 %1227
      %v1229 = vmax.f32 %v1190, %v1191
      %1230 = vmax.xlane.f32.xlu0 %v1229
      %v1231 = vpop.xlane.xlu0 %1230
      %v1232 = vmax.f32 %v1192, %v1193
      %1233 = vmax.xlane.f32.xlu0 %v1232
      %v1234 = vpop.xlane.xlu0 %1233
      %v1235 = vmax.f32 %v1194, %v1195
      %1236 = vmax.xlane.f32.xlu0 %v1235
      %v1237 = vpop.xlane.xlu0 %1236
      %v1238 = vmax.f32 %v1196, %v1197
      %1239 = vmax.xlane.f32.xlu0 %v1238
      %v1240 = vpop.xlane.xlu0 %1239
      %v1241 = vmax.f32 %v1198, %v1199
      %1242 = vmax.xlane.f32.xlu0 %v1241
      %v1243 = vpop.xlane.xlu0 %1242
      %v1244 = vmax.f32 %v1200, %v1201
      %1245 = vmax.xlane.f32.xlu0 %v1244
      %v1246 = vpop.xlane.xlu0 %1245
      %v1247 = vmax.f32 %v1202, %v1203
      %1248 = vmax.xlane.f32.xlu0 %v1247
      %v1249 = vpop.xlane.xlu0 %1248
      %v1250 = vmax.f32 %v1204, %v1205
      %1251 = vmax.xlane.f32.xlu0 %v1250
      %v1252 = vpop.xlane.xlu0 %1251
      %v1253 = vmax.f32 %v1206, %v1207
      %1254 = vmax.xlane.f32.xlu0 %v1253
      %v1255 = vpop.xlane.xlu0 %1254
      %v1256 = vsub.f32 %v1176, %v1210
      %v1257 = vsub.f32 %v1177, %v1210
      %v1258 = vsub.f32 %v1178, %v1213
      %v1259 = vsub.f32 %v1179, %v1213
      %v1260 = vsub.f32 %v1180, %v1216
      %v1261 = vsub.f32 %v1181, %v1216
      %v1262 = vsub.f32 %v1182, %v1219
      %v1263 = vsub.f32 %v1183, %v1219
      %v1264 = vsub.f32 %v1184, %v1222
      %v1265 = vsub.f32 %v1185, %v1222
      %v1266 = vsub.f32 %v1186, %v1225
      %v1267 = vsub.f32 %v1187, %v1225
      %v1268 = vsub.f32 %v1188, %v1228
      %v1269 = vsub.f32 %v1189, %v1228
      %v1270 = vsub.f32 %v1190, %v1231
      %v1271 = vsub.f32 %v1191, %v1231
      %v1272 = vsub.f32 %v1192, %v1234
      %v1273 = vsub.f32 %v1193, %v1234
      %v1274 = vsub.f32 %v1194, %v1237
      %v1275 = vsub.f32 %v1195, %v1237
      %v1276 = vsub.f32 %v1196, %v1240
      %v1277 = vsub.f32 %v1197, %v1240
      %v1278 = vsub.f32 %v1198, %v1243
      %v1279 = vsub.f32 %v1199, %v1243
      %v1280 = vsub.f32 %v1200, %v1246
      %v1281 = vsub.f32 %v1201, %v1246
      %v1282 = vsub.f32 %v1202, %v1249
      %v1283 = vsub.f32 %v1203, %v1249
      %v1284 = vsub.f32 %v1204, %v1252
      %v1285 = vsub.f32 %v1205, %v1252
      %v1286 = vsub.f32 %v1206, %v1255
      %v1287 = vsub.f32 %v1207, %v1255
      %v1288 = vmul.f32 %v1256, 1.442695
      %v1289 = vpow.pop %v1288
      %v1290 = vmul.f32 %v1257, 1.442695
      %v1291 = vpow.pop %v1290
      %v1292 = vmul.f32 %v1258, 1.442695
      %v1293 = vpow.pop %v1292
      %v1294 = vmul.f32 %v1259, 1.442695
      %v1295 = vpow.pop %v1294
      %v1296 = vmul.f32 %v1260, 1.442695
      %v1297 = vpow.pop %v1296
      %v1298 = vmul.f32 %v1261, 1.442695
      %v1299 = vpow.pop %v1298
      %v1300 = vmul.f32 %v1262, 1.442695
      %v1301 = vpow.pop %v1300
      %v1302 = vmul.f32 %v1263, 1.442695
      %v1303 = vpow.pop %v1302
      %v1304 = vmul.f32 %v1264, 1.442695
      %v1305 = vpow.pop %v1304
      %v1306 = vmul.f32 %v1265, 1.442695
      %v1307 = vpow.pop %v1306
      %v1308 = vmul.f32 %v1266, 1.442695
      %v1309 = vpow.pop %v1308
      %v1310 = vmul.f32 %v1267, 1.442695
      %v1311 = vpow.pop %v1310
      %v1312 = vmul.f32 %v1268, 1.442695
      %v1313 = vpow.pop %v1312
      %v1314 = vmul.f32 %v1269, 1.442695
      %v1315 = vpow.pop %v1314
      %v1316 = vmul.f32 %v1270, 1.442695
      %v1317 = vpow.pop %v1316
      %v1318 = vmul.f32 %v1271, 1.442695
      %v1319 = vpow.pop %v1318
      %v1320 = vmul.f32 %v1272, 1.442695
      %v1321 = vpow.pop %v1320
      %v1322 = vmul.f32 %v1273, 1.442695
      %v1323 = vpow.pop %v1322
      %v1324 = vmul.f32 %v1274, 1.442695
      %v1325 = vpow.pop %v1324
      %v1326 = vmul.f32 %v1275, 1.442695
      %v1327 = vpow.pop %v1326
      %v1328 = vmul.f32 %v1276, 1.442695
      %v1329 = vpow.pop %v1328
      %v1330 = vmul.f32 %v1277, 1.442695
      %v1331 = vpow.pop %v1330
      %v1332 = vmul.f32 %v1278, 1.442695
      %v1333 = vpow.pop %v1332
      %v1334 = vmul.f32 %v1279, 1.442695
      %v1335 = vpow.pop %v1334
      %v1336 = vmul.f32 %v1280, 1.442695
      %v1337 = vpow.pop %v1336
      %v1338 = vmul.f32 %v1281, 1.442695
      %v1339 = vpow.pop %v1338
      %v1340 = vmul.f32 %v1282, 1.442695
      %v1341 = vpow.pop %v1340
      %v1342 = vmul.f32 %v1283, 1.442695
      %v1343 = vpow.pop %v1342
      %v1344 = vmul.f32 %v1284, 1.442695
      %v1345 = vpow.pop %v1344
      %v1346 = vmul.f32 %v1285, 1.442695
      %v1347 = vpow.pop %v1346
      %v1348 = vmul.f32 %v1286, 1.442695
      %v1349 = vpow.pop %v1348
      %v1350 = vmul.f32 %v1287, 1.442695
      %v1351 = vpow.pop %v1350
      %v1352 = vsel %vm931, %v1289, 0.0
      %v1353 = vsel %vm932, %v1291, 0.0
      %v1354 = vsel %vm933, %v1293, 0.0
      %v1355 = vsel %vm934, %v1295, 0.0
      %v1356 = vsel %vm935, %v1297, 0.0
      %v1357 = vsel %vm936, %v1299, 0.0
      %v1358 = vsel %vm937, %v1301, 0.0
      %v1359 = vsel %vm938, %v1303, 0.0
      %v1360 = vsel %vm939, %v1305, 0.0
      %v1361 = vsel %vm940, %v1307, 0.0
      %v1362 = vsel %vm941, %v1309, 0.0
      %v1363 = vsel %vm942, %v1311, 0.0
      %v1364 = vsel %vm943, %v1313, 0.0
      %v1365 = vsel %vm944, %v1315, 0.0
      %v1366 = vsel %vm945, %v1317, 0.0
      %v1367 = vsel %vm946, %v1319, 0.0
      %v1368 = vsel %vm947, %v1321, 0.0
      %v1369 = vsel %vm948, %v1323, 0.0
      %v1370 = vsel %vm949, %v1325, 0.0
      %v1371 = vsel %vm950, %v1327, 0.0
      %v1372 = vsel %vm951, %v1329, 0.0
      %v1373 = vsel %vm952, %v1331, 0.0
      %v1374 = vsel %vm953, %v1333, 0.0
      %v1375 = vsel %vm954, %v1335, 0.0
      %v1376 = vsel %vm955, %v1337, 0.0
      %v1377 = vsel %vm956, %v1339, 0.0
      %v1378 = vsel %vm957, %v1341, 0.0
      %v1379 = vsel %vm958, %v1343, 0.0
      %v1380 = vsel %vm959, %v1345, 0.0
      %v1381 = vsel %vm960, %v1347, 0.0
      %v1382 = vsel %vm961, %v1349, 0.0
      %v1383 = vsel %vm962, %v1351, 0.0
      %v1384 = vadd.f32 %v1352, %v1353
      %1385 = vadd.xlane.f32.xlu0 %v1384
      %v1386 = vpop.xlane.xlu0 %1385
      %v1387 = vadd.f32 %v1354, %v1355
      %1388 = vadd.xlane.f32.xlu0 %v1387
      %v1389 = vpop.xlane.xlu0 %1388
      %v1390 = vadd.f32 %v1356, %v1357
      %1391 = vadd.xlane.f32.xlu0 %v1390
      %v1392 = vpop.xlane.xlu0 %1391
      %v1393 = vadd.f32 %v1358, %v1359
      %1394 = vadd.xlane.f32.xlu0 %v1393
      %v1395 = vpop.xlane.xlu0 %1394
      %v1396 = vadd.f32 %v1360, %v1361
      %1397 = vadd.xlane.f32.xlu0 %v1396
      %v1398 = vpop.xlane.xlu0 %1397
      %v1399 = vadd.f32 %v1362, %v1363
      %1400 = vadd.xlane.f32.xlu0 %v1399
      %v1401 = vpop.xlane.xlu0 %1400
      %v1402 = vadd.f32 %v1364, %v1365
      %1403 = vadd.xlane.f32.xlu0 %v1402
      %v1404 = vpop.xlane.xlu0 %1403
      %v1405 = vadd.f32 %v1366, %v1367
      %1406 = vadd.xlane.f32.xlu0 %v1405
      %v1407 = vpop.xlane.xlu0 %1406
      %v1408 = vadd.f32 %v1368, %v1369
      %1409 = vadd.xlane.f32.xlu0 %v1408
      %v1410 = vpop.xlane.xlu0 %1409
      %v1411 = vadd.f32 %v1370, %v1371
      %1412 = vadd.xlane.f32.xlu0 %v1411
      %v1413 = vpop.xlane.xlu0 %1412
      %v1414 = vadd.f32 %v1372, %v1373
      %1415 = vadd.xlane.f32.xlu0 %v1414
      %v1416 = vpop.xlane.xlu0 %1415
      %v1417 = vadd.f32 %v1374, %v1375
      %1418 = vadd.xlane.f32.xlu0 %v1417
      %v1419 = vpop.xlane.xlu0 %1418
      %v1420 = vadd.f32 %v1376, %v1377
      %1421 = vadd.xlane.f32.xlu0 %v1420
      %v1422 = vpop.xlane.xlu0 %1421
      %v1423 = vadd.f32 %v1378, %v1379
      %1424 = vadd.xlane.f32.xlu0 %v1423
      %v1425 = vpop.xlane.xlu0 %1424
      %v1426 = vadd.f32 %v1380, %v1381
      %1427 = vadd.xlane.f32.xlu0 %v1426
      %v1428 = vpop.xlane.xlu0 %1427
      %v1429 = vadd.f32 %v1382, %v1383
      %1430 = vadd.xlane.f32.xlu0 %v1429
      %v1431 = vpop.xlane.xlu0 %1430
      %v1432 = vmax.f32 %v1386, 1e-30
      %v1433 = vmax.f32 %v1389, 1e-30
      %v1434 = vmax.f32 %v1392, 1e-30
      %v1435 = vmax.f32 %v1395, 1e-30
      %v1436 = vmax.f32 %v1398, 1e-30
      %v1437 = vmax.f32 %v1401, 1e-30
      %v1438 = vmax.f32 %v1404, 1e-30
      %v1439 = vmax.f32 %v1407, 1e-30
      %v1440 = vmax.f32 %v1410, 1e-30
      %v1441 = vmax.f32 %v1413, 1e-30
      %v1442 = vmax.f32 %v1416, 1e-30
      %v1443 = vmax.f32 %v1419, 1e-30
      %v1444 = vmax.f32 %v1422, 1e-30
      %v1445 = vmax.f32 %v1425, 1e-30
      %v1446 = vmax.f32 %v1428, 1e-30
      %v1447 = vmax.f32 %v1431, 1e-30
      %v1448 = vrcp.pop %v1432
      %v1449 = vrcp.pop %v1433
      %v1450 = vrcp.pop %v1434
      %v1451 = vrcp.pop %v1435
      %v1452 = vrcp.pop %v1436
      %v1453 = vrcp.pop %v1437
      %v1454 = vrcp.pop %v1438
      %v1455 = vrcp.pop %v1439
      %v1456 = vrcp.pop %v1440
      %v1457 = vrcp.pop %v1441
      %v1458 = vrcp.pop %v1442
      %v1459 = vrcp.pop %v1443
      %v1460 = vrcp.pop %v1444
      %v1461 = vrcp.pop %v1445
      %v1462 = vrcp.pop %v1446
      %v1463 = vrcp.pop %v1447
      %v1464 = vmul.f32 %v1352, %v1448
      %v1465 = vmul.f32 %v1353, %v1448
      %v1466 = vmul.f32 %v1354, %v1449
      %v1467 = vmul.f32 %v1355, %v1449
      %v1468 = vmul.f32 %v1356, %v1450
      %v1469 = vmul.f32 %v1357, %v1450
      %v1470 = vmul.f32 %v1358, %v1451
      %v1471 = vmul.f32 %v1359, %v1451
      %v1472 = vmul.f32 %v1360, %v1452
      %v1473 = vmul.f32 %v1361, %v1452
      %v1474 = vmul.f32 %v1362, %v1453
      %v1475 = vmul.f32 %v1363, %v1453
      %v1476 = vmul.f32 %v1364, %v1454
      %v1477 = vmul.f32 %v1365, %v1454
      %v1478 = vmul.f32 %v1366, %v1455
      %v1479 = vmul.f32 %v1367, %v1455
      %v1480 = vmul.f32 %v1368, %v1456
      %v1481 = vmul.f32 %v1369, %v1456
      %v1482 = vmul.f32 %v1370, %v1457
      %v1483 = vmul.f32 %v1371, %v1457
      %v1484 = vmul.f32 %v1372, %v1458
      %v1485 = vmul.f32 %v1373, %v1458
      %v1486 = vmul.f32 %v1374, %v1459
      %v1487 = vmul.f32 %v1375, %v1459
      %v1488 = vmul.f32 %v1376, %v1460
      %v1489 = vmul.f32 %v1377, %v1460
      %v1490 = vmul.f32 %v1378, %v1461
      %v1491 = vmul.f32 %v1379, %v1461
      %v1492 = vmul.f32 %v1380, %v1462
      %v1493 = vmul.f32 %v1381, %v1462
      %v1494 = vmul.f32 %v1382, %v1463
      %v1495 = vmul.f32 %v1383, %v1463
      %v1496 = vpack.c.bf16 %v1466, %v1464
      %v1497 = vpack.c.bf16 %v1467, %v1465
      %v1498 = vpack.c.bf16 %v1470, %v1468
      %v1499 = vpack.c.bf16 %v1471, %v1469
      %v1500 = vpack.c.bf16 %v1474, %v1472
      %v1501 = vpack.c.bf16 %v1475, %v1473
      %v1502 = vpack.c.bf16 %v1478, %v1476
      %v1503 = vpack.c.bf16 %v1479, %v1477
      %v1504 = vpack.c.bf16 %v1482, %v1480
      %v1505 = vpack.c.bf16 %v1483, %v1481
      %v1506 = vpack.c.bf16 %v1486, %v1484
      %v1507 = vpack.c.bf16 %v1487, %v1485
      %v1508 = vpack.c.bf16 %v1490, %v1488
      %v1509 = vpack.c.bf16 %v1491, %v1489
      %v1510 = vpack.c.bf16 %v1494, %v1492
      %v1511 = vpack.c.bf16 %v1495, %v1493
      %v1512 = vld [vmem:[%s6] sm:$0xff]
      %v1513 = vld [vmem:[%s6 + $0x8] sm:$0xff]
      %v1514 = vld [vmem:[%s6 + $0x10] sm:$0xff]
      %v1515 = vld [vmem:[%s6 + $0x18] sm:$0xff]
      %v1516 = vld [vmem:[%s6 + $0x20] sm:$0xff]
      %v1517 = vld [vmem:[%s6 + $0x28] sm:$0xff]
      %v1518 = vld [vmem:[%s6 + $0x30] sm:$0xff]
      %v1519 = vld [vmem:[%s6 + $0x38] sm:$0xff]
      %v1520 = vld [vmem:[%s6 + $0x40] sm:$0xff]
      %v1521 = vld [vmem:[%s6 + $0x48] sm:$0xff]
      %v1522 = vld [vmem:[%s6 + $0x50] sm:$0xff]
      %v1523 = vld [vmem:[%s6 + $0x58] sm:$0xff]
      %v1524 = vld [vmem:[%s6 + $0x60] sm:$0xff]
      %v1525 = vld [vmem:[%s6 + $0x68] sm:$0xff]
      %v1526 = vld [vmem:[%s6 + $0x70] sm:$0xff]
      %v1527 = vld [vmem:[%s6 + $0x78] sm:$0xff]
      %v1528 = vld [vmem:[%s6 + $0x80] sm:$0xff]
      %v1529 = vld [vmem:[%s6 + $0x88] sm:$0xff]
      %v1530 = vld [vmem:[%s6 + $0x90] sm:$0xff]
      %v1531 = vld [vmem:[%s6 + $0x98] sm:$0xff]
      %v1532 = vld [vmem:[%s6 + $0xa0] sm:$0xff]
      %v1533 = vld [vmem:[%s6 + $0xa8] sm:$0xff]
      %v1534 = vld [vmem:[%s6 + $0xb0] sm:$0xff]
      %v1535 = vld [vmem:[%s6 + $0xb8] sm:$0xff]
      %v1536 = vld [vmem:[%s6 + $0xc0] sm:$0xff]
      %v1537 = vld [vmem:[%s6 + $0xc8] sm:$0xff]
      %v1538 = vld [vmem:[%s6 + $0xd0] sm:$0xff]
      %v1539 = vld [vmem:[%s6 + $0xd8] sm:$0xff]
      %v1540 = vld [vmem:[%s6 + $0xe0] sm:$0xff]
      %v1541 = vld [vmem:[%s6 + $0xe8] sm:$0xff]
      %v1542 = vld [vmem:[%s6 + $0xf0] sm:$0xff]
      %v1543 = vld [vmem:[%s6 + $0xf8] sm:$0xff]
      %v1576 = vunpack.c.l.b16 %v1512
      %v1577 = vunpack.c.h.b16 %v1512
      %v1578 = vunpack.c.l.b16 %v1513
      %v1579 = vunpack.c.h.b16 %v1513
      %v1580 = vunpack.c.l.b16 %v1514
      %v1581 = vunpack.c.h.b16 %v1514
      %v1582 = vunpack.c.l.b16 %v1515
      %v1583 = vunpack.c.h.b16 %v1515
      %v1584 = vunpack.c.l.b16 %v1516
      %v1585 = vunpack.c.h.b16 %v1516
      %v1586 = vunpack.c.l.b16 %v1517
      %v1587 = vunpack.c.h.b16 %v1517
      %v1588 = vunpack.c.l.b16 %v1518
      %v1589 = vunpack.c.h.b16 %v1518
      %v1590 = vunpack.c.l.b16 %v1519
      %v1591 = vunpack.c.h.b16 %v1519
      %v1592 = vunpack.c.l.b16 %v1520
      %v1593 = vunpack.c.h.b16 %v1520
      %v1594 = vunpack.c.l.b16 %v1521
      %v1595 = vunpack.c.h.b16 %v1521
      %v1596 = vunpack.c.l.b16 %v1522
      %v1597 = vunpack.c.h.b16 %v1522
      %v1598 = vunpack.c.l.b16 %v1523
      %v1599 = vunpack.c.h.b16 %v1523
      %v1600 = vunpack.c.l.b16 %v1524
      %v1601 = vunpack.c.h.b16 %v1524
      %v1602 = vunpack.c.l.b16 %v1525
      %v1603 = vunpack.c.h.b16 %v1525
      %v1604 = vunpack.c.l.b16 %v1526
      %v1605 = vunpack.c.h.b16 %v1526
      %v1606 = vunpack.c.l.b16 %v1527
      %v1607 = vunpack.c.h.b16 %v1527
      %v1608 = vunpack.c.l.b16 %v1528
      %v1609 = vunpack.c.h.b16 %v1528
      %v1610 = vunpack.c.l.b16 %v1529
      %v1611 = vunpack.c.h.b16 %v1529
      %v1612 = vunpack.c.l.b16 %v1530
      %v1613 = vunpack.c.h.b16 %v1530
      %v1614 = vunpack.c.l.b16 %v1531
      %v1615 = vunpack.c.h.b16 %v1531
      %v1616 = vunpack.c.l.b16 %v1532
      %v1617 = vunpack.c.h.b16 %v1532
      %v1618 = vunpack.c.l.b16 %v1533
      %v1619 = vunpack.c.h.b16 %v1533
      %v1620 = vunpack.c.l.b16 %v1534
      %v1621 = vunpack.c.h.b16 %v1534
      %v1622 = vunpack.c.l.b16 %v1535
      %v1623 = vunpack.c.h.b16 %v1535
      %v1624 = vunpack.c.l.b16 %v1536
      %v1625 = vunpack.c.h.b16 %v1536
      %v1626 = vunpack.c.l.b16 %v1537
      %v1627 = vunpack.c.h.b16 %v1537
      %v1628 = vunpack.c.l.b16 %v1538
      %v1629 = vunpack.c.h.b16 %v1538
      %v1630 = vunpack.c.l.b16 %v1539
      %v1631 = vunpack.c.h.b16 %v1539
      %v1632 = vunpack.c.l.b16 %v1540
      %v1633 = vunpack.c.h.b16 %v1540
      %v1634 = vunpack.c.l.b16 %v1541
      %v1635 = vunpack.c.h.b16 %v1541
      %v1636 = vunpack.c.l.b16 %v1542
      %v1637 = vunpack.c.h.b16 %v1542
      %v1638 = vunpack.c.l.b16 %v1543
      %v1639 = vunpack.c.h.b16 %v1543
      %v1640 = vpack.c.b16 %v1578, %v1576
      %v1641 = vpack.c.b16 %v1579, %v1577
      %v1642 = vpack.c.b16 %v1582, %v1580
      %v1643 = vpack.c.b16 %v1583, %v1581
      %v1644 = vpack.c.b16 %v1586, %v1584
      %v1645 = vpack.c.b16 %v1587, %v1585
      %v1646 = vpack.c.b16 %v1590, %v1588
      %v1647 = vpack.c.b16 %v1591, %v1589
      %v1648 = vpack.c.b16 %v1594, %v1592
      %v1649 = vpack.c.b16 %v1595, %v1593
      %v1650 = vpack.c.b16 %v1598, %v1596
      %v1651 = vpack.c.b16 %v1599, %v1597
      %v1652 = vpack.c.b16 %v1602, %v1600
      %v1653 = vpack.c.b16 %v1603, %v1601
      %v1654 = vpack.c.b16 %v1606, %v1604
      %v1655 = vpack.c.b16 %v1607, %v1605
      %v1656 = vpack.c.b16 %v1610, %v1608
      %v1657 = vpack.c.b16 %v1611, %v1609
      %v1658 = vpack.c.b16 %v1614, %v1612
      %v1659 = vpack.c.b16 %v1615, %v1613
      %v1660 = vpack.c.b16 %v1618, %v1616
      %v1661 = vpack.c.b16 %v1619, %v1617
      %v1662 = vpack.c.b16 %v1622, %v1620
      %v1663 = vpack.c.b16 %v1623, %v1621
      %v1664 = vpack.c.b16 %v1626, %v1624
      %v1665 = vpack.c.b16 %v1627, %v1625
      %v1666 = vpack.c.b16 %v1630, %v1628
      %v1667 = vpack.c.b16 %v1631, %v1629
      %v1668 = vpack.c.b16 %v1634, %v1632
      %v1669 = vpack.c.b16 %v1635, %v1633
      %v1670 = vpack.c.b16 %v1638, %v1636
      %v1671 = vpack.c.b16 %v1639, %v1637
      %1704 = vmatpush.bf16.msra.mxu0 %v1654
      %1705 = vmatpush.bf16.msra.mxu0 %v1652
      %1706 = vmatpush.bf16.msra.mxu0 %v1650
      %1707 = vmatpush.bf16.msra.mxu0 %v1648
      %1708 = vmatpush.bf16.msra.mxu0 %v1646
      %1709 = vmatpush.bf16.msra.mxu0 %v1644
      %1710 = vmatpush.bf16.msra.mxu0 %v1642
      %1711 = vmatpush.bf16.msra.mxu0 %v1640
      %1712 = vmatmul.bf16.gmra.mxu0 %v1496
      %v1713 = vpop.f32.mrf.mxu0
      %v1714 = vadd.f32 0.0, %v1713
      %v1715 = vpop.f32.mrf.mxu0
      %v1716 = vadd.f32 0.0, %v1715
      %1717 = vmatmul.bf16.gmra.mxu0 %v1498
      %v1718 = vpop.f32.mrf.mxu0
      %v1719 = vadd.f32 0.0, %v1718
      %v1720 = vpop.f32.mrf.mxu0
      %v1721 = vadd.f32 0.0, %v1720
      %1722 = vmatmul.bf16.gmra.mxu0 %v1500
      %v1723 = vpop.f32.mrf.mxu0
      %v1724 = vadd.f32 0.0, %v1723
      %v1725 = vpop.f32.mrf.mxu0
      %v1726 = vadd.f32 0.0, %v1725
      %1727 = vmatmul.bf16.gmra.mxu0 %v1502
      %v1728 = vpop.f32.mrf.mxu0
      %v1729 = vadd.f32 0.0, %v1728
      %v1730 = vpop.f32.mrf.mxu0
      %v1731 = vadd.f32 0.0, %v1730
      %1732 = vmatmul.bf16.gmra.mxu0 %v1504
      %v1733 = vpop.f32.mrf.mxu0
      %v1734 = vadd.f32 0.0, %v1733
      %v1735 = vpop.f32.mrf.mxu0
      %v1736 = vadd.f32 0.0, %v1735
      %1737 = vmatmul.bf16.gmra.mxu0 %v1506
      %v1738 = vpop.f32.mrf.mxu0
      %v1739 = vadd.f32 0.0, %v1738
      %v1740 = vpop.f32.mrf.mxu0
      %v1741 = vadd.f32 0.0, %v1740
      %1742 = vmatmul.bf16.gmra.mxu0 %v1508
      %v1743 = vpop.f32.mrf.mxu0
      %v1744 = vadd.f32 0.0, %v1743
      %v1745 = vpop.f32.mrf.mxu0
      %v1746 = vadd.f32 0.0, %v1745
      %1747 = vmatmul.bf16.gmra.mxu0 %v1510
      %v1748 = vpop.f32.mrf.mxu0
      %v1749 = vadd.f32 0.0, %v1748
      %v1750 = vpop.f32.mrf.mxu0
      %v1751 = vadd.f32 0.0, %v1750
      %1752 = vdwg.mxu0
      %1753 = vmatpush.bf16.msra.mxu0 %v1670
      %1754 = vmatpush.bf16.msra.mxu0 %v1668
      %1755 = vmatpush.bf16.msra.mxu0 %v1666
      %1756 = vmatpush.bf16.msra.mxu0 %v1664
      %1757 = vmatpush.bf16.msra.mxu0 %v1662
      %1758 = vmatpush.bf16.msra.mxu0 %v1660
      %1759 = vmatpush.bf16.msra.mxu0 %v1658
      %1760 = vmatpush.bf16.msra.mxu0 %v1656
      %1761 = vmatmul.bf16.gmra.mxu0 %v1497
      %v1762 = vpop.f32.mrf.mxu0
      %v1763 = vadd.f32 %v1714, %v1762
      %v1764 = vpop.f32.mrf.mxu0
      %v1765 = vadd.f32 %v1716, %v1764
      %1766 = vmatmul.bf16.gmra.mxu0 %v1499
      %v1767 = vpop.f32.mrf.mxu0
      %v1768 = vadd.f32 %v1719, %v1767
      %v1769 = vpop.f32.mrf.mxu0
      %v1770 = vadd.f32 %v1721, %v1769
      %1771 = vmatmul.bf16.gmra.mxu0 %v1501
      %v1772 = vpop.f32.mrf.mxu0
      %v1773 = vadd.f32 %v1724, %v1772
      %v1774 = vpop.f32.mrf.mxu0
      %v1775 = vadd.f32 %v1726, %v1774
      %1776 = vmatmul.bf16.gmra.mxu0 %v1503
      %v1777 = vpop.f32.mrf.mxu0
      %v1778 = vadd.f32 %v1729, %v1777
      %v1779 = vpop.f32.mrf.mxu0
      %v1780 = vadd.f32 %v1731, %v1779
      %1781 = vmatmul.bf16.gmra.mxu0 %v1505
      %v1782 = vpop.f32.mrf.mxu0
      %v1783 = vadd.f32 %v1734, %v1782
      %v1784 = vpop.f32.mrf.mxu0
      %v1785 = vadd.f32 %v1736, %v1784
      %1786 = vmatmul.bf16.gmra.mxu0 %v1507
      %v1787 = vpop.f32.mrf.mxu0
      %v1788 = vadd.f32 %v1739, %v1787
      %v1789 = vpop.f32.mrf.mxu0
      %v1790 = vadd.f32 %v1741, %v1789
      %1791 = vmatmul.bf16.gmra.mxu0 %v1509
      %v1792 = vpop.f32.mrf.mxu0
      %v1793 = vadd.f32 %v1744, %v1792
      %v1794 = vpop.f32.mrf.mxu0
      %v1795 = vadd.f32 %v1746, %v1794
      %1796 = vmatmul.bf16.gmra.mxu0 %v1511
      %v1797 = vpop.f32.mrf.mxu0
      %v1798 = vadd.f32 %v1749, %v1797
      %v1799 = vpop.f32.mrf.mxu0
      %v1800 = vadd.f32 %v1751, %v1799
      %1801 = vdwg.mxu0
      %1802 = vmatpush.bf16.msra.mxu0 %v1655
      %1803 = vmatpush.bf16.msra.mxu0 %v1653
      %1804 = vmatpush.bf16.msra.mxu0 %v1651
      %1805 = vmatpush.bf16.msra.mxu0 %v1649
      %1806 = vmatpush.bf16.msra.mxu0 %v1647
      %1807 = vmatpush.bf16.msra.mxu0 %v1645
      %1808 = vmatpush.bf16.msra.mxu0 %v1643
      %1809 = vmatpush.bf16.msra.mxu0 %v1641
      %1810 = vmatmul.bf16.gmra.mxu0 %v1496
      %v1811 = vpop.f32.mrf.mxu0
      %v1812 = vadd.f32 0.0, %v1811
      %v1813 = vpop.f32.mrf.mxu0
      %v1814 = vadd.f32 0.0, %v1813
      %1815 = vmatmul.bf16.gmra.mxu0 %v1498
      %v1816 = vpop.f32.mrf.mxu0
      %v1817 = vadd.f32 0.0, %v1816
      %v1818 = vpop.f32.mrf.mxu0
      %v1819 = vadd.f32 0.0, %v1818
      %1820 = vmatmul.bf16.gmra.mxu0 %v1500
      %v1821 = vpop.f32.mrf.mxu0
      %v1822 = vadd.f32 0.0, %v1821
      %v1823 = vpop.f32.mrf.mxu0
      %v1824 = vadd.f32 0.0, %v1823
      %1825 = vmatmul.bf16.gmra.mxu0 %v1502
      %v1826 = vpop.f32.mrf.mxu0
      %v1827 = vadd.f32 0.0, %v1826
      %v1828 = vpop.f32.mrf.mxu0
      %v1829 = vadd.f32 0.0, %v1828
      %1830 = vmatmul.bf16.gmra.mxu0 %v1504
      %v1831 = vpop.f32.mrf.mxu0
      %v1832 = vadd.f32 0.0, %v1831
      %v1833 = vpop.f32.mrf.mxu0
      %v1834 = vadd.f32 0.0, %v1833
      %1835 = vmatmul.bf16.gmra.mxu0 %v1506
      %v1836 = vpop.f32.mrf.mxu0
      %v1837 = vadd.f32 0.0, %v1836
      %v1838 = vpop.f32.mrf.mxu0
      %v1839 = vadd.f32 0.0, %v1838
      %1840 = vmatmul.bf16.gmra.mxu0 %v1508
      %v1841 = vpop.f32.mrf.mxu0
      %v1842 = vadd.f32 0.0, %v1841
      %v1843 = vpop.f32.mrf.mxu0
      %v1844 = vadd.f32 0.0, %v1843
      %1845 = vmatmul.bf16.gmra.mxu0 %v1510
      %v1846 = vpop.f32.mrf.mxu0
      %v1847 = vadd.f32 0.0, %v1846
      %v1848 = vpop.f32.mrf.mxu0
      %v1849 = vadd.f32 0.0, %v1848
      %1850 = vdwg.mxu0
      %1851 = vmatpush.bf16.msra.mxu0 %v1671
      %1852 = vmatpush.bf16.msra.mxu0 %v1669
      %1853 = vmatpush.bf16.msra.mxu0 %v1667
      %1854 = vmatpush.bf16.msra.mxu0 %v1665
      %1855 = vmatpush.bf16.msra.mxu0 %v1663
      %1856 = vmatpush.bf16.msra.mxu0 %v1661
      %1857 = vmatpush.bf16.msra.mxu0 %v1659
      %1858 = vmatpush.bf16.msra.mxu0 %v1657
      %1859 = vmatmul.bf16.gmra.mxu0 %v1497
      %v1860 = vpop.f32.mrf.mxu0
      %v1861 = vadd.f32 %v1812, %v1860
      %v1862 = vpop.f32.mrf.mxu0
      %v1863 = vadd.f32 %v1814, %v1862
      %1864 = vmatmul.bf16.gmra.mxu0 %v1499
      %v1865 = vpop.f32.mrf.mxu0
      %v1866 = vadd.f32 %v1817, %v1865
      %v1867 = vpop.f32.mrf.mxu0
      %v1868 = vadd.f32 %v1819, %v1867
      %1869 = vmatmul.bf16.gmra.mxu0 %v1501
      %v1870 = vpop.f32.mrf.mxu0
      %v1871 = vadd.f32 %v1822, %v1870
      %v1872 = vpop.f32.mrf.mxu0
      %v1873 = vadd.f32 %v1824, %v1872
      %1874 = vmatmul.bf16.gmra.mxu0 %v1503
      %v1875 = vpop.f32.mrf.mxu0
      %v1876 = vadd.f32 %v1827, %v1875
      %v1877 = vpop.f32.mrf.mxu0
      %v1878 = vadd.f32 %v1829, %v1877
      %1879 = vmatmul.bf16.gmra.mxu0 %v1505
      %v1880 = vpop.f32.mrf.mxu0
      %v1881 = vadd.f32 %v1832, %v1880
      %v1882 = vpop.f32.mrf.mxu0
      %v1883 = vadd.f32 %v1834, %v1882
      %1884 = vmatmul.bf16.gmra.mxu0 %v1507
      %v1885 = vpop.f32.mrf.mxu0
      %v1886 = vadd.f32 %v1837, %v1885
      %v1887 = vpop.f32.mrf.mxu0
      %v1888 = vadd.f32 %v1839, %v1887
      %1889 = vmatmul.bf16.gmra.mxu0 %v1509
      %v1890 = vpop.f32.mrf.mxu0
      %v1891 = vadd.f32 %v1842, %v1890
      %v1892 = vpop.f32.mrf.mxu0
      %v1893 = vadd.f32 %v1844, %v1892
      %1894 = vmatmul.bf16.gmra.mxu0 %v1511
      %v1895 = vpop.f32.mrf.mxu0
      %v1896 = vadd.f32 %v1847, %v1895
      %v1897 = vpop.f32.mrf.mxu0
      %v1898 = vadd.f32 %v1849, %v1897
      %1899 = vdwg.mxu0
      %v1900 = vld [vmem:[%s8] sm:$0x1]
      %v1902 = vperm.slane %v1900, 0
      %v1904 = vadd.f32 %v1763, %v1902
      %v1905 = vadd.f32 %v1765, %v1902
      %v1906 = vadd.f32 %v1768, %v1902
      %v1907 = vadd.f32 %v1770, %v1902
      %v1908 = vadd.f32 %v1773, %v1902
      %v1909 = vadd.f32 %v1775, %v1902
      %v1910 = vadd.f32 %v1778, %v1902
      %v1911 = vadd.f32 %v1780, %v1902
      %v1912 = vadd.f32 %v1783, %v1902
      %v1913 = vadd.f32 %v1785, %v1902
      %v1914 = vadd.f32 %v1788, %v1902
      %v1915 = vadd.f32 %v1790, %v1902
      %v1916 = vadd.f32 %v1793, %v1902
      %v1917 = vadd.f32 %v1795, %v1902
      %v1918 = vadd.f32 %v1798, %v1902
      %v1919 = vadd.f32 %v1800, %v1902
      %1936 = vrot.lane.b32.xlu0 %v1861, 2
      %v1937 = vpop.permute.xlu0 %1936
      %1938 = vrot.lane.b32.xlu0 %v1863, 2
      %v1939 = vpop.permute.xlu0 %1938
      %1940 = vrot.lane.b32.xlu0 %v1866, 2
      %v1941 = vpop.permute.xlu0 %1940
      %1942 = vrot.lane.b32.xlu0 %v1868, 2
      %v1943 = vpop.permute.xlu0 %1942
      %1944 = vrot.lane.b32.xlu0 %v1871, 2
      %v1945 = vpop.permute.xlu0 %1944
      %1946 = vrot.lane.b32.xlu0 %v1873, 2
      %v1947 = vpop.permute.xlu0 %1946
      %1948 = vrot.lane.b32.xlu0 %v1876, 2
      %v1949 = vpop.permute.xlu0 %1948
      %1950 = vrot.lane.b32.xlu0 %v1878, 2
      %v1951 = vpop.permute.xlu0 %1950
      %1952 = vrot.lane.b32.xlu0 %v1881, 2
      %v1953 = vpop.permute.xlu0 %1952
      %1954 = vrot.lane.b32.xlu0 %v1883, 2
      %v1955 = vpop.permute.xlu0 %1954
      %1956 = vrot.lane.b32.xlu0 %v1886, 2
      %v1957 = vpop.permute.xlu0 %1956
      %1958 = vrot.lane.b32.xlu0 %v1888, 2
      %v1959 = vpop.permute.xlu0 %1958
      %1960 = vrot.lane.b32.xlu0 %v1891, 2
      %v1961 = vpop.permute.xlu0 %1960
      %1962 = vrot.lane.b32.xlu0 %v1893, 2
      %v1963 = vpop.permute.xlu0 %1962
      %1964 = vrot.lane.b32.xlu0 %v1896, 2
      %v1965 = vpop.permute.xlu0 %1964
      %1966 = vrot.lane.b32.xlu0 %v1898, 2
      %v1967 = vpop.permute.xlu0 %1966
      %v1984 = vadd.f32 %v755, %v1937
      %v1985 = vadd.f32 %v757, %v1939
      %v1986 = vadd.f32 %v760, %v1941
      %v1987 = vadd.f32 %v762, %v1943
      %v1988 = vadd.f32 %v765, %v1945
      %v1989 = vadd.f32 %v767, %v1947
      %v1990 = vadd.f32 %v770, %v1949
      %v1991 = vadd.f32 %v772, %v1951
      %v1992 = vadd.f32 %v775, %v1953
      %v1993 = vadd.f32 %v777, %v1955
      %v1994 = vadd.f32 %v780, %v1957
      %v1995 = vadd.f32 %v782, %v1959
      %v1996 = vadd.f32 %v785, %v1961
      %v1997 = vadd.f32 %v787, %v1963
      %v1998 = vadd.f32 %v790, %v1965
      %v1999 = vadd.f32 %v792, %v1967
      %v2000 = vxor.u32 %v1984, 2147483648
      %v2001 = vxor.u32 %v1985, 2147483648
      %v2002 = vxor.u32 %v1986, 2147483648
      %v2003 = vxor.u32 %v1987, 2147483648
      %v2004 = vxor.u32 %v1988, 2147483648
      %v2005 = vxor.u32 %v1989, 2147483648
      %v2006 = vxor.u32 %v1990, 2147483648
      %v2007 = vxor.u32 %v1991, 2147483648
      %v2008 = vxor.u32 %v1992, 2147483648
      %v2009 = vxor.u32 %v1993, 2147483648
      %v2010 = vxor.u32 %v1994, 2147483648
      %v2011 = vxor.u32 %v1995, 2147483648
      %v2012 = vxor.u32 %v1996, 2147483648
      %v2013 = vxor.u32 %v1997, 2147483648
      %v2014 = vxor.u32 %v1998, 2147483648
      %v2015 = vxor.u32 %v1999, 2147483648
      %v2016 = vmul.f32 %v2000, 1.442695
      %v2017 = vpow.pop %v2016
      %v2018 = vmul.f32 %v2001, 1.442695
      %v2019 = vpow.pop %v2018
      %v2020 = vmul.f32 %v2002, 1.442695
      %v2021 = vpow.pop %v2020
      %v2022 = vmul.f32 %v2003, 1.442695
      %v2023 = vpow.pop %v2022
      %v2024 = vmul.f32 %v2004, 1.442695
      %v2025 = vpow.pop %v2024
      %v2026 = vmul.f32 %v2005, 1.442695
      %v2027 = vpow.pop %v2026
      %v2028 = vmul.f32 %v2006, 1.442695
      %v2029 = vpow.pop %v2028
      %v2030 = vmul.f32 %v2007, 1.442695
      %v2031 = vpow.pop %v2030
      %v2032 = vmul.f32 %v2008, 1.442695
      %v2033 = vpow.pop %v2032
      %v2034 = vmul.f32 %v2009, 1.442695
      %v2035 = vpow.pop %v2034
      %v2036 = vmul.f32 %v2010, 1.442695
      %v2037 = vpow.pop %v2036
      %v2038 = vmul.f32 %v2011, 1.442695
      %v2039 = vpow.pop %v2038
      %v2040 = vmul.f32 %v2012, 1.442695
      %v2041 = vpow.pop %v2040
      %v2042 = vmul.f32 %v2013, 1.442695
      %v2043 = vpow.pop %v2042
      %v2044 = vmul.f32 %v2014, 1.442695
      %v2045 = vpow.pop %v2044
      %v2046 = vmul.f32 %v2015, 1.442695
      %v2047 = vpow.pop %v2046
      %v2048 = vadd.f32 %v2017, 1.0
      %v2049 = vadd.f32 %v2019, 1.0
      %v2050 = vadd.f32 %v2021, 1.0
      %v2051 = vadd.f32 %v2023, 1.0
      %v2052 = vadd.f32 %v2025, 1.0
      %v2053 = vadd.f32 %v2027, 1.0
      %v2054 = vadd.f32 %v2029, 1.0
      %v2055 = vadd.f32 %v2031, 1.0
      %v2056 = vadd.f32 %v2033, 1.0
      %v2057 = vadd.f32 %v2035, 1.0
      %v2058 = vadd.f32 %v2037, 1.0
      %v2059 = vadd.f32 %v2039, 1.0
      %v2060 = vadd.f32 %v2041, 1.0
      %v2061 = vadd.f32 %v2043, 1.0
      %v2062 = vadd.f32 %v2045, 1.0
      %v2063 = vadd.f32 %v2047, 1.0
      %v2064 = vrcp.pop %v2048
      %v2065 = vmul.f32 %v2048, %v2064
      %v2066 = vsub.f32 1.0, %v2065
      %v2067 = vmul.f32 %v2064, %v2066
      %v2068 = vadd.f32 %v2064, %v2067
      %vm2069 = vweird.f32 %v2048
      %vm2070 = vweird.f32 %v2064
      %vm2071 = vmor %vm2069, %vm2070
      %v2072 = vsel %vm2071, %v2064, %v2068
      %v2073 = vand.u32 2147483647, %v2048
      %vm2074 = vcmp.eq.f32.partialorder %v2073, 8.507059e+37
      %v2075 = vand.u32 %v2048, 2147483648
      %v2076 = vor.u32 1.1754944e-38, %v2075
      %v2077 = vsel %vm2074, %v2076, %v2072
      %v2078 = vmul.f32 1.0, %v2077
      %v2079 = vrcp.pop %v2049
      %v2080 = vmul.f32 %v2049, %v2079
      %v2081 = vsub.f32 1.0, %v2080
      %v2082 = vmul.f32 %v2079, %v2081
      %v2083 = vadd.f32 %v2079, %v2082
      %vm2084 = vweird.f32 %v2049
      %vm2085 = vweird.f32 %v2079
      %vm2086 = vmor %vm2084, %vm2085
      %v2087 = vsel %vm2086, %v2079, %v2083
      %v2088 = vand.u32 2147483647, %v2049
      %vm2089 = vcmp.eq.f32.partialorder %v2088, 8.507059e+37
      %v2090 = vand.u32 %v2049, 2147483648
      %v2091 = vor.u32 1.1754944e-38, %v2090
      %v2092 = vsel %vm2089, %v2091, %v2087
      %v2093 = vmul.f32 1.0, %v2092
      %v2094 = vrcp.pop %v2050
      %v2095 = vmul.f32 %v2050, %v2094
      %v2096 = vsub.f32 1.0, %v2095
      %v2097 = vmul.f32 %v2094, %v2096
      %v2098 = vadd.f32 %v2094, %v2097
      %vm2099 = vweird.f32 %v2050
      %vm2100 = vweird.f32 %v2094
      %vm2101 = vmor %vm2099, %vm2100
      %v2102 = vsel %vm2101, %v2094, %v2098
      %v2103 = vand.u32 2147483647, %v2050
      %vm2104 = vcmp.eq.f32.partialorder %v2103, 8.507059e+37
      %v2105 = vand.u32 %v2050, 2147483648
      %v2106 = vor.u32 1.1754944e-38, %v2105
      %v2107 = vsel %vm2104, %v2106, %v2102
      %v2108 = vmul.f32 1.0, %v2107
      %v2109 = vrcp.pop %v2051
      %v2110 = vmul.f32 %v2051, %v2109
      %v2111 = vsub.f32 1.0, %v2110
      %v2112 = vmul.f32 %v2109, %v2111
      %v2113 = vadd.f32 %v2109, %v2112
      %vm2114 = vweird.f32 %v2051
      %vm2115 = vweird.f32 %v2109
      %vm2116 = vmor %vm2114, %vm2115
      %v2117 = vsel %vm2116, %v2109, %v2113
      %v2118 = vand.u32 2147483647, %v2051
      %vm2119 = vcmp.eq.f32.partialorder %v2118, 8.507059e+37
      %v2120 = vand.u32 %v2051, 2147483648
      %v2121 = vor.u32 1.1754944e-38, %v2120
      %v2122 = vsel %vm2119, %v2121, %v2117
      %v2123 = vmul.f32 1.0, %v2122
      %v2124 = vrcp.pop %v2052
      %v2125 = vmul.f32 %v2052, %v2124
      %v2126 = vsub.f32 1.0, %v2125
      %v2127 = vmul.f32 %v2124, %v2126
      %v2128 = vadd.f32 %v2124, %v2127
      %vm2129 = vweird.f32 %v2052
      %vm2130 = vweird.f32 %v2124
      %vm2131 = vmor %vm2129, %vm2130
      %v2132 = vsel %vm2131, %v2124, %v2128
      %v2133 = vand.u32 2147483647, %v2052
      %vm2134 = vcmp.eq.f32.partialorder %v2133, 8.507059e+37
      %v2135 = vand.u32 %v2052, 2147483648
      %v2136 = vor.u32 1.1754944e-38, %v2135
      %v2137 = vsel %vm2134, %v2136, %v2132
      %v2138 = vmul.f32 1.0, %v2137
      %v2139 = vrcp.pop %v2053
      %v2140 = vmul.f32 %v2053, %v2139
      %v2141 = vsub.f32 1.0, %v2140
      %v2142 = vmul.f32 %v2139, %v2141
      %v2143 = vadd.f32 %v2139, %v2142
      %vm2144 = vweird.f32 %v2053
      %vm2145 = vweird.f32 %v2139
      %vm2146 = vmor %vm2144, %vm2145
      %v2147 = vsel %vm2146, %v2139, %v2143
      %v2148 = vand.u32 2147483647, %v2053
      %vm2149 = vcmp.eq.f32.partialorder %v2148, 8.507059e+37
      %v2150 = vand.u32 %v2053, 2147483648
      %v2151 = vor.u32 1.1754944e-38, %v2150
      %v2152 = vsel %vm2149, %v2151, %v2147
      %v2153 = vmul.f32 1.0, %v2152
      %v2154 = vrcp.pop %v2054
      %v2155 = vmul.f32 %v2054, %v2154
      %v2156 = vsub.f32 1.0, %v2155
      %v2157 = vmul.f32 %v2154, %v2156
      %v2158 = vadd.f32 %v2154, %v2157
      %vm2159 = vweird.f32 %v2054
      %vm2160 = vweird.f32 %v2154
      %vm2161 = vmor %vm2159, %vm2160
      %v2162 = vsel %vm2161, %v2154, %v2158
      %v2163 = vand.u32 2147483647, %v2054
      %vm2164 = vcmp.eq.f32.partialorder %v2163, 8.507059e+37
      %v2165 = vand.u32 %v2054, 2147483648
      %v2166 = vor.u32 1.1754944e-38, %v2165
      %v2167 = vsel %vm2164, %v2166, %v2162
      %v2168 = vmul.f32 1.0, %v2167
      %v2169 = vrcp.pop %v2055
      %v2170 = vmul.f32 %v2055, %v2169
      %v2171 = vsub.f32 1.0, %v2170
      %v2172 = vmul.f32 %v2169, %v2171
      %v2173 = vadd.f32 %v2169, %v2172
      %vm2174 = vweird.f32 %v2055
      %vm2175 = vweird.f32 %v2169
      %vm2176 = vmor %vm2174, %vm2175
      %v2177 = vsel %vm2176, %v2169, %v2173
      %v2178 = vand.u32 2147483647, %v2055
      %vm2179 = vcmp.eq.f32.partialorder %v2178, 8.507059e+37
      %v2180 = vand.u32 %v2055, 2147483648
      %v2181 = vor.u32 1.1754944e-38, %v2180
      %v2182 = vsel %vm2179, %v2181, %v2177
      %v2183 = vmul.f32 1.0, %v2182
      %v2184 = vrcp.pop %v2056
      %v2185 = vmul.f32 %v2056, %v2184
      %v2186 = vsub.f32 1.0, %v2185
      %v2187 = vmul.f32 %v2184, %v2186
      %v2188 = vadd.f32 %v2184, %v2187
      %vm2189 = vweird.f32 %v2056
      %vm2190 = vweird.f32 %v2184
      %vm2191 = vmor %vm2189, %vm2190
      %v2192 = vsel %vm2191, %v2184, %v2188
      %v2193 = vand.u32 2147483647, %v2056
      %vm2194 = vcmp.eq.f32.partialorder %v2193, 8.507059e+37
      %v2195 = vand.u32 %v2056, 2147483648
      %v2196 = vor.u32 1.1754944e-38, %v2195
      %v2197 = vsel %vm2194, %v2196, %v2192
      %v2198 = vmul.f32 1.0, %v2197
      %v2199 = vrcp.pop %v2057
      %v2200 = vmul.f32 %v2057, %v2199
      %v2201 = vsub.f32 1.0, %v2200
      %v2202 = vmul.f32 %v2199, %v2201
      %v2203 = vadd.f32 %v2199, %v2202
      %vm2204 = vweird.f32 %v2057
      %vm2205 = vweird.f32 %v2199
      %vm2206 = vmor %vm2204, %vm2205
      %v2207 = vsel %vm2206, %v2199, %v2203
      %v2208 = vand.u32 2147483647, %v2057
      %vm2209 = vcmp.eq.f32.partialorder %v2208, 8.507059e+37
      %v2210 = vand.u32 %v2057, 2147483648
      %v2211 = vor.u32 1.1754944e-38, %v2210
      %v2212 = vsel %vm2209, %v2211, %v2207
      %v2213 = vmul.f32 1.0, %v2212
      %v2214 = vrcp.pop %v2058
      %v2215 = vmul.f32 %v2058, %v2214
      %v2216 = vsub.f32 1.0, %v2215
      %v2217 = vmul.f32 %v2214, %v2216
      %v2218 = vadd.f32 %v2214, %v2217
      %vm2219 = vweird.f32 %v2058
      %vm2220 = vweird.f32 %v2214
      %vm2221 = vmor %vm2219, %vm2220
      %v2222 = vsel %vm2221, %v2214, %v2218
      %v2223 = vand.u32 2147483647, %v2058
      %vm2224 = vcmp.eq.f32.partialorder %v2223, 8.507059e+37
      %v2225 = vand.u32 %v2058, 2147483648
      %v2226 = vor.u32 1.1754944e-38, %v2225
      %v2227 = vsel %vm2224, %v2226, %v2222
      %v2228 = vmul.f32 1.0, %v2227
      %v2229 = vrcp.pop %v2059
      %v2230 = vmul.f32 %v2059, %v2229
      %v2231 = vsub.f32 1.0, %v2230
      %v2232 = vmul.f32 %v2229, %v2231
      %v2233 = vadd.f32 %v2229, %v2232
      %vm2234 = vweird.f32 %v2059
      %vm2235 = vweird.f32 %v2229
      %vm2236 = vmor %vm2234, %vm2235
      %v2237 = vsel %vm2236, %v2229, %v2233
      %v2238 = vand.u32 2147483647, %v2059
      %vm2239 = vcmp.eq.f32.partialorder %v2238, 8.507059e+37
      %v2240 = vand.u32 %v2059, 2147483648
      %v2241 = vor.u32 1.1754944e-38, %v2240
      %v2242 = vsel %vm2239, %v2241, %v2237
      %v2243 = vmul.f32 1.0, %v2242
      %v2244 = vrcp.pop %v2060
      %v2245 = vmul.f32 %v2060, %v2244
      %v2246 = vsub.f32 1.0, %v2245
      %v2247 = vmul.f32 %v2244, %v2246
      %v2248 = vadd.f32 %v2244, %v2247
      %vm2249 = vweird.f32 %v2060
      %vm2250 = vweird.f32 %v2244
      %vm2251 = vmor %vm2249, %vm2250
      %v2252 = vsel %vm2251, %v2244, %v2248
      %v2253 = vand.u32 2147483647, %v2060
      %vm2254 = vcmp.eq.f32.partialorder %v2253, 8.507059e+37
      %v2255 = vand.u32 %v2060, 2147483648
      %v2256 = vor.u32 1.1754944e-38, %v2255
      %v2257 = vsel %vm2254, %v2256, %v2252
      %v2258 = vmul.f32 1.0, %v2257
      %v2259 = vrcp.pop %v2061
      %v2260 = vmul.f32 %v2061, %v2259
      %v2261 = vsub.f32 1.0, %v2260
      %v2262 = vmul.f32 %v2259, %v2261
      %v2263 = vadd.f32 %v2259, %v2262
      %vm2264 = vweird.f32 %v2061
      %vm2265 = vweird.f32 %v2259
      %vm2266 = vmor %vm2264, %vm2265
      %v2267 = vsel %vm2266, %v2259, %v2263
      %v2268 = vand.u32 2147483647, %v2061
      %vm2269 = vcmp.eq.f32.partialorder %v2268, 8.507059e+37
      %v2270 = vand.u32 %v2061, 2147483648
      %v2271 = vor.u32 1.1754944e-38, %v2270
      %v2272 = vsel %vm2269, %v2271, %v2267
      %v2273 = vmul.f32 1.0, %v2272
      %v2274 = vrcp.pop %v2062
      %v2275 = vmul.f32 %v2062, %v2274
      %v2276 = vsub.f32 1.0, %v2275
      %v2277 = vmul.f32 %v2274, %v2276
      %v2278 = vadd.f32 %v2274, %v2277
      %vm2279 = vweird.f32 %v2062
      %vm2280 = vweird.f32 %v2274
      %vm2281 = vmor %vm2279, %vm2280
      %v2282 = vsel %vm2281, %v2274, %v2278
      %v2283 = vand.u32 2147483647, %v2062
      %vm2284 = vcmp.eq.f32.partialorder %v2283, 8.507059e+37
      %v2285 = vand.u32 %v2062, 2147483648
      %v2286 = vor.u32 1.1754944e-38, %v2285
      %v2287 = vsel %vm2284, %v2286, %v2282
      %v2288 = vmul.f32 1.0, %v2287
      %v2289 = vrcp.pop %v2063
      %v2290 = vmul.f32 %v2063, %v2289
      %v2291 = vsub.f32 1.0, %v2290
      %v2292 = vmul.f32 %v2289, %v2291
      %v2293 = vadd.f32 %v2289, %v2292
      %vm2294 = vweird.f32 %v2063
      %vm2295 = vweird.f32 %v2289
      %vm2296 = vmor %vm2294, %vm2295
      %v2297 = vsel %vm2296, %v2289, %v2293
      %v2298 = vand.u32 2147483647, %v2063
      %vm2299 = vcmp.eq.f32.partialorder %v2298, 8.507059e+37
      %v2300 = vand.u32 %v2063, 2147483648
      %v2301 = vor.u32 1.1754944e-38, %v2300
      %v2302 = vsel %vm2299, %v2301, %v2297
      %v2303 = vmul.f32 1.0, %v2302
      %2304 = vset.pattern.permute.xlu0 0
      %2305 = vperm.xlu0 %2304, %v755
      %v2306 = vpop.permute.xlu0 %2305
      %2308 = vset.pattern.permute.xlu0 0
      %2309 = vperm.xlu0 %2308, %v757
      %v2310 = vpop.permute.xlu0 %2309
      %2312 = vset.pattern.permute.xlu0 0
      %2313 = vperm.xlu0 %2312, %v760
      %v2314 = vpop.permute.xlu0 %2313
      %2316 = vset.pattern.permute.xlu0 0
      %2317 = vperm.xlu0 %2316, %v762
      %v2318 = vpop.permute.xlu0 %2317
      %2320 = vset.pattern.permute.xlu0 0
      %2321 = vperm.xlu0 %2320, %v765
      %v2322 = vpop.permute.xlu0 %2321
      %2324 = vset.pattern.permute.xlu0 0
      %2325 = vperm.xlu0 %2324, %v767
      %v2326 = vpop.permute.xlu0 %2325
      %2328 = vset.pattern.permute.xlu0 0
      %2329 = vperm.xlu0 %2328, %v770
      %v2330 = vpop.permute.xlu0 %2329
      %2332 = vset.pattern.permute.xlu0 0
      %2333 = vperm.xlu0 %2332, %v772
      %v2334 = vpop.permute.xlu0 %2333
      %2336 = vset.pattern.permute.xlu0 0
      %2337 = vperm.xlu0 %2336, %v775
      %v2338 = vpop.permute.xlu0 %2337
      %2340 = vset.pattern.permute.xlu0 0
      %2341 = vperm.xlu0 %2340, %v777
      %v2342 = vpop.permute.xlu0 %2341
      %2344 = vset.pattern.permute.xlu0 0
      %2345 = vperm.xlu0 %2344, %v780
      %v2346 = vpop.permute.xlu0 %2345
      %2348 = vset.pattern.permute.xlu0 0
      %2349 = vperm.xlu0 %2348, %v782
      %v2350 = vpop.permute.xlu0 %2349
      %2352 = vset.pattern.permute.xlu0 0
      %2353 = vperm.xlu0 %2352, %v785
      %v2354 = vpop.permute.xlu0 %2353
      %2356 = vset.pattern.permute.xlu0 0
      %2357 = vperm.xlu0 %2356, %v787
      %v2358 = vpop.permute.xlu0 %2357
      %2360 = vset.pattern.permute.xlu0 0
      %2361 = vperm.xlu0 %2360, %v790
      %v2362 = vpop.permute.xlu0 %2361
      %2364 = vset.pattern.permute.xlu0 0
      %2365 = vperm.xlu0 %2364, %v792
      %v2366 = vpop.permute.xlu0 %2365
      %v2369 = vperm.slane %v595, 0
      %v2370 = vperm.slane %v595, 1
      %v2373 = vadd.f32 %v2306, %v2369
      %v2374 = vadd.f32 %v2306, %v2370
      %v2375 = vadd.f32 %v2310, %v2369
      %v2376 = vadd.f32 %v2310, %v2370
      %v2377 = vadd.f32 %v2314, %v2369
      %v2378 = vadd.f32 %v2314, %v2370
      %v2379 = vadd.f32 %v2318, %v2369
      %v2380 = vadd.f32 %v2318, %v2370
      %v2381 = vadd.f32 %v2322, %v2369
      %v2382 = vadd.f32 %v2322, %v2370
      %v2383 = vadd.f32 %v2326, %v2369
      %v2384 = vadd.f32 %v2326, %v2370
      %v2385 = vadd.f32 %v2330, %v2369
      %v2386 = vadd.f32 %v2330, %v2370
      %v2387 = vadd.f32 %v2334, %v2369
      %v2388 = vadd.f32 %v2334, %v2370
      %v2389 = vadd.f32 %v2338, %v2369
      %v2390 = vadd.f32 %v2338, %v2370
      %v2391 = vadd.f32 %v2342, %v2369
      %v2392 = vadd.f32 %v2342, %v2370
      %v2393 = vadd.f32 %v2346, %v2369
      %v2394 = vadd.f32 %v2346, %v2370
      %v2395 = vadd.f32 %v2350, %v2369
      %v2396 = vadd.f32 %v2350, %v2370
      %v2397 = vadd.f32 %v2354, %v2369
      %v2398 = vadd.f32 %v2354, %v2370
      %v2399 = vadd.f32 %v2358, %v2369
      %v2400 = vadd.f32 %v2358, %v2370
      %v2401 = vadd.f32 %v2362, %v2369
      %v2402 = vadd.f32 %v2362, %v2370
      %v2403 = vadd.f32 %v2366, %v2369
      %v2404 = vadd.f32 %v2366, %v2370
      %vm2405 = vcmp.ge.f32.partialorder %v2373, 0.0
      %vm2406 = vcmp.ge.f32.partialorder %v2374, 0.0
      %vm2407 = vcmp.ge.f32.partialorder %v2375, 0.0
      %vm2408 = vcmp.ge.f32.partialorder %v2376, 0.0
      %vm2409 = vcmp.ge.f32.partialorder %v2377, 0.0
      %vm2410 = vcmp.ge.f32.partialorder %v2378, 0.0
      %vm2411 = vcmp.ge.f32.partialorder %v2379, 0.0
      %vm2412 = vcmp.ge.f32.partialorder %v2380, 0.0
      %vm2413 = vcmp.ge.f32.partialorder %v2381, 0.0
      %vm2414 = vcmp.ge.f32.partialorder %v2382, 0.0
      %vm2415 = vcmp.ge.f32.partialorder %v2383, 0.0
      %vm2416 = vcmp.ge.f32.partialorder %v2384, 0.0
      %vm2417 = vcmp.ge.f32.partialorder %v2385, 0.0
      %vm2418 = vcmp.ge.f32.partialorder %v2386, 0.0
      %vm2419 = vcmp.ge.f32.partialorder %v2387, 0.0
      %vm2420 = vcmp.ge.f32.partialorder %v2388, 0.0
      %vm2421 = vcmp.ge.f32.partialorder %v2389, 0.0
      %vm2422 = vcmp.ge.f32.partialorder %v2390, 0.0
      %vm2423 = vcmp.ge.f32.partialorder %v2391, 0.0
      %vm2424 = vcmp.ge.f32.partialorder %v2392, 0.0
      %vm2425 = vcmp.ge.f32.partialorder %v2393, 0.0
      %vm2426 = vcmp.ge.f32.partialorder %v2394, 0.0
      %vm2427 = vcmp.ge.f32.partialorder %v2395, 0.0
      %vm2428 = vcmp.ge.f32.partialorder %v2396, 0.0
      %vm2429 = vcmp.ge.f32.partialorder %v2397, 0.0
      %vm2430 = vcmp.ge.f32.partialorder %v2398, 0.0
      %vm2431 = vcmp.ge.f32.partialorder %v2399, 0.0
      %vm2432 = vcmp.ge.f32.partialorder %v2400, 0.0
      %vm2433 = vcmp.ge.f32.partialorder %v2401, 0.0
      %vm2434 = vcmp.ge.f32.partialorder %v2402, 0.0
      %vm2435 = vcmp.ge.f32.partialorder %v2403, 0.0
      %vm2436 = vcmp.ge.f32.partialorder %v2404, 0.0
      %v2437 = vmul.f32 %v2373, 0.22916667
      %v2438 = vmul.f32 %v2374, 0.22916667
      %v2439 = vmul.f32 %v2375, 0.22916667
      %v2440 = vmul.f32 %v2376, 0.22916667
      %v2441 = vmul.f32 %v2377, 0.22916667
      %v2442 = vmul.f32 %v2378, 0.22916667
      %v2443 = vmul.f32 %v2379, 0.22916667
      %v2444 = vmul.f32 %v2380, 0.22916667
      %v2445 = vmul.f32 %v2381, 0.22916667
      %v2446 = vmul.f32 %v2382, 0.22916667
      %v2447 = vmul.f32 %v2383, 0.22916667
      %v2448 = vmul.f32 %v2384, 0.22916667
      %v2449 = vmul.f32 %v2385, 0.22916667
      %v2450 = vmul.f32 %v2386, 0.22916667
      %v2451 = vmul.f32 %v2387, 0.22916667
      %v2452 = vmul.f32 %v2388, 0.22916667
      %v2453 = vmul.f32 %v2389, 0.22916667
      %v2454 = vmul.f32 %v2390, 0.22916667
      %v2455 = vmul.f32 %v2391, 0.22916667
      %v2456 = vmul.f32 %v2392, 0.22916667
      %v2457 = vmul.f32 %v2393, 0.22916667
      %v2458 = vmul.f32 %v2394, 0.22916667
      %v2459 = vmul.f32 %v2395, 0.22916667
      %v2460 = vmul.f32 %v2396, 0.22916667
      %v2461 = vmul.f32 %v2397, 0.22916667
      %v2462 = vmul.f32 %v2398, 0.22916667
      %v2463 = vmul.f32 %v2399, 0.22916667
      %v2464 = vmul.f32 %v2400, 0.22916667
      %v2465 = vmul.f32 %v2401, 0.22916667
      %v2466 = vmul.f32 %v2402, 0.22916667
      %v2467 = vmul.f32 %v2403, 0.22916667
      %v2468 = vmul.f32 %v2404, 0.22916667
      %v2469 = vsel %vm2405, %v2373, %v2437
      %v2470 = vsel %vm2406, %v2374, %v2438
      %v2471 = vsel %vm2407, %v2375, %v2439
      %v2472 = vsel %vm2408, %v2376, %v2440
      %v2473 = vsel %vm2409, %v2377, %v2441
      %v2474 = vsel %vm2410, %v2378, %v2442
      %v2475 = vsel %vm2411, %v2379, %v2443
      %v2476 = vsel %vm2412, %v2380, %v2444
      %v2477 = vsel %vm2413, %v2381, %v2445
      %v2478 = vsel %vm2414, %v2382, %v2446
      %v2479 = vsel %vm2415, %v2383, %v2447
      %v2480 = vsel %vm2416, %v2384, %v2448
      %v2481 = vsel %vm2417, %v2385, %v2449
      %v2482 = vsel %vm2418, %v2386, %v2450
      %v2483 = vsel %vm2419, %v2387, %v2451
      %v2484 = vsel %vm2420, %v2388, %v2452
      %v2485 = vsel %vm2421, %v2389, %v2453
      %v2486 = vsel %vm2422, %v2390, %v2454
      %v2487 = vsel %vm2423, %v2391, %v2455
      %v2488 = vsel %vm2424, %v2392, %v2456
      %v2489 = vsel %vm2425, %v2393, %v2457
      %v2490 = vsel %vm2426, %v2394, %v2458
      %v2491 = vsel %vm2427, %v2395, %v2459
      %v2492 = vsel %vm2428, %v2396, %v2460
      %v2493 = vsel %vm2429, %v2397, %v2461
      %v2494 = vsel %vm2430, %v2398, %v2462
      %v2495 = vsel %vm2431, %v2399, %v2463
      %v2496 = vsel %vm2432, %v2400, %v2464
      %v2497 = vsel %vm2433, %v2401, %v2465
      %v2498 = vsel %vm2434, %v2402, %v2466
      %v2499 = vsel %vm2435, %v2403, %v2467
      %v2500 = vsel %vm2436, %v2404, %v2468
      %v2501 = vsel %vm547, %v2469, -1e+30
      %v2502 = vsel %vm548, %v2470, -1e+30
      %v2503 = vsel %vm549, %v2471, -1e+30
      %v2504 = vsel %vm550, %v2472, -1e+30
      %v2505 = vsel %vm551, %v2473, -1e+30
      %v2506 = vsel %vm552, %v2474, -1e+30
      %v2507 = vsel %vm553, %v2475, -1e+30
      %v2508 = vsel %vm554, %v2476, -1e+30
      %v2509 = vsel %vm555, %v2477, -1e+30
      %v2510 = vsel %vm556, %v2478, -1e+30
      %v2511 = vsel %vm557, %v2479, -1e+30
      %v2512 = vsel %vm558, %v2480, -1e+30
      %v2513 = vsel %vm559, %v2481, -1e+30
      %v2514 = vsel %vm560, %v2482, -1e+30
      %v2515 = vsel %vm561, %v2483, -1e+30
      %v2516 = vsel %vm562, %v2484, -1e+30
      %v2517 = vsel %vm563, %v2485, -1e+30
      %v2518 = vsel %vm564, %v2486, -1e+30
      %v2519 = vsel %vm565, %v2487, -1e+30
      %v2520 = vsel %vm566, %v2488, -1e+30
      %v2521 = vsel %vm567, %v2489, -1e+30
      %v2522 = vsel %vm568, %v2490, -1e+30
      %v2523 = vsel %vm569, %v2491, -1e+30
      %v2524 = vsel %vm570, %v2492, -1e+30
      %v2525 = vsel %vm571, %v2493, -1e+30
      %v2526 = vsel %vm572, %v2494, -1e+30
      %v2527 = vsel %vm573, %v2495, -1e+30
      %v2528 = vsel %vm574, %v2496, -1e+30
      %v2529 = vsel %vm575, %v2497, -1e+30
      %v2530 = vsel %vm576, %v2498, -1e+30
      %v2531 = vsel %vm577, %v2499, -1e+30
      %v2532 = vsel %vm578, %v2500, -1e+30
      %v2533 = vmax.f32 %v2501, %v2502
      %2534 = vmax.xlane.f32.xlu0 %v2533
      %v2535 = vpop.xlane.xlu0 %2534
      %v2536 = vmax.f32 %v2503, %v2504
      %2537 = vmax.xlane.f32.xlu0 %v2536
      %v2538 = vpop.xlane.xlu0 %2537
      %v2539 = vmax.f32 %v2505, %v2506
      %2540 = vmax.xlane.f32.xlu0 %v2539
      %v2541 = vpop.xlane.xlu0 %2540
      %v2542 = vmax.f32 %v2507, %v2508
      %2543 = vmax.xlane.f32.xlu0 %v2542
      %v2544 = vpop.xlane.xlu0 %2543
      %v2545 = vmax.f32 %v2509, %v2510
      %2546 = vmax.xlane.f32.xlu0 %v2545
      %v2547 = vpop.xlane.xlu0 %2546
      %v2548 = vmax.f32 %v2511, %v2512
      %2549 = vmax.xlane.f32.xlu0 %v2548
      %v2550 = vpop.xlane.xlu0 %2549
      %v2551 = vmax.f32 %v2513, %v2514
      %2552 = vmax.xlane.f32.xlu0 %v2551
      %v2553 = vpop.xlane.xlu0 %2552
      %v2554 = vmax.f32 %v2515, %v2516
      %2555 = vmax.xlane.f32.xlu0 %v2554
      %v2556 = vpop.xlane.xlu0 %2555
      %v2557 = vmax.f32 %v2517, %v2518
      %2558 = vmax.xlane.f32.xlu0 %v2557
      %v2559 = vpop.xlane.xlu0 %2558
      %v2560 = vmax.f32 %v2519, %v2520
      %2561 = vmax.xlane.f32.xlu0 %v2560
      %v2562 = vpop.xlane.xlu0 %2561
      %v2563 = vmax.f32 %v2521, %v2522
      %2564 = vmax.xlane.f32.xlu0 %v2563
      %v2565 = vpop.xlane.xlu0 %2564
      %v2566 = vmax.f32 %v2523, %v2524
      %2567 = vmax.xlane.f32.xlu0 %v2566
      %v2568 = vpop.xlane.xlu0 %2567
      %v2569 = vmax.f32 %v2525, %v2526
      %2570 = vmax.xlane.f32.xlu0 %v2569
      %v2571 = vpop.xlane.xlu0 %2570
      %v2572 = vmax.f32 %v2527, %v2528
      %2573 = vmax.xlane.f32.xlu0 %v2572
      %v2574 = vpop.xlane.xlu0 %2573
      %v2575 = vmax.f32 %v2529, %v2530
      %2576 = vmax.xlane.f32.xlu0 %v2575
      %v2577 = vpop.xlane.xlu0 %2576
      %v2578 = vmax.f32 %v2531, %v2532
      %2579 = vmax.xlane.f32.xlu0 %v2578
      %v2580 = vpop.xlane.xlu0 %2579
      %v2581 = vsub.f32 %v2501, %v2535
      %v2582 = vsub.f32 %v2502, %v2535
      %v2583 = vsub.f32 %v2503, %v2538
      %v2584 = vsub.f32 %v2504, %v2538
      %v2585 = vsub.f32 %v2505, %v2541
      %v2586 = vsub.f32 %v2506, %v2541
      %v2587 = vsub.f32 %v2507, %v2544
      %v2588 = vsub.f32 %v2508, %v2544
      %v2589 = vsub.f32 %v2509, %v2547
      %v2590 = vsub.f32 %v2510, %v2547
      %v2591 = vsub.f32 %v2511, %v2550
      %v2592 = vsub.f32 %v2512, %v2550
      %v2593 = vsub.f32 %v2513, %v2553
      %v2594 = vsub.f32 %v2514, %v2553
      %v2595 = vsub.f32 %v2515, %v2556
      %v2596 = vsub.f32 %v2516, %v2556
      %v2597 = vsub.f32 %v2517, %v2559
      %v2598 = vsub.f32 %v2518, %v2559
      %v2599 = vsub.f32 %v2519, %v2562
      %v2600 = vsub.f32 %v2520, %v2562
      %v2601 = vsub.f32 %v2521, %v2565
      %v2602 = vsub.f32 %v2522, %v2565
      %v2603 = vsub.f32 %v2523, %v2568
      %v2604 = vsub.f32 %v2524, %v2568
      %v2605 = vsub.f32 %v2525, %v2571
      %v2606 = vsub.f32 %v2526, %v2571
      %v2607 = vsub.f32 %v2527, %v2574
      %v2608 = vsub.f32 %v2528, %v2574
      %v2609 = vsub.f32 %v2529, %v2577
      %v2610 = vsub.f32 %v2530, %v2577
      %v2611 = vsub.f32 %v2531, %v2580
      %v2612 = vsub.f32 %v2532, %v2580
      %v2613 = vmul.f32 %v2581, 1.442695
      %v2614 = vpow.pop %v2613
      %v2615 = vmul.f32 %v2582, 1.442695
      %v2616 = vpow.pop %v2615
      %v2617 = vmul.f32 %v2583, 1.442695
      %v2618 = vpow.pop %v2617
      %v2619 = vmul.f32 %v2584, 1.442695
      %v2620 = vpow.pop %v2619
      %v2621 = vmul.f32 %v2585, 1.442695
      %v2622 = vpow.pop %v2621
      %v2623 = vmul.f32 %v2586, 1.442695
      %v2624 = vpow.pop %v2623
      %v2625 = vmul.f32 %v2587, 1.442695
      %v2626 = vpow.pop %v2625
      %v2627 = vmul.f32 %v2588, 1.442695
      %v2628 = vpow.pop %v2627
      %v2629 = vmul.f32 %v2589, 1.442695
      %v2630 = vpow.pop %v2629
      %v2631 = vmul.f32 %v2590, 1.442695
      %v2632 = vpow.pop %v2631
      %v2633 = vmul.f32 %v2591, 1.442695
      %v2634 = vpow.pop %v2633
      %v2635 = vmul.f32 %v2592, 1.442695
      %v2636 = vpow.pop %v2635
      %v2637 = vmul.f32 %v2593, 1.442695
      %v2638 = vpow.pop %v2637
      %v2639 = vmul.f32 %v2594, 1.442695
      %v2640 = vpow.pop %v2639
      %v2641 = vmul.f32 %v2595, 1.442695
      %v2642 = vpow.pop %v2641
      %v2643 = vmul.f32 %v2596, 1.442695
      %v2644 = vpow.pop %v2643
      %v2645 = vmul.f32 %v2597, 1.442695
      %v2646 = vpow.pop %v2645
      %v2647 = vmul.f32 %v2598, 1.442695
      %v2648 = vpow.pop %v2647
      %v2649 = vmul.f32 %v2599, 1.442695
      %v2650 = vpow.pop %v2649
      %v2651 = vmul.f32 %v2600, 1.442695
      %v2652 = vpow.pop %v2651
      %v2653 = vmul.f32 %v2601, 1.442695
      %v2654 = vpow.pop %v2653
      %v2655 = vmul.f32 %v2602, 1.442695
      %v2656 = vpow.pop %v2655
      %v2657 = vmul.f32 %v2603, 1.442695
      %v2658 = vpow.pop %v2657
      %v2659 = vmul.f32 %v2604, 1.442695
      %v2660 = vpow.pop %v2659
      %v2661 = vmul.f32 %v2605, 1.442695
      %v2662 = vpow.pop %v2661
      %v2663 = vmul.f32 %v2606, 1.442695
      %v2664 = vpow.pop %v2663
      %v2665 = vmul.f32 %v2607, 1.442695
      %v2666 = vpow.pop %v2665
      %v2667 = vmul.f32 %v2608, 1.442695
      %v2668 = vpow.pop %v2667
      %v2669 = vmul.f32 %v2609, 1.442695
      %v2670 = vpow.pop %v2669
      %v2671 = vmul.f32 %v2610, 1.442695
      %v2672 = vpow.pop %v2671
      %v2673 = vmul.f32 %v2611, 1.442695
      %v2674 = vpow.pop %v2673
      %v2675 = vmul.f32 %v2612, 1.442695
      %v2676 = vpow.pop %v2675
      %v2677 = vsel %vm547, %v2614, 0.0
      %v2678 = vsel %vm548, %v2616, 0.0
      %v2679 = vsel %vm549, %v2618, 0.0
      %v2680 = vsel %vm550, %v2620, 0.0
      %v2681 = vsel %vm551, %v2622, 0.0
      %v2682 = vsel %vm552, %v2624, 0.0
      %v2683 = vsel %vm553, %v2626, 0.0
      %v2684 = vsel %vm554, %v2628, 0.0
      %v2685 = vsel %vm555, %v2630, 0.0
      %v2686 = vsel %vm556, %v2632, 0.0
      %v2687 = vsel %vm557, %v2634, 0.0
      %v2688 = vsel %vm558, %v2636, 0.0
      %v2689 = vsel %vm559, %v2638, 0.0
      %v2690 = vsel %vm560, %v2640, 0.0
      %v2691 = vsel %vm561, %v2642, 0.0
      %v2692 = vsel %vm562, %v2644, 0.0
      %v2693 = vsel %vm563, %v2646, 0.0
      %v2694 = vsel %vm564, %v2648, 0.0
      %v2695 = vsel %vm565, %v2650, 0.0
      %v2696 = vsel %vm566, %v2652, 0.0
      %v2697 = vsel %vm567, %v2654, 0.0
      %v2698 = vsel %vm568, %v2656, 0.0
      %v2699 = vsel %vm569, %v2658, 0.0
      %v2700 = vsel %vm570, %v2660, 0.0
      %v2701 = vsel %vm571, %v2662, 0.0
      %v2702 = vsel %vm572, %v2664, 0.0
      %v2703 = vsel %vm573, %v2666, 0.0
      %v2704 = vsel %vm574, %v2668, 0.0
      %v2705 = vsel %vm575, %v2670, 0.0
      %v2706 = vsel %vm576, %v2672, 0.0
      %v2707 = vsel %vm577, %v2674, 0.0
      %v2708 = vsel %vm578, %v2676, 0.0
      %v2709 = vadd.f32 %v2677, %v2678
      %2710 = vadd.xlane.f32.xlu0 %v2709
      %v2711 = vpop.xlane.xlu0 %2710
      %v2712 = vadd.f32 %v2679, %v2680
      %2713 = vadd.xlane.f32.xlu0 %v2712
      %v2714 = vpop.xlane.xlu0 %2713
      %v2715 = vadd.f32 %v2681, %v2682
      %2716 = vadd.xlane.f32.xlu0 %v2715
      %v2717 = vpop.xlane.xlu0 %2716
      %v2718 = vadd.f32 %v2683, %v2684
      %2719 = vadd.xlane.f32.xlu0 %v2718
      %v2720 = vpop.xlane.xlu0 %2719
      %v2721 = vadd.f32 %v2685, %v2686
      %2722 = vadd.xlane.f32.xlu0 %v2721
      %v2723 = vpop.xlane.xlu0 %2722
      %v2724 = vadd.f32 %v2687, %v2688
      %2725 = vadd.xlane.f32.xlu0 %v2724
      %v2726 = vpop.xlane.xlu0 %2725
      %v2727 = vadd.f32 %v2689, %v2690
      %2728 = vadd.xlane.f32.xlu0 %v2727
      %v2729 = vpop.xlane.xlu0 %2728
      %v2730 = vadd.f32 %v2691, %v2692
      %2731 = vadd.xlane.f32.xlu0 %v2730
      %v2732 = vpop.xlane.xlu0 %2731
      %v2733 = vadd.f32 %v2693, %v2694
      %2734 = vadd.xlane.f32.xlu0 %v2733
      %v2735 = vpop.xlane.xlu0 %2734
      %v2736 = vadd.f32 %v2695, %v2696
      %2737 = vadd.xlane.f32.xlu0 %v2736
      %v2738 = vpop.xlane.xlu0 %2737
      %v2739 = vadd.f32 %v2697, %v2698
      %2740 = vadd.xlane.f32.xlu0 %v2739
      %v2741 = vpop.xlane.xlu0 %2740
      %v2742 = vadd.f32 %v2699, %v2700
      %2743 = vadd.xlane.f32.xlu0 %v2742
      %v2744 = vpop.xlane.xlu0 %2743
      %v2745 = vadd.f32 %v2701, %v2702
      %2746 = vadd.xlane.f32.xlu0 %v2745
      %v2747 = vpop.xlane.xlu0 %2746
      %v2748 = vadd.f32 %v2703, %v2704
      %2749 = vadd.xlane.f32.xlu0 %v2748
      %v2750 = vpop.xlane.xlu0 %2749
      %v2751 = vadd.f32 %v2705, %v2706
      %2752 = vadd.xlane.f32.xlu0 %v2751
      %v2753 = vpop.xlane.xlu0 %2752
      %v2754 = vadd.f32 %v2707, %v2708
      %2755 = vadd.xlane.f32.xlu0 %v2754
      %v2756 = vpop.xlane.xlu0 %2755
      %v2757 = vmax.f32 %v2711, 1e-30
      %v2758 = vmax.f32 %v2714, 1e-30
      %v2759 = vmax.f32 %v2717, 1e-30
      %v2760 = vmax.f32 %v2720, 1e-30
      %v2761 = vmax.f32 %v2723, 1e-30
      %v2762 = vmax.f32 %v2726, 1e-30
      %v2763 = vmax.f32 %v2729, 1e-30
      %v2764 = vmax.f32 %v2732, 1e-30
      %v2765 = vmax.f32 %v2735, 1e-30
      %v2766 = vmax.f32 %v2738, 1e-30
      %v2767 = vmax.f32 %v2741, 1e-30
      %v2768 = vmax.f32 %v2744, 1e-30
      %v2769 = vmax.f32 %v2747, 1e-30
      %v2770 = vmax.f32 %v2750, 1e-30
      %v2771 = vmax.f32 %v2753, 1e-30
      %v2772 = vmax.f32 %v2756, 1e-30
      %v2773 = vrcp.pop %v2757
      %v2774 = vrcp.pop %v2758
      %v2775 = vrcp.pop %v2759
      %v2776 = vrcp.pop %v2760
      %v2777 = vrcp.pop %v2761
      %v2778 = vrcp.pop %v2762
      %v2779 = vrcp.pop %v2763
      %v2780 = vrcp.pop %v2764
      %v2781 = vrcp.pop %v2765
      %v2782 = vrcp.pop %v2766
      %v2783 = vrcp.pop %v2767
      %v2784 = vrcp.pop %v2768
      %v2785 = vrcp.pop %v2769
      %v2786 = vrcp.pop %v2770
      %v2787 = vrcp.pop %v2771
      %v2788 = vrcp.pop %v2772
      %v2789 = vmul.f32 %v2677, %v2773
      %v2790 = vmul.f32 %v2678, %v2773
      %v2791 = vmul.f32 %v2679, %v2774
      %v2792 = vmul.f32 %v2680, %v2774
      %v2793 = vmul.f32 %v2681, %v2775
      %v2794 = vmul.f32 %v2682, %v2775
      %v2795 = vmul.f32 %v2683, %v2776
      %v2796 = vmul.f32 %v2684, %v2776
      %v2797 = vmul.f32 %v2685, %v2777
      %v2798 = vmul.f32 %v2686, %v2777
      %v2799 = vmul.f32 %v2687, %v2778
      %v2800 = vmul.f32 %v2688, %v2778
      %v2801 = vmul.f32 %v2689, %v2779
      %v2802 = vmul.f32 %v2690, %v2779
      %v2803 = vmul.f32 %v2691, %v2780
      %v2804 = vmul.f32 %v2692, %v2780
      %v2805 = vmul.f32 %v2693, %v2781
      %v2806 = vmul.f32 %v2694, %v2781
      %v2807 = vmul.f32 %v2695, %v2782
      %v2808 = vmul.f32 %v2696, %v2782
      %v2809 = vmul.f32 %v2697, %v2783
      %v2810 = vmul.f32 %v2698, %v2783
      %v2811 = vmul.f32 %v2699, %v2784
      %v2812 = vmul.f32 %v2700, %v2784
      %v2813 = vmul.f32 %v2701, %v2785
      %v2814 = vmul.f32 %v2702, %v2785
      %v2815 = vmul.f32 %v2703, %v2786
      %v2816 = vmul.f32 %v2704, %v2786
      %v2817 = vmul.f32 %v2705, %v2787
      %v2818 = vmul.f32 %v2706, %v2787
      %v2819 = vmul.f32 %v2707, %v2788
      %v2820 = vmul.f32 %v2708, %v2788
      %v2821 = vmul.f32 %v2789, %v475
      %v2822 = vmul.f32 %v2790, %v476
      %v2823 = vmul.f32 %v2791, %v477
      %v2824 = vmul.f32 %v2792, %v478
      %v2825 = vmul.f32 %v2793, %v479
      %v2826 = vmul.f32 %v2794, %v480
      %v2827 = vmul.f32 %v2795, %v481
      %v2828 = vmul.f32 %v2796, %v482
      %v2829 = vmul.f32 %v2797, %v483
      %v2830 = vmul.f32 %v2798, %v484
      %v2831 = vmul.f32 %v2799, %v485
      %v2832 = vmul.f32 %v2800, %v486
      %v2833 = vmul.f32 %v2801, %v487
      %v2834 = vmul.f32 %v2802, %v488
      %v2835 = vmul.f32 %v2803, %v489
      %v2836 = vmul.f32 %v2804, %v490
      %v2837 = vmul.f32 %v2805, %v491
      %v2838 = vmul.f32 %v2806, %v492
      %v2839 = vmul.f32 %v2807, %v493
      %v2840 = vmul.f32 %v2808, %v494
      %v2841 = vmul.f32 %v2809, %v495
      %v2842 = vmul.f32 %v2810, %v496
      %v2843 = vmul.f32 %v2811, %v497
      %v2844 = vmul.f32 %v2812, %v498
      %v2845 = vmul.f32 %v2813, %v499
      %v2846 = vmul.f32 %v2814, %v500
      %v2847 = vmul.f32 %v2815, %v501
      %v2848 = vmul.f32 %v2816, %v502
      %v2849 = vmul.f32 %v2817, %v503
      %v2850 = vmul.f32 %v2818, %v504
      %v2851 = vmul.f32 %v2819, %v505
      %v2852 = vmul.f32 %v2820, %v506
      %vm2853 = vcmp.eq.s32.totalorder %v515, 0
      %vm2854 = vcmp.eq.s32.totalorder %v516, 0
      %vm2855 = vcmp.eq.s32.totalorder %v517, 0
      %vm2856 = vcmp.eq.s32.totalorder %v518, 0
      %vm2857 = vcmp.eq.s32.totalorder %v519, 0
      %vm2858 = vcmp.eq.s32.totalorder %v520, 0
      %vm2859 = vcmp.eq.s32.totalorder %v521, 0
      %vm2860 = vcmp.eq.s32.totalorder %v522, 0
      %vm2861 = vcmp.eq.s32.totalorder %v523, 0
      %vm2862 = vcmp.eq.s32.totalorder %v524, 0
      %vm2863 = vcmp.eq.s32.totalorder %v525, 0
      %vm2864 = vcmp.eq.s32.totalorder %v526, 0
      %vm2865 = vcmp.eq.s32.totalorder %v527, 0
      %vm2866 = vcmp.eq.s32.totalorder %v528, 0
      %vm2867 = vcmp.eq.s32.totalorder %v529, 0
      %vm2868 = vcmp.eq.s32.totalorder %v530, 0
      %vm2869 = vcmp.eq.s32.totalorder %v531, 0
      %vm2870 = vcmp.eq.s32.totalorder %v532, 0
      %vm2871 = vcmp.eq.s32.totalorder %v533, 0
      %vm2872 = vcmp.eq.s32.totalorder %v534, 0
      %vm2873 = vcmp.eq.s32.totalorder %v535, 0
      %vm2874 = vcmp.eq.s32.totalorder %v536, 0
      %vm2875 = vcmp.eq.s32.totalorder %v537, 0
      %vm2876 = vcmp.eq.s32.totalorder %v538, 0
      %vm2877 = vcmp.eq.s32.totalorder %v539, 0
      %vm2878 = vcmp.eq.s32.totalorder %v540, 0
      %vm2879 = vcmp.eq.s32.totalorder %v541, 0
      %vm2880 = vcmp.eq.s32.totalorder %v542, 0
      %vm2881 = vcmp.eq.s32.totalorder %v543, 0
      %vm2882 = vcmp.eq.s32.totalorder %v544, 0
      %vm2883 = vcmp.eq.s32.totalorder %v545, 0
      %vm2884 = vcmp.eq.s32.totalorder %v546, 0
      %v2885 = vsel %vm2853, %v2821, 0.0
      %v2886 = vsel %vm2854, %v2822, 0.0
      %v2887 = vsel %vm2855, %v2823, 0.0
      %v2888 = vsel %vm2856, %v2824, 0.0
      %v2889 = vsel %vm2857, %v2825, 0.0
      %v2890 = vsel %vm2858, %v2826, 0.0
      %v2891 = vsel %vm2859, %v2827, 0.0
      %v2892 = vsel %vm2860, %v2828, 0.0
      %v2893 = vsel %vm2861, %v2829, 0.0
      %v2894 = vsel %vm2862, %v2830, 0.0
      %v2895 = vsel %vm2863, %v2831, 0.0
      %v2896 = vsel %vm2864, %v2832, 0.0
      %v2897 = vsel %vm2865, %v2833, 0.0
      %v2898 = vsel %vm2866, %v2834, 0.0
      %v2899 = vsel %vm2867, %v2835, 0.0
      %v2900 = vsel %vm2868, %v2836, 0.0
      %v2901 = vsel %vm2869, %v2837, 0.0
      %v2902 = vsel %vm2870, %v2838, 0.0
      %v2903 = vsel %vm2871, %v2839, 0.0
      %v2904 = vsel %vm2872, %v2840, 0.0
      %v2905 = vsel %vm2873, %v2841, 0.0
      %v2906 = vsel %vm2874, %v2842, 0.0
      %v2907 = vsel %vm2875, %v2843, 0.0
      %v2908 = vsel %vm2876, %v2844, 0.0
      %v2909 = vsel %vm2877, %v2845, 0.0
      %v2910 = vsel %vm2878, %v2846, 0.0
      %v2911 = vsel %vm2879, %v2847, 0.0
      %v2912 = vsel %vm2880, %v2848, 0.0
      %v2913 = vsel %vm2881, %v2849, 0.0
      %v2914 = vsel %vm2882, %v2850, 0.0
      %v2915 = vsel %vm2883, %v2851, 0.0
      %v2916 = vsel %vm2884, %v2852, 0.0
      %v2917 = vpack.c.bf16 %v2887, %v2885
      %v2918 = vpack.c.bf16 %v2888, %v2886
      %v2919 = vpack.c.bf16 %v2891, %v2889
      %v2920 = vpack.c.bf16 %v2892, %v2890
      %v2921 = vpack.c.bf16 %v2895, %v2893
      %v2922 = vpack.c.bf16 %v2896, %v2894
      %v2923 = vpack.c.bf16 %v2899, %v2897
      %v2924 = vpack.c.bf16 %v2900, %v2898
      %v2925 = vpack.c.bf16 %v2903, %v2901
      %v2926 = vpack.c.bf16 %v2904, %v2902
      %v2927 = vpack.c.bf16 %v2907, %v2905
      %v2928 = vpack.c.bf16 %v2908, %v2906
      %v2929 = vpack.c.bf16 %v2911, %v2909
      %v2930 = vpack.c.bf16 %v2912, %v2910
      %v2931 = vpack.c.bf16 %v2915, %v2913
      %v2932 = vpack.c.bf16 %v2916, %v2914
      %v2933 = vld [vmem:[%s5] sm:$0xf]
      %v2934 = vld [vmem:[%s5 + $0x4] sm:$0xf]
      %v2935 = vld [vmem:[%s5 + $0x8] sm:$0xf]
      %v2936 = vld [vmem:[%s5 + $0xc] sm:$0xf]
      %v2937 = vld [vmem:[%s5 + $0x10] sm:$0xf]
      %v2938 = vld [vmem:[%s5 + $0x14] sm:$0xf]
      %v2939 = vld [vmem:[%s5 + $0x18] sm:$0xf]
      %v2940 = vld [vmem:[%s5 + $0x1c] sm:$0xf]
      %v2941 = vld [vmem:[%s5 + $0x20] sm:$0xf]
      %v2942 = vld [vmem:[%s5 + $0x24] sm:$0xf]
      %v2943 = vld [vmem:[%s5 + $0x28] sm:$0xf]
      %v2944 = vld [vmem:[%s5 + $0x2c] sm:$0xf]
      %v2945 = vld [vmem:[%s5 + $0x30] sm:$0xf]
      %v2946 = vld [vmem:[%s5 + $0x34] sm:$0xf]
      %v2947 = vld [vmem:[%s5 + $0x38] sm:$0xf]
      %v2948 = vld [vmem:[%s5 + $0x3c] sm:$0xf]
      %v2949 = vld [vmem:[%s5 + $0x40] sm:$0xf]
      %v2950 = vld [vmem:[%s5 + $0x44] sm:$0xf]
      %v2951 = vld [vmem:[%s5 + $0x48] sm:$0xf]
      %v2952 = vld [vmem:[%s5 + $0x4c] sm:$0xf]
      %v2953 = vld [vmem:[%s5 + $0x50] sm:$0xf]
      %v2954 = vld [vmem:[%s5 + $0x54] sm:$0xf]
      %v2955 = vld [vmem:[%s5 + $0x58] sm:$0xf]
      %v2956 = vld [vmem:[%s5 + $0x5c] sm:$0xf]
      %v2957 = vld [vmem:[%s5 + $0x60] sm:$0xf]
      %v2958 = vld [vmem:[%s5 + $0x64] sm:$0xf]
      %v2959 = vld [vmem:[%s5 + $0x68] sm:$0xf]
      %v2960 = vld [vmem:[%s5 + $0x6c] sm:$0xf]
      %v2961 = vld [vmem:[%s5 + $0x70] sm:$0xf]
      %v2962 = vld [vmem:[%s5 + $0x74] sm:$0xf]
      %v2963 = vld [vmem:[%s5 + $0x78] sm:$0xf]
      %v2964 = vld [vmem:[%s5 + $0x7c] sm:$0xf]
      %vm2965 = vcmp.eq.s32.totalorder %v515, 1
      %vm2966 = vcmp.eq.s32.totalorder %v516, 1
      %vm2967 = vcmp.eq.s32.totalorder %v517, 1
      %vm2968 = vcmp.eq.s32.totalorder %v518, 1
      %vm2969 = vcmp.eq.s32.totalorder %v519, 1
      %vm2970 = vcmp.eq.s32.totalorder %v520, 1
      %vm2971 = vcmp.eq.s32.totalorder %v521, 1
      %vm2972 = vcmp.eq.s32.totalorder %v522, 1
      %vm2973 = vcmp.eq.s32.totalorder %v523, 1
      %vm2974 = vcmp.eq.s32.totalorder %v524, 1
      %vm2975 = vcmp.eq.s32.totalorder %v525, 1
      %vm2976 = vcmp.eq.s32.totalorder %v526, 1
      %vm2977 = vcmp.eq.s32.totalorder %v527, 1
      %vm2978 = vcmp.eq.s32.totalorder %v528, 1
      %vm2979 = vcmp.eq.s32.totalorder %v529, 1
      %vm2980 = vcmp.eq.s32.totalorder %v530, 1
      %vm2981 = vcmp.eq.s32.totalorder %v531, 1
      %vm2982 = vcmp.eq.s32.totalorder %v532, 1
      %vm2983 = vcmp.eq.s32.totalorder %v533, 1
      %vm2984 = vcmp.eq.s32.totalorder %v534, 1
      %vm2985 = vcmp.eq.s32.totalorder %v535, 1
      %vm2986 = vcmp.eq.s32.totalorder %v536, 1
      %vm2987 = vcmp.eq.s32.totalorder %v537, 1
      %vm2988 = vcmp.eq.s32.totalorder %v538, 1
      %vm2989 = vcmp.eq.s32.totalorder %v539, 1
      %vm2990 = vcmp.eq.s32.totalorder %v540, 1
      %vm2991 = vcmp.eq.s32.totalorder %v541, 1
      %vm2992 = vcmp.eq.s32.totalorder %v542, 1
      %vm2993 = vcmp.eq.s32.totalorder %v543, 1
      %vm2994 = vcmp.eq.s32.totalorder %v544, 1
      %vm2995 = vcmp.eq.s32.totalorder %v545, 1
      %vm2996 = vcmp.eq.s32.totalorder %v546, 1
      %v2997 = vsel %vm2965, %v2821, 0.0
      %v2998 = vsel %vm2966, %v2822, 0.0
      %v2999 = vsel %vm2967, %v2823, 0.0
      %v3000 = vsel %vm2968, %v2824, 0.0
      %v3001 = vsel %vm2969, %v2825, 0.0
      %v3002 = vsel %vm2970, %v2826, 0.0
      %v3003 = vsel %vm2971, %v2827, 0.0
      %v3004 = vsel %vm2972, %v2828, 0.0
      %v3005 = vsel %vm2973, %v2829, 0.0
      %v3006 = vsel %vm2974, %v2830, 0.0
      %v3007 = vsel %vm2975, %v2831, 0.0
      %v3008 = vsel %vm2976, %v2832, 0.0
      %v3009 = vsel %vm2977, %v2833, 0.0
      %v3010 = vsel %vm2978, %v2834, 0.0
      %v3011 = vsel %vm2979, %v2835, 0.0
      %v3012 = vsel %vm2980, %v2836, 0.0
      %v3013 = vsel %vm2981, %v2837, 0.0
      %v3014 = vsel %vm2982, %v2838, 0.0
      %v3015 = vsel %vm2983, %v2839, 0.0
      %v3016 = vsel %vm2984, %v2840, 0.0
      %v3017 = vsel %vm2985, %v2841, 0.0
      %v3018 = vsel %vm2986, %v2842, 0.0
      %v3019 = vsel %vm2987, %v2843, 0.0
      %v3020 = vsel %vm2988, %v2844, 0.0
      %v3021 = vsel %vm2989, %v2845, 0.0
      %v3022 = vsel %vm2990, %v2846, 0.0
      %v3023 = vsel %vm2991, %v2847, 0.0
      %v3024 = vsel %vm2992, %v2848, 0.0
      %v3025 = vsel %vm2993, %v2849, 0.0
      %v3026 = vsel %vm2994, %v2850, 0.0
      %v3027 = vsel %vm2995, %v2851, 0.0
      %v3028 = vsel %vm2996, %v2852, 0.0
      %v3029 = vpack.c.bf16 %v2999, %v2997
      %v3030 = vpack.c.bf16 %v3000, %v2998
      %v3031 = vpack.c.bf16 %v3003, %v3001
      %v3032 = vpack.c.bf16 %v3004, %v3002
      %v3033 = vpack.c.bf16 %v3007, %v3005
      %v3034 = vpack.c.bf16 %v3008, %v3006
      %v3035 = vpack.c.bf16 %v3011, %v3009
      %v3036 = vpack.c.bf16 %v3012, %v3010
      %v3037 = vpack.c.bf16 %v3015, %v3013
      %v3038 = vpack.c.bf16 %v3016, %v3014
      %v3039 = vpack.c.bf16 %v3019, %v3017
      %v3040 = vpack.c.bf16 %v3020, %v3018
      %v3041 = vpack.c.bf16 %v3023, %v3021
      %v3042 = vpack.c.bf16 %v3024, %v3022
      %v3043 = vpack.c.bf16 %v3027, %v3025
      %v3044 = vpack.c.bf16 %v3028, %v3026
      %v3045 = vld [vmem:[%s5 + $0x80] sm:$0xf]
      %v3046 = vld [vmem:[%s5 + $0x84] sm:$0xf]
      %v3047 = vld [vmem:[%s5 + $0x88] sm:$0xf]
      %v3048 = vld [vmem:[%s5 + $0x8c] sm:$0xf]
      %v3049 = vld [vmem:[%s5 + $0x90] sm:$0xf]
      %v3050 = vld [vmem:[%s5 + $0x94] sm:$0xf]
      %v3051 = vld [vmem:[%s5 + $0x98] sm:$0xf]
      %v3052 = vld [vmem:[%s5 + $0x9c] sm:$0xf]
      %v3053 = vld [vmem:[%s5 + $0xa0] sm:$0xf]
      %v3054 = vld [vmem:[%s5 + $0xa4] sm:$0xf]
      %v3055 = vld [vmem:[%s5 + $0xa8] sm:$0xf]
      %v3056 = vld [vmem:[%s5 + $0xac] sm:$0xf]
      %v3057 = vld [vmem:[%s5 + $0xb0] sm:$0xf]
      %v3058 = vld [vmem:[%s5 + $0xb4] sm:$0xf]
      %v3059 = vld [vmem:[%s5 + $0xb8] sm:$0xf]
      %v3060 = vld [vmem:[%s5 + $0xbc] sm:$0xf]
      %v3061 = vld [vmem:[%s5 + $0xc0] sm:$0xf]
      %v3062 = vld [vmem:[%s5 + $0xc4] sm:$0xf]
      %v3063 = vld [vmem:[%s5 + $0xc8] sm:$0xf]
      %v3064 = vld [vmem:[%s5 + $0xcc] sm:$0xf]
      %v3065 = vld [vmem:[%s5 + $0xd0] sm:$0xf]
      %v3066 = vld [vmem:[%s5 + $0xd4] sm:$0xf]
      %v3067 = vld [vmem:[%s5 + $0xd8] sm:$0xf]
      %v3068 = vld [vmem:[%s5 + $0xdc] sm:$0xf]
      %v3069 = vld [vmem:[%s5 + $0xe0] sm:$0xf]
      %v3070 = vld [vmem:[%s5 + $0xe4] sm:$0xf]
      %v3071 = vld [vmem:[%s5 + $0xe8] sm:$0xf]
      %v3072 = vld [vmem:[%s5 + $0xec] sm:$0xf]
      %v3073 = vld [vmem:[%s5 + $0xf0] sm:$0xf]
      %v3074 = vld [vmem:[%s5 + $0xf4] sm:$0xf]
      %v3075 = vld [vmem:[%s5 + $0xf8] sm:$0xf]
      %v3076 = vld [vmem:[%s5 + $0xfc] sm:$0xf]
      %v3109 = vunpack.c.l.b16 %v3045
      %v3110 = vunpack.c.l.b16 %v3046
      %v3111 = vunpack.c.l.b16 %v3047
      %v3112 = vunpack.c.l.b16 %v3048
      %v3113 = vunpack.c.l.b16 %v3049
      %v3114 = vunpack.c.l.b16 %v3050
      %v3115 = vunpack.c.l.b16 %v3051
      %v3116 = vunpack.c.l.b16 %v3052
      %v3117 = vunpack.c.l.b16 %v3053
      %v3118 = vunpack.c.l.b16 %v3054
      %v3119 = vunpack.c.l.b16 %v3055
      %v3120 = vunpack.c.l.b16 %v3056
      %v3121 = vunpack.c.l.b16 %v3057
      %v3122 = vunpack.c.l.b16 %v3058
      %v3123 = vunpack.c.l.b16 %v3059
      %v3124 = vunpack.c.l.b16 %v3060
      %v3125 = vunpack.c.l.b16 %v3061
      %v3126 = vunpack.c.l.b16 %v3062
      %v3127 = vunpack.c.l.b16 %v3063
      %v3128 = vunpack.c.l.b16 %v3064
      %v3129 = vunpack.c.l.b16 %v3065
      %v3130 = vunpack.c.l.b16 %v3066
      %v3131 = vunpack.c.l.b16 %v3067
      %v3132 = vunpack.c.l.b16 %v3068
      %v3133 = vunpack.c.l.b16 %v3069
      %v3134 = vunpack.c.l.b16 %v3070
      %v3135 = vunpack.c.l.b16 %v3071
      %v3136 = vunpack.c.l.b16 %v3072
      %v3137 = vunpack.c.l.b16 %v3073
      %v3138 = vunpack.c.l.b16 %v3074
      %v3139 = vunpack.c.l.b16 %v3075
      %v3140 = vunpack.c.l.b16 %v3076
      %v3141 = vpack.c.b16 %v3110, %v3109
      %v3142 = vpack.c.b16 %v3112, %v3111
      %v3143 = vpack.c.b16 %v3114, %v3113
      %v3144 = vpack.c.b16 %v3116, %v3115
      %v3145 = vpack.c.b16 %v3118, %v3117
      %v3146 = vpack.c.b16 %v3120, %v3119
      %v3147 = vpack.c.b16 %v3122, %v3121
      %v3148 = vpack.c.b16 %v3124, %v3123
      %v3149 = vpack.c.b16 %v3126, %v3125
      %v3150 = vpack.c.b16 %v3128, %v3127
      %v3151 = vpack.c.b16 %v3130, %v3129
      %v3152 = vpack.c.b16 %v3132, %v3131
      %v3153 = vpack.c.b16 %v3134, %v3133
      %v3154 = vpack.c.b16 %v3136, %v3135
      %v3155 = vpack.c.b16 %v3138, %v3137
      %v3156 = vpack.c.b16 %v3140, %v3139
      %3173 = vmatpush.bf16.msra.mxu0 %v3148
      %3174 = vmatpush.bf16.msra.mxu0 %v3147
      %3175 = vmatpush.bf16.msra.mxu0 %v3146
      %3176 = vmatpush.bf16.msra.mxu0 %v3145
      %3177 = vmatpush.bf16.msra.mxu0 %v3144
      %3178 = vmatpush.bf16.msra.mxu0 %v3143
      %3179 = vmatpush.bf16.msra.mxu0 %v3142
      %3180 = vmatpush.bf16.msra.mxu0 %v3141
      %3181 = vmatmul.bf16.gmra.mxu0 %v3029
      %v3182 = vpop.f32.mrf.mxu0
      %v3183 = vadd.f32 0.0, %v3182
      %v3184 = vpop.f32.mrf.mxu0
      %v3185 = vadd.f32 0.0, %v3184
      %3186 = vmatmul.bf16.gmra.mxu0 %v3031
      %v3187 = vpop.f32.mrf.mxu0
      %v3188 = vadd.f32 0.0, %v3187
      %v3189 = vpop.f32.mrf.mxu0
      %v3190 = vadd.f32 0.0, %v3189
      %3191 = vmatmul.bf16.gmra.mxu0 %v3033
      %v3192 = vpop.f32.mrf.mxu0
      %v3193 = vadd.f32 0.0, %v3192
      %v3194 = vpop.f32.mrf.mxu0
      %v3195 = vadd.f32 0.0, %v3194
      %3196 = vmatmul.bf16.gmra.mxu0 %v3035
      %v3197 = vpop.f32.mrf.mxu0
      %v3198 = vadd.f32 0.0, %v3197
      %v3199 = vpop.f32.mrf.mxu0
      %v3200 = vadd.f32 0.0, %v3199
      %3201 = vmatmul.bf16.gmra.mxu0 %v3037
      %v3202 = vpop.f32.mrf.mxu0
      %v3203 = vadd.f32 0.0, %v3202
      %v3204 = vpop.f32.mrf.mxu0
      %v3205 = vadd.f32 0.0, %v3204
      %3206 = vmatmul.bf16.gmra.mxu0 %v3039
      %v3207 = vpop.f32.mrf.mxu0
      %v3208 = vadd.f32 0.0, %v3207
      %v3209 = vpop.f32.mrf.mxu0
      %v3210 = vadd.f32 0.0, %v3209
      %3211 = vmatmul.bf16.gmra.mxu0 %v3041
      %v3212 = vpop.f32.mrf.mxu0
      %v3213 = vadd.f32 0.0, %v3212
      %v3214 = vpop.f32.mrf.mxu0
      %v3215 = vadd.f32 0.0, %v3214
      %3216 = vmatmul.bf16.gmra.mxu0 %v3043
      %v3217 = vpop.f32.mrf.mxu0
      %v3218 = vadd.f32 0.0, %v3217
      %v3219 = vpop.f32.mrf.mxu0
      %v3220 = vadd.f32 0.0, %v3219
      %3221 = vdwg.mxu0
      %3222 = vmatpush.bf16.msra.mxu0 %v3156
      %3223 = vmatpush.bf16.msra.mxu0 %v3155
      %3224 = vmatpush.bf16.msra.mxu0 %v3154
      %3225 = vmatpush.bf16.msra.mxu0 %v3153
      %3226 = vmatpush.bf16.msra.mxu0 %v3152
      %3227 = vmatpush.bf16.msra.mxu0 %v3151
      %3228 = vmatpush.bf16.msra.mxu0 %v3150
      %3229 = vmatpush.bf16.msra.mxu0 %v3149
      %3230 = vmatmul.bf16.gmra.mxu0 %v3030
      %v3231 = vpop.f32.mrf.mxu0
      %v3232 = vadd.f32 %v3183, %v3231
      %v3233 = vpop.f32.mrf.mxu0
      %v3234 = vadd.f32 %v3185, %v3233
      %3235 = vmatmul.bf16.gmra.mxu0 %v3032
      %v3236 = vpop.f32.mrf.mxu0
      %v3237 = vadd.f32 %v3188, %v3236
      %v3238 = vpop.f32.mrf.mxu0
      %v3239 = vadd.f32 %v3190, %v3238
      %3240 = vmatmul.bf16.gmra.mxu0 %v3034
      %v3241 = vpop.f32.mrf.mxu0
      %v3242 = vadd.f32 %v3193, %v3241
      %v3243 = vpop.f32.mrf.mxu0
      %v3244 = vadd.f32 %v3195, %v3243
      %3245 = vmatmul.bf16.gmra.mxu0 %v3036
      %v3246 = vpop.f32.mrf.mxu0
      %v3247 = vadd.f32 %v3198, %v3246
      %v3248 = vpop.f32.mrf.mxu0
      %v3249 = vadd.f32 %v3200, %v3248
      %3250 = vmatmul.bf16.gmra.mxu0 %v3038
      %v3251 = vpop.f32.mrf.mxu0
      %v3252 = vadd.f32 %v3203, %v3251
      %v3253 = vpop.f32.mrf.mxu0
      %v3254 = vadd.f32 %v3205, %v3253
      %3255 = vmatmul.bf16.gmra.mxu0 %v3040
      %v3256 = vpop.f32.mrf.mxu0
      %v3257 = vadd.f32 %v3208, %v3256
      %v3258 = vpop.f32.mrf.mxu0
      %v3259 = vadd.f32 %v3210, %v3258
      %3260 = vmatmul.bf16.gmra.mxu0 %v3042
      %v3261 = vpop.f32.mrf.mxu0
      %v3262 = vadd.f32 %v3213, %v3261
      %v3263 = vpop.f32.mrf.mxu0
      %v3264 = vadd.f32 %v3215, %v3263
      %3265 = vmatmul.bf16.gmra.mxu0 %v3044
      %v3266 = vpop.f32.mrf.mxu0
      %v3267 = vadd.f32 %v3218, %v3266
      %v3268 = vpop.f32.mrf.mxu0
      %v3269 = vadd.f32 %v3220, %v3268
      %3270 = vdwg.mxu0
      %v3303 = vunpack.c.l.b16 %v2933
      %v3304 = vunpack.c.l.b16 %v2934
      %v3305 = vunpack.c.l.b16 %v2935
      %v3306 = vunpack.c.l.b16 %v2936
      %v3307 = vunpack.c.l.b16 %v2937
      %v3308 = vunpack.c.l.b16 %v2938
      %v3309 = vunpack.c.l.b16 %v2939
      %v3310 = vunpack.c.l.b16 %v2940
      %v3311 = vunpack.c.l.b16 %v2941
      %v3312 = vunpack.c.l.b16 %v2942
      %v3313 = vunpack.c.l.b16 %v2943
      %v3314 = vunpack.c.l.b16 %v2944
      %v3315 = vunpack.c.l.b16 %v2945
      %v3316 = vunpack.c.l.b16 %v2946
      %v3317 = vunpack.c.l.b16 %v2947
      %v3318 = vunpack.c.l.b16 %v2948
      %v3319 = vunpack.c.l.b16 %v2949
      %v3320 = vunpack.c.l.b16 %v2950
      %v3321 = vunpack.c.l.b16 %v2951
      %v3322 = vunpack.c.l.b16 %v2952
      %v3323 = vunpack.c.l.b16 %v2953
      %v3324 = vunpack.c.l.b16 %v2954
      %v3325 = vunpack.c.l.b16 %v2955
      %v3326 = vunpack.c.l.b16 %v2956
      %v3327 = vunpack.c.l.b16 %v2957
      %v3328 = vunpack.c.l.b16 %v2958
      %v3329 = vunpack.c.l.b16 %v2959
      %v3330 = vunpack.c.l.b16 %v2960
      %v3331 = vunpack.c.l.b16 %v2961
      %v3332 = vunpack.c.l.b16 %v2962
      %v3333 = vunpack.c.l.b16 %v2963
      %v3334 = vunpack.c.l.b16 %v2964
      %v3335 = vpack.c.b16 %v3304, %v3303
      %v3336 = vpack.c.b16 %v3306, %v3305
      %v3337 = vpack.c.b16 %v3308, %v3307
      %v3338 = vpack.c.b16 %v3310, %v3309
      %v3339 = vpack.c.b16 %v3312, %v3311
      %v3340 = vpack.c.b16 %v3314, %v3313
      %v3341 = vpack.c.b16 %v3316, %v3315
      %v3342 = vpack.c.b16 %v3318, %v3317
      %v3343 = vpack.c.b16 %v3320, %v3319
      %v3344 = vpack.c.b16 %v3322, %v3321
      %v3345 = vpack.c.b16 %v3324, %v3323
      %v3346 = vpack.c.b16 %v3326, %v3325
      %v3347 = vpack.c.b16 %v3328, %v3327
      %v3348 = vpack.c.b16 %v3330, %v3329
      %v3349 = vpack.c.b16 %v3332, %v3331
      %v3350 = vpack.c.b16 %v3334, %v3333
      %3367 = vmatpush.bf16.msra.mxu0 %v3342
      %3368 = vmatpush.bf16.msra.mxu0 %v3341
      %3369 = vmatpush.bf16.msra.mxu0 %v3340
      %3370 = vmatpush.bf16.msra.mxu0 %v3339
      %3371 = vmatpush.bf16.msra.mxu0 %v3338
      %3372 = vmatpush.bf16.msra.mxu0 %v3337
      %3373 = vmatpush.bf16.msra.mxu0 %v3336
      %3374 = vmatpush.bf16.msra.mxu0 %v3335
      %3375 = vmatmul.bf16.gmra.mxu0 %v2917
      %v3376 = vpop.f32.mrf.mxu0
      %v3377 = vadd.f32 %v3232, %v3376
      %v3378 = vpop.f32.mrf.mxu0
      %v3379 = vadd.f32 %v3234, %v3378
      %3380 = vmatmul.bf16.gmra.mxu0 %v2919
      %v3381 = vpop.f32.mrf.mxu0
      %v3382 = vadd.f32 %v3237, %v3381
      %v3383 = vpop.f32.mrf.mxu0
      %v3384 = vadd.f32 %v3239, %v3383
      %3385 = vmatmul.bf16.gmra.mxu0 %v2921
      %v3386 = vpop.f32.mrf.mxu0
      %v3387 = vadd.f32 %v3242, %v3386
      %v3388 = vpop.f32.mrf.mxu0
      %v3389 = vadd.f32 %v3244, %v3388
      %3390 = vmatmul.bf16.gmra.mxu0 %v2923
      %v3391 = vpop.f32.mrf.mxu0
      %v3392 = vadd.f32 %v3247, %v3391
      %v3393 = vpop.f32.mrf.mxu0
      %v3394 = vadd.f32 %v3249, %v3393
      %3395 = vmatmul.bf16.gmra.mxu0 %v2925
      %v3396 = vpop.f32.mrf.mxu0
      %v3397 = vadd.f32 %v3252, %v3396
      %v3398 = vpop.f32.mrf.mxu0
      %v3399 = vadd.f32 %v3254, %v3398
      %3400 = vmatmul.bf16.gmra.mxu0 %v2927
      %v3401 = vpop.f32.mrf.mxu0
      %v3402 = vadd.f32 %v3257, %v3401
      %v3403 = vpop.f32.mrf.mxu0
      %v3404 = vadd.f32 %v3259, %v3403
      %3405 = vmatmul.bf16.gmra.mxu0 %v2929
      %v3406 = vpop.f32.mrf.mxu0
      %v3407 = vadd.f32 %v3262, %v3406
      %v3408 = vpop.f32.mrf.mxu0
      %v3409 = vadd.f32 %v3264, %v3408
      %3410 = vmatmul.bf16.gmra.mxu0 %v2931
      %v3411 = vpop.f32.mrf.mxu0
      %v3412 = vadd.f32 %v3267, %v3411
      %v3413 = vpop.f32.mrf.mxu0
      %v3414 = vadd.f32 %v3269, %v3413
      %3415 = vdwg.mxu0
      %3416 = vmatpush.bf16.msra.mxu0 %v3350
      %3417 = vmatpush.bf16.msra.mxu0 %v3349
      %3418 = vmatpush.bf16.msra.mxu0 %v3348
      %3419 = vmatpush.bf16.msra.mxu0 %v3347
      %3420 = vmatpush.bf16.msra.mxu0 %v3346
      %3421 = vmatpush.bf16.msra.mxu0 %v3345
      %3422 = vmatpush.bf16.msra.mxu0 %v3344
      %3423 = vmatpush.bf16.msra.mxu0 %v3343
      %3424 = vmatmul.bf16.gmra.mxu0 %v2918
      %v3425 = vpop.f32.mrf.mxu0
      %v3426 = vadd.f32 %v3377, %v3425
      %v3427 = vpop.f32.mrf.mxu0
      %v3428 = vadd.f32 %v3379, %v3427
      %3429 = vmatmul.bf16.gmra.mxu0 %v2920
      %v3430 = vpop.f32.mrf.mxu0
      %v3431 = vadd.f32 %v3382, %v3430
      %v3432 = vpop.f32.mrf.mxu0
      %v3433 = vadd.f32 %v3384, %v3432
      %3434 = vmatmul.bf16.gmra.mxu0 %v2922
      %v3435 = vpop.f32.mrf.mxu0
      %v3436 = vadd.f32 %v3387, %v3435
      %v3437 = vpop.f32.mrf.mxu0
      %v3438 = vadd.f32 %v3389, %v3437
      %3439 = vmatmul.bf16.gmra.mxu0 %v2924
      %v3440 = vpop.f32.mrf.mxu0
      %v3441 = vadd.f32 %v3392, %v3440
      %v3442 = vpop.f32.mrf.mxu0
      %v3443 = vadd.f32 %v3394, %v3442
      %3444 = vmatmul.bf16.gmra.mxu0 %v2926
      %v3445 = vpop.f32.mrf.mxu0
      %v3446 = vadd.f32 %v3397, %v3445
      %v3447 = vpop.f32.mrf.mxu0
      %v3448 = vadd.f32 %v3399, %v3447
      %3449 = vmatmul.bf16.gmra.mxu0 %v2928
      %v3450 = vpop.f32.mrf.mxu0
      %v3451 = vadd.f32 %v3402, %v3450
      %v3452 = vpop.f32.mrf.mxu0
      %v3453 = vadd.f32 %v3404, %v3452
      %3454 = vmatmul.bf16.gmra.mxu0 %v2930
      %v3455 = vpop.f32.mrf.mxu0
      %v3456 = vadd.f32 %v3407, %v3455
      %v3457 = vpop.f32.mrf.mxu0
      %v3458 = vadd.f32 %v3409, %v3457
      %3459 = vmatmul.bf16.gmra.mxu0 %v2932
      %v3460 = vpop.f32.mrf.mxu0
      %v3461 = vadd.f32 %v3412, %v3460
      %v3462 = vpop.f32.mrf.mxu0
      %v3463 = vadd.f32 %v3414, %v3462
      %3464 = vdwg.mxu0
      %vm3465 = vcmp.eq.s32.totalorder %v515, 2
      %vm3466 = vcmp.eq.s32.totalorder %v516, 2
      %vm3467 = vcmp.eq.s32.totalorder %v517, 2
      %vm3468 = vcmp.eq.s32.totalorder %v518, 2
      %vm3469 = vcmp.eq.s32.totalorder %v519, 2
      %vm3470 = vcmp.eq.s32.totalorder %v520, 2
      %vm3471 = vcmp.eq.s32.totalorder %v521, 2
      %vm3472 = vcmp.eq.s32.totalorder %v522, 2
      %vm3473 = vcmp.eq.s32.totalorder %v523, 2
      %vm3474 = vcmp.eq.s32.totalorder %v524, 2
      %vm3475 = vcmp.eq.s32.totalorder %v525, 2
      %vm3476 = vcmp.eq.s32.totalorder %v526, 2
      %vm3477 = vcmp.eq.s32.totalorder %v527, 2
      %vm3478 = vcmp.eq.s32.totalorder %v528, 2
      %vm3479 = vcmp.eq.s32.totalorder %v529, 2
      %vm3480 = vcmp.eq.s32.totalorder %v530, 2
      %vm3481 = vcmp.eq.s32.totalorder %v531, 2
      %vm3482 = vcmp.eq.s32.totalorder %v532, 2
      %vm3483 = vcmp.eq.s32.totalorder %v533, 2
      %vm3484 = vcmp.eq.s32.totalorder %v534, 2
      %vm3485 = vcmp.eq.s32.totalorder %v535, 2
      %vm3486 = vcmp.eq.s32.totalorder %v536, 2
      %vm3487 = vcmp.eq.s32.totalorder %v537, 2
      %vm3488 = vcmp.eq.s32.totalorder %v538, 2
      %vm3489 = vcmp.eq.s32.totalorder %v539, 2
      %vm3490 = vcmp.eq.s32.totalorder %v540, 2
      %vm3491 = vcmp.eq.s32.totalorder %v541, 2
      %vm3492 = vcmp.eq.s32.totalorder %v542, 2
      %vm3493 = vcmp.eq.s32.totalorder %v543, 2
      %vm3494 = vcmp.eq.s32.totalorder %v544, 2
      %vm3495 = vcmp.eq.s32.totalorder %v545, 2
      %vm3496 = vcmp.eq.s32.totalorder %v546, 2
      %v3497 = vsel %vm3465, %v2821, 0.0
      %v3498 = vsel %vm3466, %v2822, 0.0
      %v3499 = vsel %vm3467, %v2823, 0.0
      %v3500 = vsel %vm3468, %v2824, 0.0
      %v3501 = vsel %vm3469, %v2825, 0.0
      %v3502 = vsel %vm3470, %v2826, 0.0
      %v3503 = vsel %vm3471, %v2827, 0.0
      %v3504 = vsel %vm3472, %v2828, 0.0
      %v3505 = vsel %vm3473, %v2829, 0.0
      %v3506 = vsel %vm3474, %v2830, 0.0
      %v3507 = vsel %vm3475, %v2831, 0.0
      %v3508 = vsel %vm3476, %v2832, 0.0
      %v3509 = vsel %vm3477, %v2833, 0.0
      %v3510 = vsel %vm3478, %v2834, 0.0
      %v3511 = vsel %vm3479, %v2835, 0.0
      %v3512 = vsel %vm3480, %v2836, 0.0
      %v3513 = vsel %vm3481, %v2837, 0.0
      %v3514 = vsel %vm3482, %v2838, 0.0
      %v3515 = vsel %vm3483, %v2839, 0.0
      %v3516 = vsel %vm3484, %v2840, 0.0
      %v3517 = vsel %vm3485, %v2841, 0.0
      %v3518 = vsel %vm3486, %v2842, 0.0
      %v3519 = vsel %vm3487, %v2843, 0.0
      %v3520 = vsel %vm3488, %v2844, 0.0
      %v3521 = vsel %vm3489, %v2845, 0.0
      %v3522 = vsel %vm3490, %v2846, 0.0
      %v3523 = vsel %vm3491, %v2847, 0.0
      %v3524 = vsel %vm3492, %v2848, 0.0
      %v3525 = vsel %vm3493, %v2849, 0.0
      %v3526 = vsel %vm3494, %v2850, 0.0
      %v3527 = vsel %vm3495, %v2851, 0.0
      %v3528 = vsel %vm3496, %v2852, 0.0
      %v3529 = vpack.c.bf16 %v3499, %v3497
      %v3530 = vpack.c.bf16 %v3500, %v3498
      %v3531 = vpack.c.bf16 %v3503, %v3501
      %v3532 = vpack.c.bf16 %v3504, %v3502
      %v3533 = vpack.c.bf16 %v3507, %v3505
      %v3534 = vpack.c.bf16 %v3508, %v3506
      %v3535 = vpack.c.bf16 %v3511, %v3509
      %v3536 = vpack.c.bf16 %v3512, %v3510
      %v3537 = vpack.c.bf16 %v3515, %v3513
      %v3538 = vpack.c.bf16 %v3516, %v3514
      %v3539 = vpack.c.bf16 %v3519, %v3517
      %v3540 = vpack.c.bf16 %v3520, %v3518
      %v3541 = vpack.c.bf16 %v3523, %v3521
      %v3542 = vpack.c.bf16 %v3524, %v3522
      %v3543 = vpack.c.bf16 %v3527, %v3525
      %v3544 = vpack.c.bf16 %v3528, %v3526
      %v3545 = vld [vmem:[%s5 + $0x100] sm:$0xf]
      %v3546 = vld [vmem:[%s5 + $0x104] sm:$0xf]
      %v3547 = vld [vmem:[%s5 + $0x108] sm:$0xf]
      %v3548 = vld [vmem:[%s5 + $0x10c] sm:$0xf]
      %v3549 = vld [vmem:[%s5 + $0x110] sm:$0xf]
      %v3550 = vld [vmem:[%s5 + $0x114] sm:$0xf]
      %v3551 = vld [vmem:[%s5 + $0x118] sm:$0xf]
      %v3552 = vld [vmem:[%s5 + $0x11c] sm:$0xf]
      %v3553 = vld [vmem:[%s5 + $0x120] sm:$0xf]
      %v3554 = vld [vmem:[%s5 + $0x124] sm:$0xf]
      %v3555 = vld [vmem:[%s5 + $0x128] sm:$0xf]
      %v3556 = vld [vmem:[%s5 + $0x12c] sm:$0xf]
      %v3557 = vld [vmem:[%s5 + $0x130] sm:$0xf]
      %v3558 = vld [vmem:[%s5 + $0x134] sm:$0xf]
      %v3559 = vld [vmem:[%s5 + $0x138] sm:$0xf]
      %v3560 = vld [vmem:[%s5 + $0x13c] sm:$0xf]
      %v3561 = vld [vmem:[%s5 + $0x140] sm:$0xf]
      %v3562 = vld [vmem:[%s5 + $0x144] sm:$0xf]
      %v3563 = vld [vmem:[%s5 + $0x148] sm:$0xf]
      %v3564 = vld [vmem:[%s5 + $0x14c] sm:$0xf]
      %v3565 = vld [vmem:[%s5 + $0x150] sm:$0xf]
      %v3566 = vld [vmem:[%s5 + $0x154] sm:$0xf]
      %v3567 = vld [vmem:[%s5 + $0x158] sm:$0xf]
      %v3568 = vld [vmem:[%s5 + $0x15c] sm:$0xf]
      %v3569 = vld [vmem:[%s5 + $0x160] sm:$0xf]
      %v3570 = vld [vmem:[%s5 + $0x164] sm:$0xf]
      %v3571 = vld [vmem:[%s5 + $0x168] sm:$0xf]
      %v3572 = vld [vmem:[%s5 + $0x16c] sm:$0xf]
      %v3573 = vld [vmem:[%s5 + $0x170] sm:$0xf]
      %v3574 = vld [vmem:[%s5 + $0x174] sm:$0xf]
      %v3575 = vld [vmem:[%s5 + $0x178] sm:$0xf]
      %v3576 = vld [vmem:[%s5 + $0x17c] sm:$0xf]
      %v3609 = vunpack.c.l.b16 %v3545
      %v3610 = vunpack.c.l.b16 %v3546
      %v3611 = vunpack.c.l.b16 %v3547
      %v3612 = vunpack.c.l.b16 %v3548
      %v3613 = vunpack.c.l.b16 %v3549
      %v3614 = vunpack.c.l.b16 %v3550
      %v3615 = vunpack.c.l.b16 %v3551
      %v3616 = vunpack.c.l.b16 %v3552
      %v3617 = vunpack.c.l.b16 %v3553
      %v3618 = vunpack.c.l.b16 %v3554
      %v3619 = vunpack.c.l.b16 %v3555
      %v3620 = vunpack.c.l.b16 %v3556
      %v3621 = vunpack.c.l.b16 %v3557
      %v3622 = vunpack.c.l.b16 %v3558
      %v3623 = vunpack.c.l.b16 %v3559
      %v3624 = vunpack.c.l.b16 %v3560
      %v3625 = vunpack.c.l.b16 %v3561
      %v3626 = vunpack.c.l.b16 %v3562
      %v3627 = vunpack.c.l.b16 %v3563
      %v3628 = vunpack.c.l.b16 %v3564
      %v3629 = vunpack.c.l.b16 %v3565
      %v3630 = vunpack.c.l.b16 %v3566
      %v3631 = vunpack.c.l.b16 %v3567
      %v3632 = vunpack.c.l.b16 %v3568
      %v3633 = vunpack.c.l.b16 %v3569
      %v3634 = vunpack.c.l.b16 %v3570
      %v3635 = vunpack.c.l.b16 %v3571
      %v3636 = vunpack.c.l.b16 %v3572
      %v3637 = vunpack.c.l.b16 %v3573
      %v3638 = vunpack.c.l.b16 %v3574
      %v3639 = vunpack.c.l.b16 %v3575
      %v3640 = vunpack.c.l.b16 %v3576
      %v3641 = vpack.c.b16 %v3610, %v3609
      %v3642 = vpack.c.b16 %v3612, %v3611
      %v3643 = vpack.c.b16 %v3614, %v3613
      %v3644 = vpack.c.b16 %v3616, %v3615
      %v3645 = vpack.c.b16 %v3618, %v3617
      %v3646 = vpack.c.b16 %v3620, %v3619
      %v3647 = vpack.c.b16 %v3622, %v3621
      %v3648 = vpack.c.b16 %v3624, %v3623
      %v3649 = vpack.c.b16 %v3626, %v3625
      %v3650 = vpack.c.b16 %v3628, %v3627
      %v3651 = vpack.c.b16 %v3630, %v3629
      %v3652 = vpack.c.b16 %v3632, %v3631
      %v3653 = vpack.c.b16 %v3634, %v3633
      %v3654 = vpack.c.b16 %v3636, %v3635
      %v3655 = vpack.c.b16 %v3638, %v3637
      %v3656 = vpack.c.b16 %v3640, %v3639
      %3673 = vmatpush.bf16.msra.mxu0 %v3648
      %3674 = vmatpush.bf16.msra.mxu0 %v3647
      %3675 = vmatpush.bf16.msra.mxu0 %v3646
      %3676 = vmatpush.bf16.msra.mxu0 %v3645
      %3677 = vmatpush.bf16.msra.mxu0 %v3644
      %3678 = vmatpush.bf16.msra.mxu0 %v3643
      %3679 = vmatpush.bf16.msra.mxu0 %v3642
      %3680 = vmatpush.bf16.msra.mxu0 %v3641
      %3681 = vmatmul.bf16.gmra.mxu0 %v3529
      %v3682 = vpop.f32.mrf.mxu0
      %v3683 = vadd.f32 0.0, %v3682
      %v3684 = vpop.f32.mrf.mxu0
      %v3685 = vadd.f32 0.0, %v3684
      %3686 = vmatmul.bf16.gmra.mxu0 %v3531
      %v3687 = vpop.f32.mrf.mxu0
      %v3688 = vadd.f32 0.0, %v3687
      %v3689 = vpop.f32.mrf.mxu0
      %v3690 = vadd.f32 0.0, %v3689
      %3691 = vmatmul.bf16.gmra.mxu0 %v3533
      %v3692 = vpop.f32.mrf.mxu0
      %v3693 = vadd.f32 0.0, %v3692
      %v3694 = vpop.f32.mrf.mxu0
      %v3695 = vadd.f32 0.0, %v3694
      %3696 = vmatmul.bf16.gmra.mxu0 %v3535
      %v3697 = vpop.f32.mrf.mxu0
      %v3698 = vadd.f32 0.0, %v3697
      %v3699 = vpop.f32.mrf.mxu0
      %v3700 = vadd.f32 0.0, %v3699
      %3701 = vmatmul.bf16.gmra.mxu0 %v3537
      %v3702 = vpop.f32.mrf.mxu0
      %v3703 = vadd.f32 0.0, %v3702
      %v3704 = vpop.f32.mrf.mxu0
      %v3705 = vadd.f32 0.0, %v3704
      %3706 = vmatmul.bf16.gmra.mxu0 %v3539
      %v3707 = vpop.f32.mrf.mxu0
      %v3708 = vadd.f32 0.0, %v3707
      %v3709 = vpop.f32.mrf.mxu0
      %v3710 = vadd.f32 0.0, %v3709
      %3711 = vmatmul.bf16.gmra.mxu0 %v3541
      %v3712 = vpop.f32.mrf.mxu0
      %v3713 = vadd.f32 0.0, %v3712
      %v3714 = vpop.f32.mrf.mxu0
      %v3715 = vadd.f32 0.0, %v3714
      %3716 = vmatmul.bf16.gmra.mxu0 %v3543
      %v3717 = vpop.f32.mrf.mxu0
      %v3718 = vadd.f32 0.0, %v3717
      %v3719 = vpop.f32.mrf.mxu0
      %v3720 = vadd.f32 0.0, %v3719
      %3721 = vdwg.mxu0
      %3722 = vmatpush.bf16.msra.mxu0 %v3656
      %3723 = vmatpush.bf16.msra.mxu0 %v3655
      %3724 = vmatpush.bf16.msra.mxu0 %v3654
      %3725 = vmatpush.bf16.msra.mxu0 %v3653
      %3726 = vmatpush.bf16.msra.mxu0 %v3652
      %3727 = vmatpush.bf16.msra.mxu0 %v3651
      %3728 = vmatpush.bf16.msra.mxu0 %v3650
      %3729 = vmatpush.bf16.msra.mxu0 %v3649
      %3730 = vmatmul.bf16.gmra.mxu0 %v3530
      %v3731 = vpop.f32.mrf.mxu0
      %v3732 = vadd.f32 %v3683, %v3731
      %v3733 = vpop.f32.mrf.mxu0
      %v3734 = vadd.f32 %v3685, %v3733
      %3735 = vmatmul.bf16.gmra.mxu0 %v3532
      %v3736 = vpop.f32.mrf.mxu0
      %v3737 = vadd.f32 %v3688, %v3736
      %v3738 = vpop.f32.mrf.mxu0
      %v3739 = vadd.f32 %v3690, %v3738
      %3740 = vmatmul.bf16.gmra.mxu0 %v3534
      %v3741 = vpop.f32.mrf.mxu0
      %v3742 = vadd.f32 %v3693, %v3741
      %v3743 = vpop.f32.mrf.mxu0
      %v3744 = vadd.f32 %v3695, %v3743
      %3745 = vmatmul.bf16.gmra.mxu0 %v3536
      %v3746 = vpop.f32.mrf.mxu0
      %v3747 = vadd.f32 %v3698, %v3746
      %v3748 = vpop.f32.mrf.mxu0
      %v3749 = vadd.f32 %v3700, %v3748
      %3750 = vmatmul.bf16.gmra.mxu0 %v3538
      %v3751 = vpop.f32.mrf.mxu0
      %v3752 = vadd.f32 %v3703, %v3751
      %v3753 = vpop.f32.mrf.mxu0
      %v3754 = vadd.f32 %v3705, %v3753
      %3755 = vmatmul.bf16.gmra.mxu0 %v3540
      %v3756 = vpop.f32.mrf.mxu0
      %v3757 = vadd.f32 %v3708, %v3756
      %v3758 = vpop.f32.mrf.mxu0
      %v3759 = vadd.f32 %v3710, %v3758
      %3760 = vmatmul.bf16.gmra.mxu0 %v3542
      %v3761 = vpop.f32.mrf.mxu0
      %v3762 = vadd.f32 %v3713, %v3761
      %v3763 = vpop.f32.mrf.mxu0
      %v3764 = vadd.f32 %v3715, %v3763
      %3765 = vmatmul.bf16.gmra.mxu0 %v3544
      %v3766 = vpop.f32.mrf.mxu0
      %v3767 = vadd.f32 %v3718, %v3766
      %v3768 = vpop.f32.mrf.mxu0
      %v3769 = vadd.f32 %v3720, %v3768
      %3770 = vdwg.mxu0
      %v3771 = vadd.f32 %v3426, %v3732
      %v3772 = vadd.f32 %v3428, %v3734
      %v3773 = vadd.f32 %v3431, %v3737
      %v3774 = vadd.f32 %v3433, %v3739
      %v3775 = vadd.f32 %v3436, %v3742
      %v3776 = vadd.f32 %v3438, %v3744
      %v3777 = vadd.f32 %v3441, %v3747
      %v3778 = vadd.f32 %v3443, %v3749
      %v3779 = vadd.f32 %v3446, %v3752
      %v3780 = vadd.f32 %v3448, %v3754
      %v3781 = vadd.f32 %v3451, %v3757
      %v3782 = vadd.f32 %v3453, %v3759
      %v3783 = vadd.f32 %v3456, %v3762
      %v3784 = vadd.f32 %v3458, %v3764
      %v3785 = vadd.f32 %v3461, %v3767
      %v3786 = vadd.f32 %v3463, %v3769
      %v3787 = vadd.f32 %v3771, %v798
      %v3788 = vadd.f32 %v3772, %v799
      %v3789 = vadd.f32 %v3773, %v800
      %v3790 = vadd.f32 %v3774, %v801
      %v3791 = vadd.f32 %v3775, %v802
      %v3792 = vadd.f32 %v3776, %v803
      %v3793 = vadd.f32 %v3777, %v804
      %v3794 = vadd.f32 %v3778, %v805
      %v3795 = vadd.f32 %v3779, %v806
      %v3796 = vadd.f32 %v3780, %v807
      %v3797 = vadd.f32 %v3781, %v808
      %v3798 = vadd.f32 %v3782, %v809
      %v3799 = vadd.f32 %v3783, %v810
      %v3800 = vadd.f32 %v3784, %v811
      %v3801 = vadd.f32 %v3785, %v812
      %v3802 = vadd.f32 %v3786, %v813
      %3804 = vset.pattern.permute.xlu0 2
      %3805 = vperm.xlu0 %3804, %v2078
      %v3806 = vpop.permute.xlu0 %3805
      %3809 = vset.pattern.permute.xlu0 2
      %3810 = vperm.xlu0 %3809, %v2093
      %v3811 = vpop.permute.xlu0 %3810
      %3814 = vset.pattern.permute.xlu0 2
      %3815 = vperm.xlu0 %3814, %v2108
      %v3816 = vpop.permute.xlu0 %3815
      %3819 = vset.pattern.permute.xlu0 2
      %3820 = vperm.xlu0 %3819, %v2123
      %v3821 = vpop.permute.xlu0 %3820
      %3824 = vset.pattern.permute.xlu0 2
      %3825 = vperm.xlu0 %3824, %v2138
      %v3826 = vpop.permute.xlu0 %3825
      %3829 = vset.pattern.permute.xlu0 2
      %3830 = vperm.xlu0 %3829, %v2153
      %v3831 = vpop.permute.xlu0 %3830
      %3834 = vset.pattern.permute.xlu0 2
      %3835 = vperm.xlu0 %3834, %v2168
      %v3836 = vpop.permute.xlu0 %3835
      %3839 = vset.pattern.permute.xlu0 2
      %3840 = vperm.xlu0 %3839, %v2183
      %v3841 = vpop.permute.xlu0 %3840
      %3844 = vset.pattern.permute.xlu0 2
      %3845 = vperm.xlu0 %3844, %v2198
      %v3846 = vpop.permute.xlu0 %3845
      %3849 = vset.pattern.permute.xlu0 2
      %3850 = vperm.xlu0 %3849, %v2213
      %v3851 = vpop.permute.xlu0 %3850
      %3854 = vset.pattern.permute.xlu0 2
      %3855 = vperm.xlu0 %3854, %v2228
      %v3856 = vpop.permute.xlu0 %3855
      %3859 = vset.pattern.permute.xlu0 2
      %3860 = vperm.xlu0 %3859, %v2243
      %v3861 = vpop.permute.xlu0 %3860
      %3864 = vset.pattern.permute.xlu0 2
      %3865 = vperm.xlu0 %3864, %v2258
      %v3866 = vpop.permute.xlu0 %3865
      %3869 = vset.pattern.permute.xlu0 2
      %3870 = vperm.xlu0 %3869, %v2273
      %v3871 = vpop.permute.xlu0 %3870
      %3874 = vset.pattern.permute.xlu0 2
      %3875 = vperm.xlu0 %3874, %v2288
      %v3876 = vpop.permute.xlu0 %3875
      %3879 = vset.pattern.permute.xlu0 2
      %3880 = vperm.xlu0 %3879, %v2303
      %v3881 = vpop.permute.xlu0 %3880
      %v3883 = vmul.f32 %v1904, %v3806
      %v3884 = vmul.f32 %v1905, %v3811
      %v3885 = vmul.f32 %v1906, %v3816
      %v3886 = vmul.f32 %v1907, %v3821
      %v3887 = vmul.f32 %v1908, %v3826
      %v3888 = vmul.f32 %v1909, %v3831
      %v3889 = vmul.f32 %v1910, %v3836
      %v3890 = vmul.f32 %v1911, %v3841
      %v3891 = vmul.f32 %v1912, %v3846
      %v3892 = vmul.f32 %v1913, %v3851
      %v3893 = vmul.f32 %v1914, %v3856
      %v3894 = vmul.f32 %v1915, %v3861
      %v3895 = vmul.f32 %v1916, %v3866
      %v3896 = vmul.f32 %v1917, %v3871
      %v3897 = vmul.f32 %v1918, %v3876
      %v3898 = vmul.f32 %v1919, %v3881
      %v3899 = vadd.f32 %v3787, %v3883
      %v3900 = vadd.f32 %v3788, %v3884
      %v3901 = vadd.f32 %v3789, %v3885
      %v3902 = vadd.f32 %v3790, %v3886
      %v3903 = vadd.f32 %v3791, %v3887
      %v3904 = vadd.f32 %v3792, %v3888
      %v3905 = vadd.f32 %v3793, %v3889
      %v3906 = vadd.f32 %v3794, %v3890
      %v3907 = vadd.f32 %v3795, %v3891
      %v3908 = vadd.f32 %v3796, %v3892
      %v3909 = vadd.f32 %v3797, %v3893
      %v3910 = vadd.f32 %v3798, %v3894
      %v3911 = vadd.f32 %v3799, %v3895
      %v3912 = vadd.f32 %v3800, %v3896
      %v3913 = vadd.f32 %v3801, %v3897
      %v3914 = vadd.f32 %v3802, %v3898
      %v3915 = vadd.f32 %v475, %v476
      %3916 = vadd.xlane.f32.xlu0 %v3915
      %v3917 = vpop.xlane.xlu0 %3916
      %v3918 = vadd.f32 %v477, %v478
      %3919 = vadd.xlane.f32.xlu0 %v3918
      %v3920 = vpop.xlane.xlu0 %3919
      %v3921 = vadd.f32 %v479, %v480
      %3922 = vadd.xlane.f32.xlu0 %v3921
      %v3923 = vpop.xlane.xlu0 %3922
      %v3924 = vadd.f32 %v481, %v482
      %3925 = vadd.xlane.f32.xlu0 %v3924
      %v3926 = vpop.xlane.xlu0 %3925
      %v3927 = vadd.f32 %v483, %v484
      %3928 = vadd.xlane.f32.xlu0 %v3927
      %v3929 = vpop.xlane.xlu0 %3928
      %v3930 = vadd.f32 %v485, %v486
      %3931 = vadd.xlane.f32.xlu0 %v3930
      %v3932 = vpop.xlane.xlu0 %3931
      %v3933 = vadd.f32 %v487, %v488
      %3934 = vadd.xlane.f32.xlu0 %v3933
      %v3935 = vpop.xlane.xlu0 %3934
      %v3936 = vadd.f32 %v489, %v490
      %3937 = vadd.xlane.f32.xlu0 %v3936
      %v3938 = vpop.xlane.xlu0 %3937
      %v3939 = vadd.f32 %v491, %v492
      %3940 = vadd.xlane.f32.xlu0 %v3939
      %v3941 = vpop.xlane.xlu0 %3940
      %v3942 = vadd.f32 %v493, %v494
      %3943 = vadd.xlane.f32.xlu0 %v3942
      %v3944 = vpop.xlane.xlu0 %3943
      %v3945 = vadd.f32 %v495, %v496
      %3946 = vadd.xlane.f32.xlu0 %v3945
      %v3947 = vpop.xlane.xlu0 %3946
      %v3948 = vadd.f32 %v497, %v498
      %3949 = vadd.xlane.f32.xlu0 %v3948
      %v3950 = vpop.xlane.xlu0 %3949
      %v3951 = vadd.f32 %v499, %v500
      %3952 = vadd.xlane.f32.xlu0 %v3951
      %v3953 = vpop.xlane.xlu0 %3952
      %v3954 = vadd.f32 %v501, %v502
      %3955 = vadd.xlane.f32.xlu0 %v3954
      %v3956 = vpop.xlane.xlu0 %3955
      %v3957 = vadd.f32 %v503, %v504
      %3958 = vadd.xlane.f32.xlu0 %v3957
      %v3959 = vpop.xlane.xlu0 %3958
      %v3960 = vadd.f32 %v505, %v506
      %3961 = vadd.xlane.f32.xlu0 %v3960
      %v3962 = vpop.xlane.xlu0 %3961
      %vm3963 = vcmp.gt.f32.partialorder %v3917, 0.0
      %vm3964 = vcmp.gt.f32.partialorder %v3920, 0.0
      %vm3965 = vcmp.gt.f32.partialorder %v3923, 0.0
      %vm3966 = vcmp.gt.f32.partialorder %v3926, 0.0
      %vm3967 = vcmp.gt.f32.partialorder %v3929, 0.0
      %vm3968 = vcmp.gt.f32.partialorder %v3932, 0.0
      %vm3969 = vcmp.gt.f32.partialorder %v3935, 0.0
      %vm3970 = vcmp.gt.f32.partialorder %v3938, 0.0
      %vm3971 = vcmp.gt.f32.partialorder %v3941, 0.0
      %vm3972 = vcmp.gt.f32.partialorder %v3944, 0.0
      %vm3973 = vcmp.gt.f32.partialorder %v3947, 0.0
      %vm3974 = vcmp.gt.f32.partialorder %v3950, 0.0
      %vm3975 = vcmp.gt.f32.partialorder %v3953, 0.0
      %vm3976 = vcmp.gt.f32.partialorder %v3956, 0.0
      %vm3977 = vcmp.gt.f32.partialorder %v3959, 0.0
      %vm3978 = vcmp.gt.f32.partialorder %v3962, 0.0
      %v3979 = vsel %vm3963, 1, 0
      %v3980 = vsel %vm3964, 1, 0
      %v3981 = vsel %vm3965, 1, 0
      %v3982 = vsel %vm3966, 1, 0
      %v3983 = vsel %vm3967, 1, 0
      %v3984 = vsel %vm3968, 1, 0
      %v3985 = vsel %vm3969, 1, 0
      %v3986 = vsel %vm3970, 1, 0
      %v3987 = vsel %vm3971, 1, 0
      %v3988 = vsel %vm3972, 1, 0
      %v3989 = vsel %vm3973, 1, 0
      %v3990 = vsel %vm3974, 1, 0
      %v3991 = vsel %vm3975, 1, 0
      %v3992 = vsel %vm3976, 1, 0
      %v3993 = vsel %vm3977, 1, 0
      %v3994 = vsel %vm3978, 1, 0
      %vm3995 = vcmp.eq.s32.totalorder %v3979, 1
      %vm3996 = vcmp.eq.s32.totalorder %v3980, 1
      %vm3997 = vcmp.eq.s32.totalorder %v3981, 1
      %vm3998 = vcmp.eq.s32.totalorder %v3982, 1
      %vm3999 = vcmp.eq.s32.totalorder %v3983, 1
      %vm4000 = vcmp.eq.s32.totalorder %v3984, 1
      %vm4001 = vcmp.eq.s32.totalorder %v3985, 1
      %vm4002 = vcmp.eq.s32.totalorder %v3986, 1
      %vm4003 = vcmp.eq.s32.totalorder %v3987, 1
      %vm4004 = vcmp.eq.s32.totalorder %v3988, 1
      %vm4005 = vcmp.eq.s32.totalorder %v3989, 1
      %vm4006 = vcmp.eq.s32.totalorder %v3990, 1
      %vm4007 = vcmp.eq.s32.totalorder %v3991, 1
      %vm4008 = vcmp.eq.s32.totalorder %v3992, 1
      %vm4009 = vcmp.eq.s32.totalorder %v3993, 1
      %vm4010 = vcmp.eq.s32.totalorder %v3994, 1
      %v4011 = vsel %vm3995, %v3899, %v435
      %v4012 = vsel %vm3996, %v3900, %v436
      %v4013 = vsel %vm3997, %v3901, %v437
      %v4014 = vsel %vm3998, %v3902, %v438
      %v4015 = vsel %vm3999, %v3903, %v439
      %v4016 = vsel %vm4000, %v3904, %v440
      %v4017 = vsel %vm4001, %v3905, %v441
      %v4018 = vsel %vm4002, %v3906, %v442
      %v4019 = vsel %vm4003, %v3907, %v443
      %v4020 = vsel %vm4004, %v3908, %v444
      %v4021 = vsel %vm4005, %v3909, %v445
      %v4022 = vsel %vm4006, %v3910, %v446
      %v4023 = vsel %vm4007, %v3911, %v447
      %v4024 = vsel %vm4008, %v3912, %v448
      %v4025 = vsel %vm4009, %v3913, %v449
      %v4026 = vsel %vm4010, %v3914, %v450
      %4027 = vst [vmem:[%s433] sm:$0xff] %v4011
      %4028 = vst [vmem:[%s433 + $0x8] sm:$0xff] %v4012
      %4029 = vst [vmem:[%s433 + $0x10] sm:$0xff] %v4013
      %4030 = vst [vmem:[%s433 + $0x18] sm:$0xff] %v4014
      %4031 = vst [vmem:[%s433 + $0x20] sm:$0xff] %v4015
      %4032 = vst [vmem:[%s433 + $0x28] sm:$0xff] %v4016
      %4033 = vst [vmem:[%s433 + $0x30] sm:$0xff] %v4017
      %4034 = vst [vmem:[%s433 + $0x38] sm:$0xff] %v4018
      %4035 = vst [vmem:[%s433 + $0x40] sm:$0xff] %v4019
      %4036 = vst [vmem:[%s433 + $0x48] sm:$0xff] %v4020
      %4037 = vst [vmem:[%s433 + $0x50] sm:$0xff] %v4021
      %4038 = vst [vmem:[%s433 + $0x58] sm:$0xff] %v4022
      %4039 = vst [vmem:[%s433 + $0x60] sm:$0xff] %v4023
      %4040 = vst [vmem:[%s433 + $0x68] sm:$0xff] %v4024
      %4041 = vst [vmem:[%s433 + $0x70] sm:$0xff] %v4025
      %4042 = vst [vmem:[%s433 + $0x78] sm:$0xff] %v4026
      %s4043 = smul.u32 16, %s21
      %p4044 = scmp.lt.s32.totalorder %s4043, 31
      %s4045 = scalar_select %p4044, %s4043, 31
      %s4046 = smul.addr %s4045, 8
      %s4047 = scalar_lea.vmem %s10, %s4046
      // Predicated region
      $region61: #{rgat_pallas.1} parent=59 // pred_check
        %p4048 = pneg %p269
      $region62: #{rgat_pallas.1} parent=59 // pred_check_branch
        %4050 = sbr.rel (%p4048) target = $region64
      $region63: #{rgat_pallas.1} parent=59 // pred_region
        %s4051 = smul.u32 16, %s21
      $region64: #{rgat_pallas.1} parent=59 // pred_fallthru
        _
    $region60: #{rgat_pallas.1} parent=5 // pred_fallthru
      _
    %p4052 = scmp.le.s32.totalorder 2, %s16
    // Predicated region
    $region65: #{rgat_pallas.1} parent=5 // pred_check
      %p4053 = pneg %p4052
    $region66: #{rgat_pallas.1} parent=5 // pred_check_branch
      %4055 = sbr.rel (%p4053) target = $region68
    $region67: #{rgat_pallas.1} parent=5 // pred_region
      %s4056 = ssub.s32 %s16, 2
      // Predicated region
      $region69: #{rgat_pallas.1} parent=67 // pred_check
        %p4057 = pneg %p275
      $region70: #{rgat_pallas.1} parent=67 // pred_check_branch
        %4059 = sbr.rel (%p4057) target = $region72
      $region71: #{rgat_pallas.1} parent=67 // pred_region
        %s4060 = smul.u32 16, %s22
        %p4061 = scmp.lt.s32.totalorder %s4060, 31
        %s4062 = scalar_select %p4061, %s4060, 31
        %s4063 = smul.addr %s4062, 8
        %s4064 = scalar_lea.vmem %s10, %s4063
      $region72: #{rgat_pallas.1} parent=67 // pred_fallthru
        _
    $region68: #{rgat_pallas.1} parent=5 // pred_fallthru
      _
  $region6: #{rgat_pallas.1} parent=0 // loop_footer
    %s20 = sadd.s32 1, %s16
  $region7: #{rgat_pallas.1} parent=0 // loop_footer_branch
    %15 = sbr.rel target = $region3
  $region8: #{rgat_pallas.1} parent=0 // loop_exit
    _

</llo_original>
